<compile_context>
chip_gen: v6e
topology: v6e:2x2x1
jax: 0.10.0
libtpu: 0.0.40
codegen_flags: <defaults>
</compile_context>

<pallas_src>
import jax
import jax.numpy as jnp
from jax.experimental import pallas as pl
from jax.experimental.pallas import tpu as pltpu

EPS = 1e-5
NUM_CLASSES = 10                       # args.num_classes
NEG_BIAS = -1e9                        # bias for padded class columns -> prob 0

# Logical layer widths of the Sequential: 3072 -> 250 x5 -> 50 -> num_classes
_DIMS = [32 * 32 * 3, 250, 250, 250, 250, 250, 50, NUM_CLASSES]
_PAD = 256                             # lane-dense padded width for every layer output


def fcnn_kernel(x_ref, w1_ref, wh_ref, vec_ref, out_ref):
    """Single-step kernel: the whole forward pass runs once, fully VMEM-resident.

    x_ref  : (b, 3072)     bf16 flattened input
    w1_ref : (3072, 256)   bf16 layer-1 weight (padded 250->256)
    wh_ref : (6, 256, 256) bf16 packed weights for layers 2..7 (zero padded)
    vec_ref: (7, 3, 256)   f32  packed [bias, gamma, beta] per layer
    out_ref: (b, 256)      f32  padded softmax output (cols >= 10 are exactly 0)
    """

    def vec(i, j):
        return vec_ref[i, j:j + 1, :]          # (1, 256) f32

    def bn_relu(h, i):
        # Training-mode BN (biased variance), single pass, folded into one
        # scale/shift FMA before ReLU.  Padded columns have gamma=0 -> output 0.
        g = vec(i, 1)
        be = vec(i, 2)
        mean = jnp.mean(h, axis=0, keepdims=True)
        var = jnp.maximum(jnp.mean(h * h, axis=0, keepdims=True) - mean * mean, 0.0)
        scale = g * jax.lax.rsqrt(var + EPS)
        shift = be - mean * scale
        return jnp.maximum(h * scale + shift, 0.0)

    # Layer 1: Linear (bf16 MXU, f32 acc) + bias + BN + ReLU.
    h = jnp.dot(x_ref[...], w1_ref[...], preferred_element_type=jnp.float32)
    h = bn_relu(h + vec(0, 0), 0)

    # Layers 2..6: Linear + bias + BN + ReLU (padded columns stay exactly 0).
    for li in range(1, 6):
        h = jnp.dot(h.astype(jnp.bfloat16), wh_ref[li - 1],
                    preferred_element_type=jnp.float32) + vec(li, 0)
        h = bn_relu(h, li)

    # Layer 7: Linear + Softmax(dim=1).  Padded class columns get bias=-1e9, so
    # exp underflows to exactly 0 and the real 10 probabilities sum to 1.
    logits = jnp.dot(h.astype(jnp.bfloat16), wh_ref[5],
                     preferred_element_type=jnp.float32) + vec(6, 0)
    m = jnp.max(logits, axis=1, keepdims=True)
    e = jnp.exp(logits - m)
    out_ref[...] = (e / jnp.sum(e, axis=1, keepdims=True)).astype(out_ref.dtype)


def init_params(key):
    """Deterministic init mirroring the PyTorch module's shapes, padded/packed.

    Returns:
      w1 : bf16 [3072, 256]      layer-1 weight, columns 250..255 are zero.
      wh : bf16 [6, 256, 256]    weights of layers 2..7, zero padded.
      vec: f32  [7, 3, 256]      vec[i,0]=bias, vec[i,1]=gamma, vec[i,2]=beta for
                                 layer i+1; padded class biases are -1e9.
    """
    w1 = jnp.zeros((_DIMS[0], _PAD), jnp.float32)
    wh = jnp.zeros((6, _PAD, _PAD), jnp.float32)
    vec = jnp.zeros((7, 3, _PAD), jnp.float32)
    for i in range(7):
        fan_in, fan_out = _DIMS[i], _DIMS[i + 1]
        key, kw, kb = jax.random.split(key, 3)
        bound = float(fan_in) ** -0.5
        w = jax.random.uniform(kw, (fan_in, fan_out), jnp.float32, -bound, bound)
        b = jax.random.uniform(kb, (fan_out,), jnp.float32, -bound, bound)
        if i == 0:
            w1 = w1.at[:, :fan_out].set(w)
        else:
            wh = wh.at[i - 1, :fan_in, :fan_out].set(w)
        vec = vec.at[i, 0, :fan_out].set(b)
        if i < 6:                       # BatchNorm1d after the first 6 Linears only
            vec = vec.at[i, 1, :fan_out].set(1.0)   # gamma; beta stays 0
        else:                           # final layer: kill padded class logits
            vec = vec.at[i, 0, fan_out:].set(NEG_BIAS)
    return w1.astype(jnp.bfloat16), wh.astype(jnp.bfloat16), vec


def fcnn_forward(x, w1, wh, vec):
    b = x.shape[0]
    flat = x.reshape(b, -1).astype(jnp.bfloat16)   # nn.Flatten on NCHW, bf16 for MXU/DMA

    out_padded = pl.pallas_call(
        fcnn_kernel,
        out_shape=jax.ShapeDtypeStruct((b, _PAD), jnp.float32),
        grid_spec=pltpu.PrefetchScalarGridSpec(
            num_scalar_prefetch=0,
            grid=(1,),                              # single step: everything resident
            in_specs=[
                pl.BlockSpec((b, _DIMS[0]), lambda i: (0, 0)),      # x
                pl.BlockSpec((_DIMS[0], _PAD), lambda i: (0, 0)),   # W1
                pl.BlockSpec((6, _PAD, _PAD), lambda i: (0, 0, 0)), # packed W2..W7
                pl.BlockSpec((7, 3, _PAD), lambda i: (0, 0, 0)),    # packed bias/gamma/beta
            ],
            out_specs=pl.BlockSpec((b, _PAD), lambda i: (0, 0)),
        ),
        compiler_params=pltpu.CompilerParams(
            dimension_semantics=("arbitrary",),
            vmem_limit_bytes=32 * 1024 * 1024,      # ~2.4 MB actually needed
        ),
    )(flat, w1, wh, vec)
    return out_padded[:, :NUM_CLASSES]


def _reference(x, w1, wh, vec):
    """Pure-JAX reference (same padded params, two-pass BN, exact softmax)."""
    h = x.reshape(x.shape[0], -1).astype(jnp.bfloat16)
    ws = [w1] + [wh[i] for i in range(6)]
    for i in range(6):
        hf = jnp.dot(h, ws[i], preferred_element_type=jnp.float32) + vec[i, 0]
        mean = jnp.mean(hf, axis=0, keepdims=True)
        var = jnp.mean((hf - mean) ** 2, axis=0, keepdims=True)
        hf = jnp.maximum((hf - mean) * jax.lax.rsqrt(var + EPS) * vec[i, 1]
                         + vec[i, 2], 0.0)
        h = hf.astype(jnp.bfloat16)
    logits = jnp.dot(h, ws[6], preferred_element_type=jnp.float32) + vec[6, 0]
    return jax.nn.softmax(logits[:, :NUM_CLASSES], axis=1)


if __name__ == "__main__":
    key = jax.random.PRNGKey(0)
    kx, kp = jax.random.split(key)
    batch = 8   # BatchNorm1d training-mode statistics need batch > 1
    x = jax.random.normal(kx, (batch, 3, 32, 32), jnp.float32)  # NCHW, like PyTorch
    w1, wh, vec = init_params(kp)

    out = fcnn_forward(x, w1, wh, vec)
    jax.block_until_ready(out)

    ref = _reference(x, w1, wh, vec)
    assert out.shape == (batch, NUM_CLASSES)
    # Exact divide in the kernel softmax -> rows sum to 1 up to f32 rounding.
    assert jnp.allclose(jnp.sum(out, axis=1), 1.0, atol=1e-3)
    # bf16 activations on the MXU -> looser tolerance than pure-f32.
    assert jnp.allclose(out, ref, atol=2e-2, rtol=2e-2), float(jnp.max(jnp.abs(out - ref)))
    print("KERNEL_OK")
</pallas_src>

<mosaic_0001>
module attributes {stable_mosaic.version = 11 : i64} {
  func.func @fcnn_kernel(%arg0: i32, %arg1: memref<8x3072xbf16, #tpu.memory_space<vmem>>, %arg2: memref<3072x256xbf16, #tpu.memory_space<vmem>>, %arg3: memref<6x256x256xbf16, #tpu.memory_space<vmem>>, %arg4: memref<7x3x256xf32, #tpu.memory_space<vmem>>, %arg5: memref<8x256xf32, #tpu.memory_space<vmem>>) attributes {dimension_semantics = [#tpu.dimension_semantics<arbitrary>], iteration_bounds = array<i64: 1>, scalar_prefetch = 0 : i64, scratch_operands = 0 : i64, tpu.core_type = #tpu.core_type<tc>, window_params = [{pipeline_mode = #tpu.pipeline_mode<synchronous>, transform_indices = @transform_0, window_bounds = array<i64: 8, 3072>}, {pipeline_mode = #tpu.pipeline_mode<synchronous>, transform_indices = @transform_1, window_bounds = array<i64: 3072, 256>}, {pipeline_mode = #tpu.pipeline_mode<synchronous>, transform_indices = @transform_2, window_bounds = array<i64: 6, 256, 256>}, {pipeline_mode = #tpu.pipeline_mode<synchronous>, transform_indices = @transform_3, window_bounds = array<i64: 7, 3, 256>}, {pipeline_mode = #tpu.pipeline_mode<synchronous>, transform_indices = @transform_4, window_bounds = array<i64: 8, 256>}]} {
    %c0 = arith.constant 0 : index
    %c0_0 = arith.constant 0 : index
    %0 = vector.load %arg1[%c0, %c0_0] : memref<8x3072xbf16, #tpu.memory_space<vmem>>, vector<8x3072xbf16>
    %c0_1 = arith.constant 0 : index
    %c0_2 = arith.constant 0 : index
    %1 = vector.load %arg2[%c0_1, %c0_2] : memref<3072x256xbf16, #tpu.memory_space<vmem>>, vector<3072x256xbf16>
    %cst = arith.constant dense<0.000000e+00> : vector<8x256xf32>
    %2 = tpu.matmul %0, %1, %cst {dimension_numbers = #tpu.dot_dimension_numbers<[1], [0], [0], [1], [0, 0, 1, 1], [], []>} : vector<8x3072xbf16>, vector<3072x256xbf16>, vector<8x256xf32> -> vector<8x256xf32>
    %c0_3 = arith.constant 0 : index
    %c0_4 = arith.constant 0 : index
    %c0_5 = arith.constant 0 : index
    %3 = vector.load %arg4[%c0_3, %c0_4, %c0_5] : memref<7x3x256xf32, #tpu.memory_space<vmem>>, vector<1x1x256xf32>
    %4 = vector.shape_cast %3 : vector<1x1x256xf32> to vector<1x256xf32>
    %5 = vector.broadcast %4 : vector<1x256xf32> to vector<8x256xf32>
    %6 = arith.addf %2, %5 : vector<8x256xf32>
    %c0_6 = arith.constant 0 : index
    %c1 = arith.constant 1 : index
    %c0_7 = arith.constant 0 : index
    %7 = vector.load %arg4[%c0_6, %c1, %c0_7] : memref<7x3x256xf32, #tpu.memory_space<vmem>>, vector<1x1x256xf32>
    %8 = vector.shape_cast %7 : vector<1x1x256xf32> to vector<1x256xf32>
    %c0_8 = arith.constant 0 : index
    %c2 = arith.constant 2 : index
    %c0_9 = arith.constant 0 : index
    %9 = vector.load %arg4[%c0_8, %c2, %c0_9] : memref<7x3x256xf32, #tpu.memory_space<vmem>>, vector<1x1x256xf32>
    %10 = vector.shape_cast %9 : vector<1x1x256xf32> to vector<1x256xf32>
    %cst_10 = arith.constant dense<0.000000e+00> : vector<256xf32>
    %11 = vector.multi_reduction <add>, %6, %cst_10 [0] : vector<8x256xf32> to vector<256xf32>
    %12 = vector.shape_cast %11 : vector<256xf32> to vector<1x256xf32>
    %cst_11 = arith.constant 8.000000e+00 : f32
    %13 = vector.broadcast %cst_11 : f32 to vector<1x256xf32>
    %14 = arith.divf %12, %13 : vector<1x256xf32>
    %15 = arith.mulf %6, %6 : vector<8x256xf32>
    %cst_12 = arith.constant dense<0.000000e+00> : vector<256xf32>
    %16 = vector.multi_reduction <add>, %15, %cst_12 [0] : vector<8x256xf32> to vector<256xf32>
    %17 = vector.shape_cast %16 : vector<256xf32> to vector<1x256xf32>
    %cst_13 = arith.constant 8.000000e+00 : f32
    %18 = vector.broadcast %cst_13 : f32 to vector<1x256xf32>
    %19 = arith.divf %17, %18 : vector<1x256xf32>
    %20 = arith.mulf %14, %14 : vector<1x256xf32>
    %21 = arith.subf %19, %20 : vector<1x256xf32>
    %cst_14 = arith.constant 0.000000e+00 : f32
    %22 = vector.broadcast %cst_14 : f32 to vector<1x256xf32>
    %23 = arith.maximumf %21, %22 : vector<1x256xf32>
    %cst_15 = arith.constant 9.99999974E-6 : f32
    %24 = vector.broadcast %cst_15 : f32 to vector<1x256xf32>
    %25 = arith.addf %23, %24 : vector<1x256xf32>
    %26 = math.rsqrt %25 : vector<1x256xf32>
    %27 = arith.mulf %8, %26 : vector<1x256xf32>
    %28 = arith.mulf %14, %27 : vector<1x256xf32>
    %29 = arith.subf %10, %28 : vector<1x256xf32>
    %30 = vector.broadcast %27 : vector<1x256xf32> to vector<8x256xf32>
    %31 = arith.mulf %6, %30 : vector<8x256xf32>
    %32 = vector.broadcast %29 : vector<1x256xf32> to vector<8x256xf32>
    %33 = arith.addf %31, %32 : vector<8x256xf32>
    %cst_16 = arith.constant 0.000000e+00 : f32
    %34 = vector.broadcast %cst_16 : f32 to vector<8x256xf32>
    %35 = arith.maximumf %33, %34 : vector<8x256xf32>
    %36 = arith.truncf %35 : vector<8x256xf32> to vector<8x256xbf16>
    %c0_17 = arith.constant 0 : index
    %c0_18 = arith.constant 0 : index
    %c0_19 = arith.constant 0 : index
    %37 = vector.load %arg3[%c0_17, %c0_18, %c0_19] : memref<6x256x256xbf16, #tpu.memory_space<vmem>>, vector<1x256x256xbf16>
    %38 = vector.shape_cast %37 : vector<1x256x256xbf16> to vector<256x256xbf16>
    %cst_20 = arith.constant dense<0.000000e+00> : vector<8x256xf32>
    %39 = tpu.matmul %36, %38, %cst_20 {dimension_numbers = #tpu.dot_dimension_numbers<[1], [0], [0], [1], [0, 0, 1, 1], [], []>} : vector<8x256xbf16>, vector<256x256xbf16>, vector<8x256xf32> -> vector<8x256xf32>
    %c1_21 = arith.constant 1 : index
    %c0_22 = arith.constant 0 : index
    %c0_23 = arith.constant 0 : index
    %40 = vector.load %arg4[%c1_21, %c0_22, %c0_23] : memref<7x3x256xf32, #tpu.memory_space<vmem>>, vector<1x1x256xf32>
    %41 = vector.shape_cast %40 : vector<1x1x256xf32> to vector<1x256xf32>
    %42 = vector.broadcast %41 : vector<1x256xf32> to vector<8x256xf32>
    %43 = arith.addf %39, %42 : vector<8x256xf32>
    %c1_24 = arith.constant 1 : index
    %c1_25 = arith.constant 1 : index
    %c0_26 = arith.constant 0 : index
    %44 = vector.load %arg4[%c1_24, %c1_25, %c0_26] : memref<7x3x256xf32, #tpu.memory_space<vmem>>, vector<1x1x256xf32>
    %45 = vector.shape_cast %44 : vector<1x1x256xf32> to vector<1x256xf32>
    %c1_27 = arith.constant 1 : index
    %c2_28 = arith.constant 2 : index
    %c0_29 = arith.constant 0 : index
    %46 = vector.load %arg4[%c1_27, %c2_28, %c0_29] : memref<7x3x256xf32, #tpu.memory_space<vmem>>, vector<1x1x256xf32>
    %47 = vector.shape_cast %46 : vector<1x1x256xf32> to vector<1x256xf32>
    %cst_30 = arith.constant dense<0.000000e+00> : vector<256xf32>
    %48 = vector.multi_reduction <add>, %43, %cst_30 [0] : vector<8x256xf32> to vector<256xf32>
    %49 = vector.shape_cast %48 : vector<256xf32> to vector<1x256xf32>
    %cst_31 = arith.constant 8.000000e+00 : f32
    %50 = vector.broadcast %cst_31 : f32 to vector<1x256xf32>
    %51 = arith.divf %49, %50 : vector<1x256xf32>
    %52 = arith.mulf %43, %43 : vector<8x256xf32>
    %cst_32 = arith.constant dense<0.000000e+00> : vector<256xf32>
    %53 = vector.multi_reduction <add>, %52, %cst_32 [0] : vector<8x256xf32> to vector<256xf32>
    %54 = vector.shape_cast %53 : vector<256xf32> to vector<1x256xf32>
    %cst_33 = arith.constant 8.000000e+00 : f32
    %55 = vector.broadcast %cst_33 : f32 to vector<1x256xf32>
    %56 = arith.divf %54, %55 : vector<1x256xf32>
    %57 = arith.mulf %51, %51 : vector<1x256xf32>
    %58 = arith.subf %56, %57 : vector<1x256xf32>
    %cst_34 = arith.constant 0.000000e+00 : f32
    %59 = vector.broadcast %cst_34 : f32 to vector<1x256xf32>
    %60 = arith.maximumf %58, %59 : vector<1x256xf32>
    %cst_35 = arith.constant 9.99999974E-6 : f32
    %61 = vector.broadcast %cst_35 : f32 to vector<1x256xf32>
    %62 = arith.addf %60, %61 : vector<1x256xf32>
    %63 = math.rsqrt %62 : vector<1x256xf32>
    %64 = arith.mulf %45, %63 : vector<1x256xf32>
    %65 = arith.mulf %51, %64 : vector<1x256xf32>
    %66 = arith.subf %47, %65 : vector<1x256xf32>
    %67 = vector.broadcast %64 : vector<1x256xf32> to vector<8x256xf32>
    %68 = arith.mulf %43, %67 : vector<8x256xf32>
    %69 = vector.broadcast %66 : vector<1x256xf32> to vector<8x256xf32>
    %70 = arith.addf %68, %69 : vector<8x256xf32>
    %cst_36 = arith.constant 0.000000e+00 : f32
    %71 = vector.broadcast %cst_36 : f32 to vector<8x256xf32>
    %72 = arith.maximumf %70, %71 : vector<8x256xf32>
    %73 = arith.truncf %72 : vector<8x256xf32> to vector<8x256xbf16>
    %c1_37 = arith.constant 1 : index
    %c0_38 = arith.constant 0 : index
    %c0_39 = arith.constant 0 : index
    %74 = vector.load %arg3[%c1_37, %c0_38, %c0_39] : memref<6x256x256xbf16, #tpu.memory_space<vmem>>, vector<1x256x256xbf16>
    %75 = vector.shape_cast %74 : vector<1x256x256xbf16> to vector<256x256xbf16>
    %cst_40 = arith.constant dense<0.000000e+00> : vector<8x256xf32>
    %76 = tpu.matmul %73, %75, %cst_40 {dimension_numbers = #tpu.dot_dimension_numbers<[1], [0], [0], [1], [0, 0, 1, 1], [], []>} : vector<8x256xbf16>, vector<256x256xbf16>, vector<8x256xf32> -> vector<8x256xf32>
    %c2_41 = arith.constant 2 : index
    %c0_42 = arith.constant 0 : index
    %c0_43 = arith.constant 0 : index
    %77 = vector.load %arg4[%c2_41, %c0_42, %c0_43] : memref<7x3x256xf32, #tpu.memory_space<vmem>>, vector<1x1x256xf32>
    %78 = vector.shape_cast %77 : vector<1x1x256xf32> to vector<1x256xf32>
    %79 = vector.broadcast %78 : vector<1x256xf32> to vector<8x256xf32>
    %80 = arith.addf %76, %79 : vector<8x256xf32>
    %c2_44 = arith.constant 2 : index
    %c1_45 = arith.constant 1 : index
    %c0_46 = arith.constant 0 : index
    %81 = vector.load %arg4[%c2_44, %c1_45, %c0_46] : memref<7x3x256xf32, #tpu.memory_space<vmem>>, vector<1x1x256xf32>
    %82 = vector.shape_cast %81 : vector<1x1x256xf32> to vector<1x256xf32>
    %c2_47 = arith.constant 2 : index
    %c2_48 = arith.constant 2 : index
    %c0_49 = arith.constant 0 : index
    %83 = vector.load %arg4[%c2_47, %c2_48, %c0_49] : memref<7x3x256xf32, #tpu.memory_space<vmem>>, vector<1x1x256xf32>
    %84 = vector.shape_cast %83 : vector<1x1x256xf32> to vector<1x256xf32>
    %cst_50 = arith.constant dense<0.000000e+00> : vector<256xf32>
    %85 = vector.multi_reduction <add>, %80, %cst_50 [0] : vector<8x256xf32> to vector<256xf32>
    %86 = vector.shape_cast %85 : vector<256xf32> to vector<1x256xf32>
    %cst_51 = arith.constant 8.000000e+00 : f32
    %87 = vector.broadcast %cst_51 : f32 to vector<1x256xf32>
    %88 = arith.divf %86, %87 : vector<1x256xf32>
    %89 = arith.mulf %80, %80 : vector<8x256xf32>
    %cst_52 = arith.constant dense<0.000000e+00> : vector<256xf32>
    %90 = vector.multi_reduction <add>, %89, %cst_52 [0] : vector<8x256xf32> to vector<256xf32>
    %91 = vector.shape_cast %90 : vector<256xf32> to vector<1x256xf32>
    %cst_53 = arith.constant 8.000000e+00 : f32
    %92 = vector.broadcast %cst_53 : f32 to vector<1x256xf32>
    %93 = arith.divf %91, %92 : vector<1x256xf32>
    %94 = arith.mulf %88, %88 : vector<1x256xf32>
    %95 = arith.subf %93, %94 : vector<1x256xf32>
    %cst_54 = arith.constant 0.000000e+00 : f32
    %96 = vector.broadcast %cst_54 : f32 to vector<1x256xf32>
    %97 = arith.maximumf %95, %96 : vector<1x256xf32>
    %cst_55 = arith.constant 9.99999974E-6 : f32
    %98 = vector.broadcast %cst_55 : f32 to vector<1x256xf32>
    %99 = arith.addf %97, %98 : vector<1x256xf32>
    %100 = math.rsqrt %99 : vector<1x256xf32>
    %101 = arith.mulf %82, %100 : vector<1x256xf32>
    %102 = arith.mulf %88, %101 : vector<1x256xf32>
    %103 = arith.subf %84, %102 : vector<1x256xf32>
    %104 = vector.broadcast %101 : vector<1x256xf32> to vector<8x256xf32>
    %105 = arith.mulf %80, %104 : vector<8x256xf32>
    %106 = vector.broadcast %103 : vector<1x256xf32> to vector<8x256xf32>
    %107 = arith.addf %105, %106 : vector<8x256xf32>
    %cst_56 = arith.constant 0.000000e+00 : f32
    %108 = vector.broadcast %cst_56 : f32 to vector<8x256xf32>
    %109 = arith.maximumf %107, %108 : vector<8x256xf32>
    %110 = arith.truncf %109 : vector<8x256xf32> to vector<8x256xbf16>
    %c2_57 = arith.constant 2 : index
    %c0_58 = arith.constant 0 : index
    %c0_59 = arith.constant 0 : index
    %111 = vector.load %arg3[%c2_57, %c0_58, %c0_59] : memref<6x256x256xbf16, #tpu.memory_space<vmem>>, vector<1x256x256xbf16>
    %112 = vector.shape_cast %111 : vector<1x256x256xbf16> to vector<256x256xbf16>
    %cst_60 = arith.constant dense<0.000000e+00> : vector<8x256xf32>
    %113 = tpu.matmul %110, %112, %cst_60 {dimension_numbers = #tpu.dot_dimension_numbers<[1], [0], [0], [1], [0, 0, 1, 1], [], []>} : vector<8x256xbf16>, vector<256x256xbf16>, vector<8x256xf32> -> vector<8x256xf32>
    %c3 = arith.constant 3 : index
    %c0_61 = arith.constant 0 : index
    %c0_62 = arith.constant 0 : index
    %114 = vector.load %arg4[%c3, %c0_61, %c0_62] : memref<7x3x256xf32, #tpu.memory_space<vmem>>, vector<1x1x256xf32>
    %115 = vector.shape_cast %114 : vector<1x1x256xf32> to vector<1x256xf32>
    %116 = vector.broadcast %115 : vector<1x256xf32> to vector<8x256xf32>
    %117 = arith.addf %113, %116 : vector<8x256xf32>
    %c3_63 = arith.constant 3 : index
    %c1_64 = arith.constant 1 : index
    %c0_65 = arith.constant 0 : index
    %118 = vector.load %arg4[%c3_63, %c1_64, %c0_65] : memref<7x3x256xf32, #tpu.memory_space<vmem>>, vector<1x1x256xf32>
    %119 = vector.shape_cast %118 : vector<1x1x256xf32> to vector<1x256xf32>
    %c3_66 = arith.constant 3 : index
    %c2_67 = arith.constant 2 : index
    %c0_68 = arith.constant 0 : index
    %120 = vector.load %arg4[%c3_66, %c2_67, %c0_68] : memref<7x3x256xf32, #tpu.memory_space<vmem>>, vector<1x1x256xf32>
    %121 = vector.shape_cast %120 : vector<1x1x256xf32> to vector<1x256xf32>
    %cst_69 = arith.constant dense<0.000000e+00> : vector<256xf32>
    %122 = vector.multi_reduction <add>, %117, %cst_69 [0] : vector<8x256xf32> to vector<256xf32>
    %123 = vector.shape_cast %122 : vector<256xf32> to vector<1x256xf32>
    %cst_70 = arith.constant 8.000000e+00 : f32
    %124 = vector.broadcast %cst_70 : f32 to vector<1x256xf32>
    %125 = arith.divf %123, %124 : vector<1x256xf32>
    %126 = arith.mulf %117, %117 : vector<8x256xf32>
    %cst_71 = arith.constant dense<0.000000e+00> : vector<256xf32>
    %127 = vector.multi_reduction <add>, %126, %cst_71 [0] : vector<8x256xf32> to vector<256xf32>
    %128 = vector.shape_cast %127 : vector<256xf32> to vector<1x256xf32>
    %cst_72 = arith.constant 8.000000e+00 : f32
    %129 = vector.broadcast %cst_72 : f32 to vector<1x256xf32>
    %130 = arith.divf %128, %129 : vector<1x256xf32>
    %131 = arith.mulf %125, %125 : vector<1x256xf32>
    %132 = arith.subf %130, %131 : vector<1x256xf32>
    %cst_73 = arith.constant 0.000000e+00 : f32
    %133 = vector.broadcast %cst_73 : f32 to vector<1x256xf32>
    %134 = arith.maximumf %132, %133 : vector<1x256xf32>
    %cst_74 = arith.constant 9.99999974E-6 : f32
    %135 = vector.broadcast %cst_74 : f32 to vector<1x256xf32>
    %136 = arith.addf %134, %135 : vector<1x256xf32>
    %137 = math.rsqrt %136 : vector<1x256xf32>
    %138 = arith.mulf %119, %137 : vector<1x256xf32>
    %139 = arith.mulf %125, %138 : vector<1x256xf32>
    %140 = arith.subf %121, %139 : vector<1x256xf32>
    %141 = vector.broadcast %138 : vector<1x256xf32> to vector<8x256xf32>
    %142 = arith.mulf %117, %141 : vector<8x256xf32>
    %143 = vector.broadcast %140 : vector<1x256xf32> to vector<8x256xf32>
    %144 = arith.addf %142, %143 : vector<8x256xf32>
    %cst_75 = arith.constant 0.000000e+00 : f32
    %145 = vector.broadcast %cst_75 : f32 to vector<8x256xf32>
    %146 = arith.maximumf %144, %145 : vector<8x256xf32>
    %147 = arith.truncf %146 : vector<8x256xf32> to vector<8x256xbf16>
    %c3_76 = arith.constant 3 : index
    %c0_77 = arith.constant 0 : index
    %c0_78 = arith.constant 0 : index
    %148 = vector.load %arg3[%c3_76, %c0_77, %c0_78] : memref<6x256x256xbf16, #tpu.memory_space<vmem>>, vector<1x256x256xbf16>
    %149 = vector.shape_cast %148 : vector<1x256x256xbf16> to vector<256x256xbf16>
    %cst_79 = arith.constant dense<0.000000e+00> : vector<8x256xf32>
    %150 = tpu.matmul %147, %149, %cst_79 {dimension_numbers = #tpu.dot_dimension_numbers<[1], [0], [0], [1], [0, 0, 1, 1], [], []>} : vector<8x256xbf16>, vector<256x256xbf16>, vector<8x256xf32> -> vector<8x256xf32>
    %c4 = arith.constant 4 : index
    %c0_80 = arith.constant 0 : index
    %c0_81 = arith.constant 0 : index
    %151 = vector.load %arg4[%c4, %c0_80, %c0_81] : memref<7x3x256xf32, #tpu.memory_space<vmem>>, vector<1x1x256xf32>
    %152 = vector.shape_cast %151 : vector<1x1x256xf32> to vector<1x256xf32>
    %153 = vector.broadcast %152 : vector<1x256xf32> to vector<8x256xf32>
    %154 = arith.addf %150, %153 : vector<8x256xf32>
    %c4_82 = arith.constant 4 : index
    %c1_83 = arith.constant 1 : index
    %c0_84 = arith.constant 0 : index
    %155 = vector.load %arg4[%c4_82, %c1_83, %c0_84] : memref<7x3x256xf32, #tpu.memory_space<vmem>>, vector<1x1x256xf32>
    %156 = vector.shape_cast %155 : vector<1x1x256xf32> to vector<1x256xf32>
    %c4_85 = arith.constant 4 : index
    %c2_86 = arith.constant 2 : index
    %c0_87 = arith.constant 0 : index
    %157 = vector.load %arg4[%c4_85, %c2_86, %c0_87] : memref<7x3x256xf32, #tpu.memory_space<vmem>>, vector<1x1x256xf32>
    %158 = vector.shape_cast %157 : vector<1x1x256xf32> to vector<1x256xf32>
    %cst_88 = arith.constant dense<0.000000e+00> : vector<256xf32>
    %159 = vector.multi_reduction <add>, %154, %cst_88 [0] : vector<8x256xf32> to vector<256xf32>
    %160 = vector.shape_cast %159 : vector<256xf32> to vector<1x256xf32>
    %cst_89 = arith.constant 8.000000e+00 : f32
    %161 = vector.broadcast %cst_89 : f32 to vector<1x256xf32>
    %162 = arith.divf %160, %161 : vector<1x256xf32>
    %163 = arith.mulf %154, %154 : vector<8x256xf32>
    %cst_90 = arith.constant dense<0.000000e+00> : vector<256xf32>
    %164 = vector.multi_reduction <add>, %163, %cst_90 [0] : vector<8x256xf32> to vector<256xf32>
    %165 = vector.shape_cast %164 : vector<256xf32> to vector<1x256xf32>
    %cst_91 = arith.constant 8.000000e+00 : f32
    %166 = vector.broadcast %cst_91 : f32 to vector<1x256xf32>
    %167 = arith.divf %165, %166 : vector<1x256xf32>
    %168 = arith.mulf %162, %162 : vector<1x256xf32>
    %169 = arith.subf %167, %168 : vector<1x256xf32>
    %cst_92 = arith.constant 0.000000e+00 : f32
    %170 = vector.broadcast %cst_92 : f32 to vector<1x256xf32>
    %171 = arith.maximumf %169, %170 : vector<1x256xf32>
    %cst_93 = arith.constant 9.99999974E-6 : f32
    %172 = vector.broadcast %cst_93 : f32 to vector<1x256xf32>
    %173 = arith.addf %171, %172 : vector<1x256xf32>
    %174 = math.rsqrt %173 : vector<1x256xf32>
    %175 = arith.mulf %156, %174 : vector<1x256xf32>
    %176 = arith.mulf %162, %175 : vector<1x256xf32>
    %177 = arith.subf %158, %176 : vector<1x256xf32>
    %178 = vector.broadcast %175 : vector<1x256xf32> to vector<8x256xf32>
    %179 = arith.mulf %154, %178 : vector<8x256xf32>
    %180 = vector.broadcast %177 : vector<1x256xf32> to vector<8x256xf32>
    %181 = arith.addf %179, %180 : vector<8x256xf32>
    %cst_94 = arith.constant 0.000000e+00 : f32
    %182 = vector.broadcast %cst_94 : f32 to vector<8x256xf32>
    %183 = arith.maximumf %181, %182 : vector<8x256xf32>
    %184 = arith.truncf %183 : vector<8x256xf32> to vector<8x256xbf16>
    %c4_95 = arith.constant 4 : index
    %c0_96 = arith.constant 0 : index
    %c0_97 = arith.constant 0 : index
    %185 = vector.load %arg3[%c4_95, %c0_96, %c0_97] : memref<6x256x256xbf16, #tpu.memory_space<vmem>>, vector<1x256x256xbf16>
    %186 = vector.shape_cast %185 : vector<1x256x256xbf16> to vector<256x256xbf16>
    %cst_98 = arith.constant dense<0.000000e+00> : vector<8x256xf32>
    %187 = tpu.matmul %184, %186, %cst_98 {dimension_numbers = #tpu.dot_dimension_numbers<[1], [0], [0], [1], [0, 0, 1, 1], [], []>} : vector<8x256xbf16>, vector<256x256xbf16>, vector<8x256xf32> -> vector<8x256xf32>
    %c5 = arith.constant 5 : index
    %c0_99 = arith.constant 0 : index
    %c0_100 = arith.constant 0 : index
    %188 = vector.load %arg4[%c5, %c0_99, %c0_100] : memref<7x3x256xf32, #tpu.memory_space<vmem>>, vector<1x1x256xf32>
    %189 = vector.shape_cast %188 : vector<1x1x256xf32> to vector<1x256xf32>
    %190 = vector.broadcast %189 : vector<1x256xf32> to vector<8x256xf32>
    %191 = arith.addf %187, %190 : vector<8x256xf32>
    %c5_101 = arith.constant 5 : index
    %c1_102 = arith.constant 1 : index
    %c0_103 = arith.constant 0 : index
    %192 = vector.load %arg4[%c5_101, %c1_102, %c0_103] : memref<7x3x256xf32, #tpu.memory_space<vmem>>, vector<1x1x256xf32>
    %193 = vector.shape_cast %192 : vector<1x1x256xf32> to vector<1x256xf32>
    %c5_104 = arith.constant 5 : index
    %c2_105 = arith.constant 2 : index
    %c0_106 = arith.constant 0 : index
    %194 = vector.load %arg4[%c5_104, %c2_105, %c0_106] : memref<7x3x256xf32, #tpu.memory_space<vmem>>, vector<1x1x256xf32>
    %195 = vector.shape_cast %194 : vector<1x1x256xf32> to vector<1x256xf32>
    %cst_107 = arith.constant dense<0.000000e+00> : vector<256xf32>
    %196 = vector.multi_reduction <add>, %191, %cst_107 [0] : vector<8x256xf32> to vector<256xf32>
    %197 = vector.shape_cast %196 : vector<256xf32> to vector<1x256xf32>
    %cst_108 = arith.constant 8.000000e+00 : f32
    %198 = vector.broadcast %cst_108 : f32 to vector<1x256xf32>
    %199 = arith.divf %197, %198 : vector<1x256xf32>
    %200 = arith.mulf %191, %191 : vector<8x256xf32>
    %cst_109 = arith.constant dense<0.000000e+00> : vector<256xf32>
    %201 = vector.multi_reduction <add>, %200, %cst_109 [0] : vector<8x256xf32> to vector<256xf32>
    %202 = vector.shape_cast %201 : vector<256xf32> to vector<1x256xf32>
    %cst_110 = arith.constant 8.000000e+00 : f32
    %203 = vector.broadcast %cst_110 : f32 to vector<1x256xf32>
    %204 = arith.divf %202, %203 : vector<1x256xf32>
    %205 = arith.mulf %199, %199 : vector<1x256xf32>
    %206 = arith.subf %204, %205 : vector<1x256xf32>
    %cst_111 = arith.constant 0.000000e+00 : f32
    %207 = vector.broadcast %cst_111 : f32 to vector<1x256xf32>
    %208 = arith.maximumf %206, %207 : vector<1x256xf32>
    %cst_112 = arith.constant 9.99999974E-6 : f32
    %209 = vector.broadcast %cst_112 : f32 to vector<1x256xf32>
    %210 = arith.addf %208, %209 : vector<1x256xf32>
    %211 = math.rsqrt %210 : vector<1x256xf32>
    %212 = arith.mulf %193, %211 : vector<1x256xf32>
    %213 = arith.mulf %199, %212 : vector<1x256xf32>
    %214 = arith.subf %195, %213 : vector<1x256xf32>
    %215 = vector.broadcast %212 : vector<1x256xf32> to vector<8x256xf32>
    %216 = arith.mulf %191, %215 : vector<8x256xf32>
    %217 = vector.broadcast %214 : vector<1x256xf32> to vector<8x256xf32>
    %218 = arith.addf %216, %217 : vector<8x256xf32>
    %cst_113 = arith.constant 0.000000e+00 : f32
    %219 = vector.broadcast %cst_113 : f32 to vector<8x256xf32>
    %220 = arith.maximumf %218, %219 : vector<8x256xf32>
    %221 = arith.truncf %220 : vector<8x256xf32> to vector<8x256xbf16>
    %c5_114 = arith.constant 5 : index
    %c0_115 = arith.constant 0 : index
    %c0_116 = arith.constant 0 : index
    %222 = vector.load %arg3[%c5_114, %c0_115, %c0_116] : memref<6x256x256xbf16, #tpu.memory_space<vmem>>, vector<1x256x256xbf16>
    %223 = vector.shape_cast %222 : vector<1x256x256xbf16> to vector<256x256xbf16>
    %cst_117 = arith.constant dense<0.000000e+00> : vector<8x256xf32>
    %224 = tpu.matmul %221, %223, %cst_117 {dimension_numbers = #tpu.dot_dimension_numbers<[1], [0], [0], [1], [0, 0, 1, 1], [], []>} : vector<8x256xbf16>, vector<256x256xbf16>, vector<8x256xf32> -> vector<8x256xf32>
    %c6 = arith.constant 6 : index
    %c0_118 = arith.constant 0 : index
    %c0_119 = arith.constant 0 : index
    %225 = vector.load %arg4[%c6, %c0_118, %c0_119] : memref<7x3x256xf32, #tpu.memory_space<vmem>>, vector<1x1x256xf32>
    %226 = vector.shape_cast %225 : vector<1x1x256xf32> to vector<1x256xf32>
    %227 = vector.broadcast %226 : vector<1x256xf32> to vector<8x256xf32>
    %228 = arith.addf %224, %227 : vector<8x256xf32>
    %cst_120 = arith.constant dense<0xFF800000> : vector<8xf32>
    %229 = vector.multi_reduction <maximumf>, %228, %cst_120 [1] : vector<8x256xf32> to vector<8xf32>
    %230 = vector.shape_cast %229 : vector<8xf32> to vector<8x1xf32>
    %231 = vector.broadcast %230 : vector<8x1xf32> to vector<8x256xf32>
    %232 = arith.subf %228, %231 : vector<8x256xf32>
    %233 = math.exp %232 : vector<8x256xf32>
    %cst_121 = arith.constant dense<0.000000e+00> : vector<8xf32>
    %234 = vector.multi_reduction <add>, %233, %cst_121 [1] : vector<8x256xf32> to vector<8xf32>
    %235 = vector.shape_cast %234 : vector<8xf32> to vector<8x1xf32>
    %236 = vector.broadcast %235 : vector<8x1xf32> to vector<8x256xf32>
    %237 = arith.divf %233, %236 : vector<8x256xf32>
    %c0_122 = arith.constant 0 : index
    %c0_123 = arith.constant 0 : index
    %238 = vector.load %arg5[%c0_122, %c0_123] : memref<8x256xf32, #tpu.memory_space<vmem>>, vector<8x256xf32>
    tpu.vector_store %arg5[%c0_122, %c0_123], %237 {strides = array<i32>} : memref<8x256xf32, #tpu.memory_space<vmem>>, vector<8x256xf32>,
    return
  }
  func.func @transform_0(%arg0: i32) -> (i32, i32) {
    %c0_i32 = arith.constant 0 : i32
    %c0_i32_0 = arith.constant 0 : i32
    %c0_i32_1 = arith.constant 0 : i32
    return %c0_i32, %c0_i32_0 : i32, i32
  }
  func.func @transform_1(%arg0: i32) -> (i32, i32) {
    %c0_i32 = arith.constant 0 : i32
    %c0_i32_0 = arith.constant 0 : i32
    %c0_i32_1 = arith.constant 0 : i32
    return %c0_i32, %c0_i32_0 : i32, i32
  }
  func.func @transform_2(%arg0: i32) -> (i32, i32, i32) {
    %c0_i32 = arith.constant 0 : i32
    %c0_i32_0 = arith.constant 0 : i32
    %c0_i32_1 = arith.constant 0 : i32
    %c0_i32_2 = arith.constant 0 : i32
    return %c0_i32, %c0_i32_0, %c0_i32_1 : i32, i32, i32
  }
  func.func @transform_3(%arg0: i32) -> (i32, i32, i32) {
    %c0_i32 = arith.constant 0 : i32
    %c0_i32_0 = arith.constant 0 : i32
    %c0_i32_1 = arith.constant 0 : i32
    %c0_i32_2 = arith.constant 0 : i32
    return %c0_i32, %c0_i32_0, %c0_i32_1 : i32, i32, i32
  }
  func.func @transform_4(%arg0: i32) -> (i32, i32) {
    %c0_i32 = arith.constant 0 : i32
    %c0_i32_0 = arith.constant 0 : i32
    %c0_i32_1 = arith.constant 0 : i32
    return %c0_i32, %c0_i32_0 : i32, i32
  }
}

</mosaic_0001>

<llo_original>
// kernel: tpu_custom_call.1
$region0: #{tpu_custom_call.1}
  #allocation0 [shape = 'u32[]', space=smem, size = 0x4, offset = 0x4, fixed_abs, tag = 'smem constant byte address 0x4 - core index']
  #allocation1 [shape = 'u32[144,128]{1,0:T(1,128)}', space=vmem, size = 0x12000, scoped, tag = 'internal scratch']
  %s0 = inlined_call_operand.hbm [shape: bf16[8,3072], index: 0, kind: input, shape index: {}]
  %s1 = inlined_call_operand.hbm [shape: bf16[3072,256], index: 1, kind: input, shape index: {}]
  %s2 = inlined_call_operand.hbm [shape: bf16[6,256,256], index: 2, kind: input, shape index: {}]
  %s3 = inlined_call_operand.vmem [shape: f32[7,3,256], index: 3, kind: input, shape index: {}]
  %s4 = inlined_call_operand.hbm [shape: f32[8,256], index: 4, kind: output, shape index: {}]
  %s5 = sld [smem:[#allocation0]]
  $region38: #{tpu_custom_call.1} parent=0
    _
  %s7 = ssub.s32 1, %s5
  %s8 = scalar_select 0, %s7, %s5
  $region1: #{tpu_custom_call.1} parent=0
    #allocation2 [shape = 'u8[49152]{0}', space=vmem, size = 0xc000, scoped, tag = 'input window, operand 0, single buffered']
    #allocation3 [shape = 's32[1]{0}', space=sflag, size = 0x4, scoped, tag = 'scoped memory for tpu_custom_call.1']
    #allocation4 [shape = 's32[1]{0}', space=sflag, size = 0x4, scoped, tag = 'scoped memory for tpu_custom_call.1']
    #allocation5 [shape = 'u8[1572864]{0}', space=vmem, size = 0x180000, scoped, tag = 'input window, operand 1, single buffered']
    #allocation6 [shape = 's32[1]{0}', space=sflag, size = 0x4, scoped, tag = 'scoped memory for tpu_custom_call.1']
    #allocation7 [shape = 'u8[786432]{0}', space=vmem, size = 0xc0000, scoped, tag = 'input window, operand 2, single buffered']
    #allocation8 [shape = 'u8[8192]{0}', space=vmem, size = 0x2000, scoped, tag = 'output window, operand 0, single buffered']
    %9 = vsyncpa [#allocation3], 0
    %10 = vsyncpa [#allocation6], 0
    %11 = vsyncpa [#allocation4], 0
    // Predicated region
    $region2: #{tpu_custom_call.1} parent=1 // pred_check
      _
    $region3: #{tpu_custom_call.1} parent=1 // pred_check_branch
      %13 = sbr.rel (0) target = $region5
    $region4: #{tpu_custom_call.1} parent=1 // pred_region
      %s15 = ssub.s32 1536, 1536
      %16 = vsyncadd [#allocation3], %s15
      %s18 = sshll.u32 [#allocation2], 4
      %s19 = int_to_ptr.vmem [resolvable:$true] %s18
      %21 = dma.hbm_to_vmem [thread:$0]  %s0, 1536, %s19, [#allocation3]
    $region5: #{tpu_custom_call.1} parent=1 // pred_fallthru
      _
    // Predicated region
    $region6: #{tpu_custom_call.1} parent=1 // pred_check
      _
    $region7: #{tpu_custom_call.1} parent=1 // pred_check_branch
      %23 = sbr.rel (0) target = $region9
    $region8: #{tpu_custom_call.1} parent=1 // pred_region
      %s25 = ssub.s32 49152, 49152
      %26 = vsyncadd [#allocation6], %s25
      %s27 = sshll.u32 [#allocation5], 4
      %s28 = int_to_ptr.vmem [resolvable:$true] %s27
      %33 = dma.hbm_to_vmem [thread:$0]  %s1, 49152, %s28, [#allocation6], 128, 128, 8
    $region9: #{tpu_custom_call.1} parent=1 // pred_fallthru
      _
    // Predicated region
    $region10: #{tpu_custom_call.1} parent=1 // pred_check
      _
    $region11: #{tpu_custom_call.1} parent=1 // pred_check_branch
      %35 = sbr.rel (0) target = $region13
    $region12: #{tpu_custom_call.1} parent=1 // pred_region
      %s37 = ssub.s32 24576, 24576
      %38 = vsyncadd [#allocation6], %s37
      %s39 = sshll.u32 [#allocation7], 4
      %s40 = int_to_ptr.vmem [resolvable:$true] %s39
      %45 = dma.hbm_to_vmem [thread:$0]  %s2, 24576, %s40, [#allocation6], 128, 128, 8
    $region13: #{tpu_custom_call.1} parent=1 // pred_fallthru
      _
    // Predicated region
    $region14: #{tpu_custom_call.1} parent=1 // pred_check
      _
    $region15: #{tpu_custom_call.1} parent=1 // pred_check_branch
      %47 = sbr.rel (0) target = $region17
    $region16: #{tpu_custom_call.1} parent=1 // pred_region
      _
    $region17: #{tpu_custom_call.1} parent=1 // pred_fallthru
      _
    // Predicated region
    $region18: #{tpu_custom_call.1} parent=1 // pred_check
      _
    $region19: #{tpu_custom_call.1} parent=1 // pred_check_branch
      %49 = sbr.rel (0) target = $region21
    $region20: #{tpu_custom_call.1} parent=1 // pred_region
      %50 = dma.done [#allocation3], 1536
    $region21: #{tpu_custom_call.1} parent=1 // pred_fallthru
      _
    // Predicated region
    $region22: #{tpu_custom_call.1} parent=1 // pred_check
      _
    $region23: #{tpu_custom_call.1} parent=1 // pred_check_branch
      %52 = sbr.rel (0) target = $region25
    $region24: #{tpu_custom_call.1} parent=1 // pred_region
      %53 = dma.done [#allocation6], 49152
    $region25: #{tpu_custom_call.1} parent=1 // pred_fallthru
      _
    // Predicated region
    $region26: #{tpu_custom_call.1} parent=1 // pred_check
      _
    $region27: #{tpu_custom_call.1} parent=1 // pred_check_branch
      %55 = sbr.rel (0) target = $region29
    $region28: #{tpu_custom_call.1} parent=1 // pred_region
      %56 = dma.done [#allocation6], 24576
    $region29: #{tpu_custom_call.1} parent=1 // pred_fallthru
      _
    %v57 = vld [vmem:[#allocation2] sm:$0xff]
    %v58 = vld [vmem:[#allocation2 + $0x8] sm:$0xff]
    %v59 = vld [vmem:[#allocation2 + $0x10] sm:$0xff]
    %v60 = vld [vmem:[#allocation2 + $0x18] sm:$0xff]
    %v61 = vld [vmem:[#allocation2 + $0x20] sm:$0xff]
    %v62 = vld [vmem:[#allocation2 + $0x28] sm:$0xff]
    %v63 = vld [vmem:[#allocation2 + $0x30] sm:$0xff]
    %v64 = vld [vmem:[#allocation2 + $0x38] sm:$0xff]
    %v65 = vld [vmem:[#allocation2 + $0x40] sm:$0xff]
    %v66 = vld [vmem:[#allocation2 + $0x48] sm:$0xff]
    %v67 = vld [vmem:[#allocation2 + $0x50] sm:$0xff]
    %v68 = vld [vmem:[#allocation2 + $0x58] sm:$0xff]
    %v69 = vld [vmem:[#allocation5] sm:$0xff]
    %v70 = vld [vmem:[#allocation5 + $0x8] sm:$0xff]
    %v71 = vld [vmem:[#allocation5 + $0x10] sm:$0xff]
    %v72 = vld [vmem:[#allocation5 + $0x18] sm:$0xff]
    %v73 = vld [vmem:[#allocation5 + $0x20] sm:$0xff]
    %v74 = vld [vmem:[#allocation5 + $0x28] sm:$0xff]
    %v75 = vld [vmem:[#allocation5 + $0x30] sm:$0xff]
    %v76 = vld [vmem:[#allocation5 + $0x38] sm:$0xff]
    %v77 = vld [vmem:[#allocation5 + $0x40] sm:$0xff]
    %v78 = vld [vmem:[#allocation5 + $0x48] sm:$0xff]
    %v79 = vld [vmem:[#allocation5 + $0x50] sm:$0xff]
    %v80 = vld [vmem:[#allocation5 + $0x58] sm:$0xff]
    %v81 = vld [vmem:[#allocation5 + $0x60] sm:$0xff]
    %v82 = vld [vmem:[#allocation5 + $0x68] sm:$0xff]
    %v83 = vld [vmem:[#allocation5 + $0x70] sm:$0xff]
    %v84 = vld [vmem:[#allocation5 + $0x78] sm:$0xff]
    %v85 = vld [vmem:[#allocation5 + $0x80] sm:$0xff]
    %v86 = vld [vmem:[#allocation5 + $0x88] sm:$0xff]
    %v87 = vld [vmem:[#allocation5 + $0x90] sm:$0xff]
    %v88 = vld [vmem:[#allocation5 + $0x98] sm:$0xff]
    %v89 = vld [vmem:[#allocation5 + $0xa0] sm:$0xff]
    %v90 = vld [vmem:[#allocation5 + $0xa8] sm:$0xff]
    %v91 = vld [vmem:[#allocation5 + $0xb0] sm:$0xff]
    %v92 = vld [vmem:[#allocation5 + $0xb8] sm:$0xff]
    %v93 = vld [vmem:[#allocation5 + $0xc0] sm:$0xff]
    %v94 = vld [vmem:[#allocation5 + $0xc8] sm:$0xff]
    %v95 = vld [vmem:[#allocation5 + $0xd0] sm:$0xff]
    %v96 = vld [vmem:[#allocation5 + $0xd8] sm:$0xff]
    %v97 = vld [vmem:[#allocation5 + $0xe0] sm:$0xff]
    %v98 = vld [vmem:[#allocation5 + $0xe8] sm:$0xff]
    %v99 = vld [vmem:[#allocation5 + $0xf0] sm:$0xff]
    %v100 = vld [vmem:[#allocation5 + $0xf8] sm:$0xff]
    %v101 = vld [vmem:[#allocation5 + $0x100] sm:$0xff]
    %v102 = vld [vmem:[#allocation5 + $0x108] sm:$0xff]
    %v103 = vld [vmem:[#allocation5 + $0x110] sm:$0xff]
    %v104 = vld [vmem:[#allocation5 + $0x118] sm:$0xff]
    %v105 = vld [vmem:[#allocation5 + $0x120] sm:$0xff]
    %v106 = vld [vmem:[#allocation5 + $0x128] sm:$0xff]
    %v107 = vld [vmem:[#allocation5 + $0x130] sm:$0xff]
    %v108 = vld [vmem:[#allocation5 + $0x138] sm:$0xff]
    %v109 = vld [vmem:[#allocation5 + $0x140] sm:$0xff]
    %v110 = vld [vmem:[#allocation5 + $0x148] sm:$0xff]
    %v111 = vld [vmem:[#allocation5 + $0x150] sm:$0xff]
    %v112 = vld [vmem:[#allocation5 + $0x158] sm:$0xff]
    %v113 = vld [vmem:[#allocation5 + $0x160] sm:$0xff]
    %v114 = vld [vmem:[#allocation5 + $0x168] sm:$0xff]
    %v115 = vld [vmem:[#allocation5 + $0x170] sm:$0xff]
    %v116 = vld [vmem:[#allocation5 + $0x178] sm:$0xff]
    %v117 = vld [vmem:[#allocation5 + $0x180] sm:$0xff]
    %v118 = vld [vmem:[#allocation5 + $0x188] sm:$0xff]
    %v119 = vld [vmem:[#allocation5 + $0x190] sm:$0xff]
    %v120 = vld [vmem:[#allocation5 + $0x198] sm:$0xff]
    %v121 = vld [vmem:[#allocation5 + $0x1a0] sm:$0xff]
    %v122 = vld [vmem:[#allocation5 + $0x1a8] sm:$0xff]
    %v123 = vld [vmem:[#allocation5 + $0x1b0] sm:$0xff]
    %v124 = vld [vmem:[#allocation5 + $0x1b8] sm:$0xff]
    %v125 = vld [vmem:[#allocation5 + $0x1c0] sm:$0xff]
    %v126 = vld [vmem:[#allocation5 + $0x1c8] sm:$0xff]
    %v127 = vld [vmem:[#allocation5 + $0x1d0] sm:$0xff]
    %v128 = vld [vmem:[#allocation5 + $0x1d8] sm:$0xff]
    %v129 = vld [vmem:[#allocation5 + $0x1e0] sm:$0xff]
    %v130 = vld [vmem:[#allocation5 + $0x1e8] sm:$0xff]
    %v131 = vld [vmem:[#allocation5 + $0x1f0] sm:$0xff]
    %v132 = vld [vmem:[#allocation5 + $0x1f8] sm:$0xff]
    %v133 = vld [vmem:[#allocation5 + $0x200] sm:$0xff]
    %v134 = vld [vmem:[#allocation5 + $0x208] sm:$0xff]
    %v135 = vld [vmem:[#allocation5 + $0x210] sm:$0xff]
    %v136 = vld [vmem:[#allocation5 + $0x218] sm:$0xff]
    %v137 = vld [vmem:[#allocation5 + $0x220] sm:$0xff]
    %v138 = vld [vmem:[#allocation5 + $0x228] sm:$0xff]
    %v139 = vld [vmem:[#allocation5 + $0x230] sm:$0xff]
    %v140 = vld [vmem:[#allocation5 + $0x238] sm:$0xff]
    %v141 = vld [vmem:[#allocation5 + $0x240] sm:$0xff]
    %v142 = vld [vmem:[#allocation5 + $0x248] sm:$0xff]
    %v143 = vld [vmem:[#allocation5 + $0x250] sm:$0xff]
    %v144 = vld [vmem:[#allocation5 + $0x258] sm:$0xff]
    %v145 = vld [vmem:[#allocation5 + $0x260] sm:$0xff]
    %v146 = vld [vmem:[#allocation5 + $0x268] sm:$0xff]
    %v147 = vld [vmem:[#allocation5 + $0x270] sm:$0xff]
    %v148 = vld [vmem:[#allocation5 + $0x278] sm:$0xff]
    %v149 = vld [vmem:[#allocation5 + $0x280] sm:$0xff]
    %v150 = vld [vmem:[#allocation5 + $0x288] sm:$0xff]
    %v151 = vld [vmem:[#allocation5 + $0x290] sm:$0xff]
    %v152 = vld [vmem:[#allocation5 + $0x298] sm:$0xff]
    %v153 = vld [vmem:[#allocation5 + $0x2a0] sm:$0xff]
    %v154 = vld [vmem:[#allocation5 + $0x2a8] sm:$0xff]
    %v155 = vld [vmem:[#allocation5 + $0x2b0] sm:$0xff]
    %v156 = vld [vmem:[#allocation5 + $0x2b8] sm:$0xff]
    %v157 = vld [vmem:[#allocation5 + $0x2c0] sm:$0xff]
    %v158 = vld [vmem:[#allocation5 + $0x2c8] sm:$0xff]
    %v159 = vld [vmem:[#allocation5 + $0x2d0] sm:$0xff]
    %v160 = vld [vmem:[#allocation5 + $0x2d8] sm:$0xff]
    %v161 = vld [vmem:[#allocation5 + $0x2e0] sm:$0xff]
    %v162 = vld [vmem:[#allocation5 + $0x2e8] sm:$0xff]
    %v163 = vld [vmem:[#allocation5 + $0x2f0] sm:$0xff]
    %v164 = vld [vmem:[#allocation5 + $0x2f8] sm:$0xff]
    %v165 = vld [vmem:[#allocation5 + $0x300] sm:$0xff]
    %v166 = vld [vmem:[#allocation5 + $0x308] sm:$0xff]
    %v167 = vld [vmem:[#allocation5 + $0x310] sm:$0xff]
    %v168 = vld [vmem:[#allocation5 + $0x318] sm:$0xff]
    %v169 = vld [vmem:[#allocation5 + $0x320] sm:$0xff]
    %v170 = vld [vmem:[#allocation5 + $0x328] sm:$0xff]
    %v171 = vld [vmem:[#allocation5 + $0x330] sm:$0xff]
    %v172 = vld [vmem:[#allocation5 + $0x338] sm:$0xff]
    %v173 = vld [vmem:[#allocation5 + $0x340] sm:$0xff]
    %v174 = vld [vmem:[#allocation5 + $0x348] sm:$0xff]
    %v175 = vld [vmem:[#allocation5 + $0x350] sm:$0xff]
    %v176 = vld [vmem:[#allocation5 + $0x358] sm:$0xff]
    %v177 = vld [vmem:[#allocation5 + $0x360] sm:$0xff]
    %v178 = vld [vmem:[#allocation5 + $0x368] sm:$0xff]
    %v179 = vld [vmem:[#allocation5 + $0x370] sm:$0xff]
    %v180 = vld [vmem:[#allocation5 + $0x378] sm:$0xff]
    %v181 = vld [vmem:[#allocation5 + $0x380] sm:$0xff]
    %v182 = vld [vmem:[#allocation5 + $0x388] sm:$0xff]
    %v183 = vld [vmem:[#allocation5 + $0x390] sm:$0xff]
    %v184 = vld [vmem:[#allocation5 + $0x398] sm:$0xff]
    %v185 = vld [vmem:[#allocation5 + $0x3a0] sm:$0xff]
    %v186 = vld [vmem:[#allocation5 + $0x3a8] sm:$0xff]
    %v187 = vld [vmem:[#allocation5 + $0x3b0] sm:$0xff]
    %v188 = vld [vmem:[#allocation5 + $0x3b8] sm:$0xff]
    %v189 = vld [vmem:[#allocation5 + $0x3c0] sm:$0xff]
    %v190 = vld [vmem:[#allocation5 + $0x3c8] sm:$0xff]
    %v191 = vld [vmem:[#allocation5 + $0x3d0] sm:$0xff]
    %v192 = vld [vmem:[#allocation5 + $0x3d8] sm:$0xff]
    %v193 = vld [vmem:[#allocation5 + $0x3e0] sm:$0xff]
    %v194 = vld [vmem:[#allocation5 + $0x3e8] sm:$0xff]
    %v195 = vld [vmem:[#allocation5 + $0x3f0] sm:$0xff]
    %v196 = vld [vmem:[#allocation5 + $0x3f8] sm:$0xff]
    %v197 = vld [vmem:[#allocation5 + $0x400] sm:$0xff]
    %v198 = vld [vmem:[#allocation5 + $0x408] sm:$0xff]
    %v199 = vld [vmem:[#allocation5 + $0x410] sm:$0xff]
    %v200 = vld [vmem:[#allocation5 + $0x418] sm:$0xff]
    %v201 = vld [vmem:[#allocation5 + $0x420] sm:$0xff]
    %v202 = vld [vmem:[#allocation5 + $0x428] sm:$0xff]
    %v203 = vld [vmem:[#allocation5 + $0x430] sm:$0xff]
    %v204 = vld [vmem:[#allocation5 + $0x438] sm:$0xff]
    %v205 = vld [vmem:[#allocation5 + $0x440] sm:$0xff]
    %v206 = vld [vmem:[#allocation5 + $0x448] sm:$0xff]
    %v207 = vld [vmem:[#allocation5 + $0x450] sm:$0xff]
    %v208 = vld [vmem:[#allocation5 + $0x458] sm:$0xff]
    %v209 = vld [vmem:[#allocation5 + $0x460] sm:$0xff]
    %v210 = vld [vmem:[#allocation5 + $0x468] sm:$0xff]
    %v211 = vld [vmem:[#allocation5 + $0x470] sm:$0xff]
    %v212 = vld [vmem:[#allocation5 + $0x478] sm:$0xff]
    %v213 = vld [vmem:[#allocation5 + $0x480] sm:$0xff]
    %v214 = vld [vmem:[#allocation5 + $0x488] sm:$0xff]
    %v215 = vld [vmem:[#allocation5 + $0x490] sm:$0xff]
    %v216 = vld [vmem:[#allocation5 + $0x498] sm:$0xff]
    %v217 = vld [vmem:[#allocation5 + $0x4a0] sm:$0xff]
    %v218 = vld [vmem:[#allocation5 + $0x4a8] sm:$0xff]
    %v219 = vld [vmem:[#allocation5 + $0x4b0] sm:$0xff]
    %v220 = vld [vmem:[#allocation5 + $0x4b8] sm:$0xff]
    %v221 = vld [vmem:[#allocation5 + $0x4c0] sm:$0xff]
    %v222 = vld [vmem:[#allocation5 + $0x4c8] sm:$0xff]
    %v223 = vld [vmem:[#allocation5 + $0x4d0] sm:$0xff]
    %v224 = vld [vmem:[#allocation5 + $0x4d8] sm:$0xff]
    %v225 = vld [vmem:[#allocation5 + $0x4e0] sm:$0xff]
    %v226 = vld [vmem:[#allocation5 + $0x4e8] sm:$0xff]
    %v227 = vld [vmem:[#allocation5 + $0x4f0] sm:$0xff]
    %v228 = vld [vmem:[#allocation5 + $0x4f8] sm:$0xff]
    %v229 = vld [vmem:[#allocation5 + $0x500] sm:$0xff]
    %v230 = vld [vmem:[#allocation5 + $0x508] sm:$0xff]
    %v231 = vld [vmem:[#allocation5 + $0x510] sm:$0xff]
    %v232 = vld [vmem:[#allocation5 + $0x518] sm:$0xff]
    %v233 = vld [vmem:[#allocation5 + $0x520] sm:$0xff]
    %v234 = vld [vmem:[#allocation5 + $0x528] sm:$0xff]
    %v235 = vld [vmem:[#allocation5 + $0x530] sm:$0xff]
    %v236 = vld [vmem:[#allocation5 + $0x538] sm:$0xff]
    %v237 = vld [vmem:[#allocation5 + $0x540] sm:$0xff]
    %v238 = vld [vmem:[#allocation5 + $0x548] sm:$0xff]
    %v239 = vld [vmem:[#allocation5 + $0x550] sm:$0xff]
    %v240 = vld [vmem:[#allocation5 + $0x558] sm:$0xff]
    %v241 = vld [vmem:[#allocation5 + $0x560] sm:$0xff]
    %v242 = vld [vmem:[#allocation5 + $0x568] sm:$0xff]
    %v243 = vld [vmem:[#allocation5 + $0x570] sm:$0xff]
    %v244 = vld [vmem:[#allocation5 + $0x578] sm:$0xff]
    %v245 = vld [vmem:[#allocation5 + $0x580] sm:$0xff]
    %v246 = vld [vmem:[#allocation5 + $0x588] sm:$0xff]
    %v247 = vld [vmem:[#allocation5 + $0x590] sm:$0xff]
    %v248 = vld [vmem:[#allocation5 + $0x598] sm:$0xff]
    %v249 = vld [vmem:[#allocation5 + $0x5a0] sm:$0xff]
    %v250 = vld [vmem:[#allocation5 + $0x5a8] sm:$0xff]
    %v251 = vld [vmem:[#allocation5 + $0x5b0] sm:$0xff]
    %v252 = vld [vmem:[#allocation5 + $0x5b8] sm:$0xff]
    %v253 = vld [vmem:[#allocation5 + $0x5c0] sm:$0xff]
    %v254 = vld [vmem:[#allocation5 + $0x5c8] sm:$0xff]
    %v255 = vld [vmem:[#allocation5 + $0x5d0] sm:$0xff]
    %v256 = vld [vmem:[#allocation5 + $0x5d8] sm:$0xff]
    %v257 = vld [vmem:[#allocation5 + $0x5e0] sm:$0xff]
    %v258 = vld [vmem:[#allocation5 + $0x5e8] sm:$0xff]
    %v259 = vld [vmem:[#allocation5 + $0x5f0] sm:$0xff]
    %v260 = vld [vmem:[#allocation5 + $0x5f8] sm:$0xff]
    %v261 = vld [vmem:[#allocation5 + $0x600] sm:$0xff]
    %v262 = vld [vmem:[#allocation5 + $0x608] sm:$0xff]
    %v263 = vld [vmem:[#allocation5 + $0x610] sm:$0xff]
    %v264 = vld [vmem:[#allocation5 + $0x618] sm:$0xff]
    %v265 = vld [vmem:[#allocation5 + $0x620] sm:$0xff]
    %v266 = vld [vmem:[#allocation5 + $0x628] sm:$0xff]
    %v267 = vld [vmem:[#allocation5 + $0x630] sm:$0xff]
    %v268 = vld [vmem:[#allocation5 + $0x638] sm:$0xff]
    %v269 = vld [vmem:[#allocation5 + $0x640] sm:$0xff]
    %v270 = vld [vmem:[#allocation5 + $0x648] sm:$0xff]
    %v271 = vld [vmem:[#allocation5 + $0x650] sm:$0xff]
    %v272 = vld [vmem:[#allocation5 + $0x658] sm:$0xff]
    %v273 = vld [vmem:[#allocation5 + $0x660] sm:$0xff]
    %v274 = vld [vmem:[#allocation5 + $0x668] sm:$0xff]
    %v275 = vld [vmem:[#allocation5 + $0x670] sm:$0xff]
    %v276 = vld [vmem:[#allocation5 + $0x678] sm:$0xff]
    %v277 = vld [vmem:[#allocation5 + $0x680] sm:$0xff]
    %v278 = vld [vmem:[#allocation5 + $0x688] sm:$0xff]
    %v279 = vld [vmem:[#allocation5 + $0x690] sm:$0xff]
    %v280 = vld [vmem:[#allocation5 + $0x698] sm:$0xff]
    %v281 = vld [vmem:[#allocation5 + $0x6a0] sm:$0xff]
    %v282 = vld [vmem:[#allocation5 + $0x6a8] sm:$0xff]
    %v283 = vld [vmem:[#allocation5 + $0x6b0] sm:$0xff]
    %v284 = vld [vmem:[#allocation5 + $0x6b8] sm:$0xff]
    %v285 = vld [vmem:[#allocation5 + $0x6c0] sm:$0xff]
    %v286 = vld [vmem:[#allocation5 + $0x6c8] sm:$0xff]
    %v287 = vld [vmem:[#allocation5 + $0x6d0] sm:$0xff]
    %v288 = vld [vmem:[#allocation5 + $0x6d8] sm:$0xff]
    %v289 = vld [vmem:[#allocation5 + $0x6e0] sm:$0xff]
    %v290 = vld [vmem:[#allocation5 + $0x6e8] sm:$0xff]
    %v291 = vld [vmem:[#allocation5 + $0x6f0] sm:$0xff]
    %v292 = vld [vmem:[#allocation5 + $0x6f8] sm:$0xff]
    %v293 = vld [vmem:[#allocation5 + $0x700] sm:$0xff]
    %v294 = vld [vmem:[#allocation5 + $0x708] sm:$0xff]
    %v295 = vld [vmem:[#allocation5 + $0x710] sm:$0xff]
    %v296 = vld [vmem:[#allocation5 + $0x718] sm:$0xff]
    %v297 = vld [vmem:[#allocation5 + $0x720] sm:$0xff]
    %v298 = vld [vmem:[#allocation5 + $0x728] sm:$0xff]
    %v299 = vld [vmem:[#allocation5 + $0x730] sm:$0xff]
    %v300 = vld [vmem:[#allocation5 + $0x738] sm:$0xff]
    %v301 = vld [vmem:[#allocation5 + $0x740] sm:$0xff]
    %v302 = vld [vmem:[#allocation5 + $0x748] sm:$0xff]
    %v303 = vld [vmem:[#allocation5 + $0x750] sm:$0xff]
    %v304 = vld [vmem:[#allocation5 + $0x758] sm:$0xff]
    %v305 = vld [vmem:[#allocation5 + $0x760] sm:$0xff]
    %v306 = vld [vmem:[#allocation5 + $0x768] sm:$0xff]
    %v307 = vld [vmem:[#allocation5 + $0x770] sm:$0xff]
    %v308 = vld [vmem:[#allocation5 + $0x778] sm:$0xff]
    %v309 = vld [vmem:[#allocation5 + $0x780] sm:$0xff]
    %v310 = vld [vmem:[#allocation5 + $0x788] sm:$0xff]
    %v311 = vld [vmem:[#allocation5 + $0x790] sm:$0xff]
    %v312 = vld [vmem:[#allocation5 + $0x798] sm:$0xff]
    %v313 = vld [vmem:[#allocation5 + $0x7a0] sm:$0xff]
    %v314 = vld [vmem:[#allocation5 + $0x7a8] sm:$0xff]
    %v315 = vld [vmem:[#allocation5 + $0x7b0] sm:$0xff]
    %v316 = vld [vmem:[#allocation5 + $0x7b8] sm:$0xff]
    %v317 = vld [vmem:[#allocation5 + $0x7c0] sm:$0xff]
    %v318 = vld [vmem:[#allocation5 + $0x7c8] sm:$0xff]
    %v319 = vld [vmem:[#allocation5 + $0x7d0] sm:$0xff]
    %v320 = vld [vmem:[#allocation5 + $0x7d8] sm:$0xff]
    %v321 = vld [vmem:[#allocation5 + $0x7e0] sm:$0xff]
    %v322 = vld [vmem:[#allocation5 + $0x7e8] sm:$0xff]
    %v323 = vld [vmem:[#allocation5 + $0x7f0] sm:$0xff]
    %v324 = vld [vmem:[#allocation5 + $0x7f8] sm:$0xff]
    %v325 = vld [vmem:[#allocation5 + $0x800] sm:$0xff]
    %v326 = vld [vmem:[#allocation5 + $0x808] sm:$0xff]
    %v327 = vld [vmem:[#allocation5 + $0x810] sm:$0xff]
    %v328 = vld [vmem:[#allocation5 + $0x818] sm:$0xff]
    %v329 = vld [vmem:[#allocation5 + $0x820] sm:$0xff]
    %v330 = vld [vmem:[#allocation5 + $0x828] sm:$0xff]
    %v331 = vld [vmem:[#allocation5 + $0x830] sm:$0xff]
    %v332 = vld [vmem:[#allocation5 + $0x838] sm:$0xff]
    %v333 = vld [vmem:[#allocation5 + $0x840] sm:$0xff]
    %v334 = vld [vmem:[#allocation5 + $0x848] sm:$0xff]
    %v335 = vld [vmem:[#allocation5 + $0x850] sm:$0xff]
    %v336 = vld [vmem:[#allocation5 + $0x858] sm:$0xff]
    %v337 = vld [vmem:[#allocation5 + $0x860] sm:$0xff]
    %v338 = vld [vmem:[#allocation5 + $0x868] sm:$0xff]
    %v339 = vld [vmem:[#allocation5 + $0x870] sm:$0xff]
    %v340 = vld [vmem:[#allocation5 + $0x878] sm:$0xff]
    %v341 = vld [vmem:[#allocation5 + $0x880] sm:$0xff]
    %v342 = vld [vmem:[#allocation5 + $0x888] sm:$0xff]
    %v343 = vld [vmem:[#allocation5 + $0x890] sm:$0xff]
    %v344 = vld [vmem:[#allocation5 + $0x898] sm:$0xff]
    %v345 = vld [vmem:[#allocation5 + $0x8a0] sm:$0xff]
    %v346 = vld [vmem:[#allocation5 + $0x8a8] sm:$0xff]
    %v347 = vld [vmem:[#allocation5 + $0x8b0] sm:$0xff]
    %v348 = vld [vmem:[#allocation5 + $0x8b8] sm:$0xff]
    %v349 = vld [vmem:[#allocation5 + $0x8c0] sm:$0xff]
    %v350 = vld [vmem:[#allocation5 + $0x8c8] sm:$0xff]
    %v351 = vld [vmem:[#allocation5 + $0x8d0] sm:$0xff]
    %v352 = vld [vmem:[#allocation5 + $0x8d8] sm:$0xff]
    %v353 = vld [vmem:[#allocation5 + $0x8e0] sm:$0xff]
    %v354 = vld [vmem:[#allocation5 + $0x8e8] sm:$0xff]
    %v355 = vld [vmem:[#allocation5 + $0x8f0] sm:$0xff]
    %v356 = vld [vmem:[#allocation5 + $0x8f8] sm:$0xff]
    %v357 = vld [vmem:[#allocation5 + $0x900] sm:$0xff]
    %v358 = vld [vmem:[#allocation5 + $0x908] sm:$0xff]
    %v359 = vld [vmem:[#allocation5 + $0x910] sm:$0xff]
    %v360 = vld [vmem:[#allocation5 + $0x918] sm:$0xff]
    %v361 = vld [vmem:[#allocation5 + $0x920] sm:$0xff]
    %v362 = vld [vmem:[#allocation5 + $0x928] sm:$0xff]
    %v363 = vld [vmem:[#allocation5 + $0x930] sm:$0xff]
    %v364 = vld [vmem:[#allocation5 + $0x938] sm:$0xff]
    %v365 = vld [vmem:[#allocation5 + $0x940] sm:$0xff]
    %v366 = vld [vmem:[#allocation5 + $0x948] sm:$0xff]
    %v367 = vld [vmem:[#allocation5 + $0x950] sm:$0xff]
    %v368 = vld [vmem:[#allocation5 + $0x958] sm:$0xff]
    %v369 = vld [vmem:[#allocation5 + $0x960] sm:$0xff]
    %v370 = vld [vmem:[#allocation5 + $0x968] sm:$0xff]
    %v371 = vld [vmem:[#allocation5 + $0x970] sm:$0xff]
    %v372 = vld [vmem:[#allocation5 + $0x978] sm:$0xff]
    %v373 = vld [vmem:[#allocation5 + $0x980] sm:$0xff]
    %v374 = vld [vmem:[#allocation5 + $0x988] sm:$0xff]
    %v375 = vld [vmem:[#allocation5 + $0x990] sm:$0xff]
    %v376 = vld [vmem:[#allocation5 + $0x998] sm:$0xff]
    %v377 = vld [vmem:[#allocation5 + $0x9a0] sm:$0xff]
    %v378 = vld [vmem:[#allocation5 + $0x9a8] sm:$0xff]
    %v379 = vld [vmem:[#allocation5 + $0x9b0] sm:$0xff]
    %v380 = vld [vmem:[#allocation5 + $0x9b8] sm:$0xff]
    %v381 = vld [vmem:[#allocation5 + $0x9c0] sm:$0xff]
    %v382 = vld [vmem:[#allocation5 + $0x9c8] sm:$0xff]
    %v383 = vld [vmem:[#allocation5 + $0x9d0] sm:$0xff]
    %v384 = vld [vmem:[#allocation5 + $0x9d8] sm:$0xff]
    %v385 = vld [vmem:[#allocation5 + $0x9e0] sm:$0xff]
    %v386 = vld [vmem:[#allocation5 + $0x9e8] sm:$0xff]
    %v387 = vld [vmem:[#allocation5 + $0x9f0] sm:$0xff]
    %v388 = vld [vmem:[#allocation5 + $0x9f8] sm:$0xff]
    %v389 = vld [vmem:[#allocation5 + $0xa00] sm:$0xff]
    %v390 = vld [vmem:[#allocation5 + $0xa08] sm:$0xff]
    %v391 = vld [vmem:[#allocation5 + $0xa10] sm:$0xff]
    %v392 = vld [vmem:[#allocation5 + $0xa18] sm:$0xff]
    %v393 = vld [vmem:[#allocation5 + $0xa20] sm:$0xff]
    %v394 = vld [vmem:[#allocation5 + $0xa28] sm:$0xff]
    %v395 = vld [vmem:[#allocation5 + $0xa30] sm:$0xff]
    %v396 = vld [vmem:[#allocation5 + $0xa38] sm:$0xff]
    %v397 = vld [vmem:[#allocation5 + $0xa40] sm:$0xff]
    %v398 = vld [vmem:[#allocation5 + $0xa48] sm:$0xff]
    %v399 = vld [vmem:[#allocation5 + $0xa50] sm:$0xff]
    %v400 = vld [vmem:[#allocation5 + $0xa58] sm:$0xff]
    %v401 = vld [vmem:[#allocation5 + $0xa60] sm:$0xff]
    %v402 = vld [vmem:[#allocation5 + $0xa68] sm:$0xff]
    %v403 = vld [vmem:[#allocation5 + $0xa70] sm:$0xff]
    %v404 = vld [vmem:[#allocation5 + $0xa78] sm:$0xff]
    %v405 = vld [vmem:[#allocation5 + $0xa80] sm:$0xff]
    %v406 = vld [vmem:[#allocation5 + $0xa88] sm:$0xff]
    %v407 = vld [vmem:[#allocation5 + $0xa90] sm:$0xff]
    %v408 = vld [vmem:[#allocation5 + $0xa98] sm:$0xff]
    %v409 = vld [vmem:[#allocation5 + $0xaa0] sm:$0xff]
    %v410 = vld [vmem:[#allocation5 + $0xaa8] sm:$0xff]
    %v411 = vld [vmem:[#allocation5 + $0xab0] sm:$0xff]
    %v412 = vld [vmem:[#allocation5 + $0xab8] sm:$0xff]
    %v413 = vld [vmem:[#allocation5 + $0xac0] sm:$0xff]
    %v414 = vld [vmem:[#allocation5 + $0xac8] sm:$0xff]
    %v415 = vld [vmem:[#allocation5 + $0xad0] sm:$0xff]
    %v416 = vld [vmem:[#allocation5 + $0xad8] sm:$0xff]
    %v417 = vld [vmem:[#allocation5 + $0xae0] sm:$0xff]
    %v418 = vld [vmem:[#allocation5 + $0xae8] sm:$0xff]
    %v419 = vld [vmem:[#allocation5 + $0xaf0] sm:$0xff]
    %v420 = vld [vmem:[#allocation5 + $0xaf8] sm:$0xff]
    %v421 = vld [vmem:[#allocation5 + $0xb00] sm:$0xff]
    %v422 = vld [vmem:[#allocation5 + $0xb08] sm:$0xff]
    %v423 = vld [vmem:[#allocation5 + $0xb10] sm:$0xff]
    %v424 = vld [vmem:[#allocation5 + $0xb18] sm:$0xff]
    %v425 = vld [vmem:[#allocation5 + $0xb20] sm:$0xff]
    %v426 = vld [vmem:[#allocation5 + $0xb28] sm:$0xff]
    %v427 = vld [vmem:[#allocation5 + $0xb30] sm:$0xff]
    %v428 = vld [vmem:[#allocation5 + $0xb38] sm:$0xff]
    %v429 = vld [vmem:[#allocation5 + $0xb40] sm:$0xff]
    %v430 = vld [vmem:[#allocation5 + $0xb48] sm:$0xff]
    %v431 = vld [vmem:[#allocation5 + $0xb50] sm:$0xff]
    %v432 = vld [vmem:[#allocation5 + $0xb58] sm:$0xff]
    %v433 = vld [vmem:[#allocation5 + $0xb60] sm:$0xff]
    %v434 = vld [vmem:[#allocation5 + $0xb68] sm:$0xff]
    %v435 = vld [vmem:[#allocation5 + $0xb70] sm:$0xff]
    %v436 = vld [vmem:[#allocation5 + $0xb78] sm:$0xff]
    %v437 = vld [vmem:[#allocation5 + $0xb80] sm:$0xff]
    %v438 = vld [vmem:[#allocation5 + $0xb88] sm:$0xff]
    %v439 = vld [vmem:[#allocation5 + $0xb90] sm:$0xff]
    %v440 = vld [vmem:[#allocation5 + $0xb98] sm:$0xff]
    %v441 = vld [vmem:[#allocation5 + $0xba0] sm:$0xff]
    %v442 = vld [vmem:[#allocation5 + $0xba8] sm:$0xff]
    %v443 = vld [vmem:[#allocation5 + $0xbb0] sm:$0xff]
    %v444 = vld [vmem:[#allocation5 + $0xbb8] sm:$0xff]
    %v445 = vld [vmem:[#allocation5 + $0xbc0] sm:$0xff]
    %v446 = vld [vmem:[#allocation5 + $0xbc8] sm:$0xff]
    %v447 = vld [vmem:[#allocation5 + $0xbd0] sm:$0xff]
    %v448 = vld [vmem:[#allocation5 + $0xbd8] sm:$0xff]
    %v449 = vld [vmem:[#allocation5 + $0xbe0] sm:$0xff]
    %v450 = vld [vmem:[#allocation5 + $0xbe8] sm:$0xff]
    %v451 = vld [vmem:[#allocation5 + $0xbf0] sm:$0xff]
    %v452 = vld [vmem:[#allocation5 + $0xbf8] sm:$0xff]
    %v453 = vld [vmem:[%s3] ss:$4 sm:$0x3]
    %v455 = vlaneseq
    %v456 = vshrl.u32 %v455, 7
    %v457 = vsub.s32 0, %v456
    %v458 = vrot.slane %v453, %v457
    %v459 = vlaneseq
    %v460 = vshrl.u32 %v459, 7
    %v461 = vsub.s32 1, %v460
    %v462 = vrot.slane %v453, %v461
    %v477 = vunpack.c.l.b16 %v57
    %v478 = vunpack.c.h.b16 %v57
    %v479 = vunpack.c.l.b16 %v58
    %v480 = vunpack.c.h.b16 %v58
    %v481 = vunpack.c.l.b16 %v59
    %v482 = vunpack.c.h.b16 %v59
    %v483 = vunpack.c.l.b16 %v60
    %v484 = vunpack.c.h.b16 %v60
    %v485 = vunpack.c.l.b16 %v61
    %v486 = vunpack.c.h.b16 %v61
    %v487 = vunpack.c.l.b16 %v62
    %v488 = vunpack.c.h.b16 %v62
    %v489 = vunpack.c.l.b16 %v63
    %v490 = vunpack.c.h.b16 %v63
    %v491 = vunpack.c.l.b16 %v64
    %v492 = vunpack.c.h.b16 %v64
    %v493 = vunpack.c.l.b16 %v65
    %v494 = vunpack.c.h.b16 %v65
    %v495 = vunpack.c.l.b16 %v66
    %v496 = vunpack.c.h.b16 %v66
    %v497 = vunpack.c.l.b16 %v67
    %v498 = vunpack.c.h.b16 %v67
    %v499 = vunpack.c.l.b16 %v68
    %v500 = vunpack.c.h.b16 %v68
    %v501 = vpack.c.b16 %v477, %v477
    %v502 = vpack.c.b16 %v478, %v478
    %v503 = vpack.c.b16 %v479, %v479
    %v504 = vpack.c.b16 %v480, %v480
    %v505 = vpack.c.b16 %v481, %v481
    %v506 = vpack.c.b16 %v482, %v482
    %v507 = vpack.c.b16 %v483, %v483
    %v508 = vpack.c.b16 %v484, %v484
    %v509 = vpack.c.b16 %v485, %v485
    %v510 = vpack.c.b16 %v486, %v486
    %v511 = vpack.c.b16 %v487, %v487
    %v512 = vpack.c.b16 %v488, %v488
    %v513 = vpack.c.b16 %v489, %v489
    %v514 = vpack.c.b16 %v490, %v490
    %v515 = vpack.c.b16 %v491, %v491
    %v516 = vpack.c.b16 %v492, %v492
    %v517 = vpack.c.b16 %v493, %v493
    %v518 = vpack.c.b16 %v494, %v494
    %v519 = vpack.c.b16 %v495, %v495
    %v520 = vpack.c.b16 %v496, %v496
    %v521 = vpack.c.b16 %v497, %v497
    %v522 = vpack.c.b16 %v498, %v498
    %v523 = vpack.c.b16 %v499, %v499
    %v524 = vpack.c.b16 %v500, %v500
    %v933 = vunpack.c.l.b16 %v69
    %v934 = vunpack.c.h.b16 %v69
    %v935 = vunpack.c.l.b16 %v70
    %v936 = vunpack.c.h.b16 %v70
    %v937 = vunpack.c.l.b16 %v71
    %v938 = vunpack.c.h.b16 %v71
    %v939 = vunpack.c.l.b16 %v72
    %v940 = vunpack.c.h.b16 %v72
    %v941 = vunpack.c.l.b16 %v73
    %v942 = vunpack.c.h.b16 %v73
    %v943 = vunpack.c.l.b16 %v74
    %v944 = vunpack.c.h.b16 %v74
    %v945 = vunpack.c.l.b16 %v75
    %v946 = vunpack.c.h.b16 %v75
    %v947 = vunpack.c.l.b16 %v76
    %v948 = vunpack.c.h.b16 %v76
    %v949 = vunpack.c.l.b16 %v77
    %v950 = vunpack.c.h.b16 %v77
    %v951 = vunpack.c.l.b16 %v78
    %v952 = vunpack.c.h.b16 %v78
    %v953 = vunpack.c.l.b16 %v79
    %v954 = vunpack.c.h.b16 %v79
    %v955 = vunpack.c.l.b16 %v80
    %v956 = vunpack.c.h.b16 %v80
    %v957 = vunpack.c.l.b16 %v81
    %v958 = vunpack.c.h.b16 %v81
    %v959 = vunpack.c.l.b16 %v82
    %v960 = vunpack.c.h.b16 %v82
    %v961 = vunpack.c.l.b16 %v83
    %v962 = vunpack.c.h.b16 %v83
    %v963 = vunpack.c.l.b16 %v84
    %v964 = vunpack.c.h.b16 %v84
    %v965 = vunpack.c.l.b16 %v85
    %v966 = vunpack.c.h.b16 %v85
    %v967 = vunpack.c.l.b16 %v86
    %v968 = vunpack.c.h.b16 %v86
    %v969 = vunpack.c.l.b16 %v87
    %v970 = vunpack.c.h.b16 %v87
    %v971 = vunpack.c.l.b16 %v88
    %v972 = vunpack.c.h.b16 %v88
    %v973 = vunpack.c.l.b16 %v89
    %v974 = vunpack.c.h.b16 %v89
    %v975 = vunpack.c.l.b16 %v90
    %v976 = vunpack.c.h.b16 %v90
    %v977 = vunpack.c.l.b16 %v91
    %v978 = vunpack.c.h.b16 %v91
    %v979 = vunpack.c.l.b16 %v92
    %v980 = vunpack.c.h.b16 %v92
    %v981 = vunpack.c.l.b16 %v93
    %v982 = vunpack.c.h.b16 %v93
    %v983 = vunpack.c.l.b16 %v94
    %v984 = vunpack.c.h.b16 %v94
    %v985 = vunpack.c.l.b16 %v95
    %v986 = vunpack.c.h.b16 %v95
    %v987 = vunpack.c.l.b16 %v96
    %v988 = vunpack.c.h.b16 %v96
    %v989 = vunpack.c.l.b16 %v97
    %v990 = vunpack.c.h.b16 %v97
    %v991 = vunpack.c.l.b16 %v98
    %v992 = vunpack.c.h.b16 %v98
    %v993 = vunpack.c.l.b16 %v99
    %v994 = vunpack.c.h.b16 %v99
    %v995 = vunpack.c.l.b16 %v100
    %v996 = vunpack.c.h.b16 %v100
    %v997 = vunpack.c.l.b16 %v101
    %v998 = vunpack.c.h.b16 %v101
    %v999 = vunpack.c.l.b16 %v102
    %v1000 = vunpack.c.h.b16 %v102
    %v1001 = vunpack.c.l.b16 %v103
    %v1002 = vunpack.c.h.b16 %v103
    %v1003 = vunpack.c.l.b16 %v104
    %v1004 = vunpack.c.h.b16 %v104
    %v1005 = vunpack.c.l.b16 %v105
    %v1006 = vunpack.c.h.b16 %v105
    %v1007 = vunpack.c.l.b16 %v106
    %v1008 = vunpack.c.h.b16 %v106
    %v1009 = vunpack.c.l.b16 %v107
    %v1010 = vunpack.c.h.b16 %v107
    %v1011 = vunpack.c.l.b16 %v108
    %v1012 = vunpack.c.h.b16 %v108
    %v1013 = vunpack.c.l.b16 %v109
    %v1014 = vunpack.c.h.b16 %v109
    %v1015 = vunpack.c.l.b16 %v110
    %v1016 = vunpack.c.h.b16 %v110
    %v1017 = vunpack.c.l.b16 %v111
    %v1018 = vunpack.c.h.b16 %v111
    %v1019 = vunpack.c.l.b16 %v112
    %v1020 = vunpack.c.h.b16 %v112
    %v1021 = vunpack.c.l.b16 %v113
    %v1022 = vunpack.c.h.b16 %v113
    %v1023 = vunpack.c.l.b16 %v114
    %v1024 = vunpack.c.h.b16 %v114
    %v1025 = vunpack.c.l.b16 %v115
    %v1026 = vunpack.c.h.b16 %v115
    %v1027 = vunpack.c.l.b16 %v116
    %v1028 = vunpack.c.h.b16 %v116
    %v1029 = vunpack.c.l.b16 %v117
    %v1030 = vunpack.c.h.b16 %v117
    %v1031 = vunpack.c.l.b16 %v118
    %v1032 = vunpack.c.h.b16 %v118
    %v1033 = vunpack.c.l.b16 %v119
    %v1034 = vunpack.c.h.b16 %v119
    %v1035 = vunpack.c.l.b16 %v120
    %v1036 = vunpack.c.h.b16 %v120
    %v1037 = vunpack.c.l.b16 %v121
    %v1038 = vunpack.c.h.b16 %v121
    %v1039 = vunpack.c.l.b16 %v122
    %v1040 = vunpack.c.h.b16 %v122
    %v1041 = vunpack.c.l.b16 %v123
    %v1042 = vunpack.c.h.b16 %v123
    %v1043 = vunpack.c.l.b16 %v124
    %v1044 = vunpack.c.h.b16 %v124
    %v1045 = vunpack.c.l.b16 %v125
    %v1046 = vunpack.c.h.b16 %v125
    %v1047 = vunpack.c.l.b16 %v126
    %v1048 = vunpack.c.h.b16 %v126
    %v1049 = vunpack.c.l.b16 %v127
    %v1050 = vunpack.c.h.b16 %v127
    %v1051 = vunpack.c.l.b16 %v128
    %v1052 = vunpack.c.h.b16 %v128
    %v1053 = vunpack.c.l.b16 %v129
    %v1054 = vunpack.c.h.b16 %v129
    %v1055 = vunpack.c.l.b16 %v130
    %v1056 = vunpack.c.h.b16 %v130
    %v1057 = vunpack.c.l.b16 %v131
    %v1058 = vunpack.c.h.b16 %v131
    %v1059 = vunpack.c.l.b16 %v132
    %v1060 = vunpack.c.h.b16 %v132
    %v1061 = vunpack.c.l.b16 %v133
    %v1062 = vunpack.c.h.b16 %v133
    %v1063 = vunpack.c.l.b16 %v134
    %v1064 = vunpack.c.h.b16 %v134
    %v1065 = vunpack.c.l.b16 %v135
    %v1066 = vunpack.c.h.b16 %v135
    %v1067 = vunpack.c.l.b16 %v136
    %v1068 = vunpack.c.h.b16 %v136
    %v1069 = vunpack.c.l.b16 %v137
    %v1070 = vunpack.c.h.b16 %v137
    %v1071 = vunpack.c.l.b16 %v138
    %v1072 = vunpack.c.h.b16 %v138
    %v1073 = vunpack.c.l.b16 %v139
    %v1074 = vunpack.c.h.b16 %v139
    %v1075 = vunpack.c.l.b16 %v140
    %v1076 = vunpack.c.h.b16 %v140
    %v1077 = vunpack.c.l.b16 %v141
    %v1078 = vunpack.c.h.b16 %v141
    %v1079 = vunpack.c.l.b16 %v142
    %v1080 = vunpack.c.h.b16 %v142
    %v1081 = vunpack.c.l.b16 %v143
    %v1082 = vunpack.c.h.b16 %v143
    %v1083 = vunpack.c.l.b16 %v144
    %v1084 = vunpack.c.h.b16 %v144
    %v1085 = vunpack.c.l.b16 %v145
    %v1086 = vunpack.c.h.b16 %v145
    %v1087 = vunpack.c.l.b16 %v146
    %v1088 = vunpack.c.h.b16 %v146
    %v1089 = vunpack.c.l.b16 %v147
    %v1090 = vunpack.c.h.b16 %v147
    %v1091 = vunpack.c.l.b16 %v148
    %v1092 = vunpack.c.h.b16 %v148
    %v1093 = vunpack.c.l.b16 %v149
    %v1094 = vunpack.c.h.b16 %v149
    %v1095 = vunpack.c.l.b16 %v150
    %v1096 = vunpack.c.h.b16 %v150
    %v1097 = vunpack.c.l.b16 %v151
    %v1098 = vunpack.c.h.b16 %v151
    %v1099 = vunpack.c.l.b16 %v152
    %v1100 = vunpack.c.h.b16 %v152
    %v1101 = vunpack.c.l.b16 %v153
    %v1102 = vunpack.c.h.b16 %v153
    %v1103 = vunpack.c.l.b16 %v154
    %v1104 = vunpack.c.h.b16 %v154
    %v1105 = vunpack.c.l.b16 %v155
    %v1106 = vunpack.c.h.b16 %v155
    %v1107 = vunpack.c.l.b16 %v156
    %v1108 = vunpack.c.h.b16 %v156
    %v1109 = vunpack.c.l.b16 %v157
    %v1110 = vunpack.c.h.b16 %v157
    %v1111 = vunpack.c.l.b16 %v158
    %v1112 = vunpack.c.h.b16 %v158
    %v1113 = vunpack.c.l.b16 %v159
    %v1114 = vunpack.c.h.b16 %v159
    %v1115 = vunpack.c.l.b16 %v160
    %v1116 = vunpack.c.h.b16 %v160
    %v1117 = vunpack.c.l.b16 %v161
    %v1118 = vunpack.c.h.b16 %v161
    %v1119 = vunpack.c.l.b16 %v162
    %v1120 = vunpack.c.h.b16 %v162
    %v1121 = vunpack.c.l.b16 %v163
    %v1122 = vunpack.c.h.b16 %v163
    %v1123 = vunpack.c.l.b16 %v164
    %v1124 = vunpack.c.h.b16 %v164
    %v1125 = vunpack.c.l.b16 %v165
    %v1126 = vunpack.c.h.b16 %v165
    %v1127 = vunpack.c.l.b16 %v166
    %v1128 = vunpack.c.h.b16 %v166
    %v1129 = vunpack.c.l.b16 %v167
    %v1130 = vunpack.c.h.b16 %v167
    %v1131 = vunpack.c.l.b16 %v168
    %v1132 = vunpack.c.h.b16 %v168
    %v1133 = vunpack.c.l.b16 %v169
    %v1134 = vunpack.c.h.b16 %v169
    %v1135 = vunpack.c.l.b16 %v170
    %v1136 = vunpack.c.h.b16 %v170
    %v1137 = vunpack.c.l.b16 %v171
    %v1138 = vunpack.c.h.b16 %v171
    %v1139 = vunpack.c.l.b16 %v172
    %v1140 = vunpack.c.h.b16 %v172
    %v1141 = vunpack.c.l.b16 %v173
    %v1142 = vunpack.c.h.b16 %v173
    %v1143 = vunpack.c.l.b16 %v174
    %v1144 = vunpack.c.h.b16 %v174
    %v1145 = vunpack.c.l.b16 %v175
    %v1146 = vunpack.c.h.b16 %v175
    %v1147 = vunpack.c.l.b16 %v176
    %v1148 = vunpack.c.h.b16 %v176
    %v1149 = vunpack.c.l.b16 %v177
    %v1150 = vunpack.c.h.b16 %v177
    %v1151 = vunpack.c.l.b16 %v178
    %v1152 = vunpack.c.h.b16 %v178
    %v1153 = vunpack.c.l.b16 %v179
    %v1154 = vunpack.c.h.b16 %v179
    %v1155 = vunpack.c.l.b16 %v180
    %v1156 = vunpack.c.h.b16 %v180
    %v1157 = vunpack.c.l.b16 %v181
    %v1158 = vunpack.c.h.b16 %v181
    %v1159 = vunpack.c.l.b16 %v182
    %v1160 = vunpack.c.h.b16 %v182
    %v1161 = vunpack.c.l.b16 %v183
    %v1162 = vunpack.c.h.b16 %v183
    %v1163 = vunpack.c.l.b16 %v184
    %v1164 = vunpack.c.h.b16 %v184
    %v1165 = vunpack.c.l.b16 %v185
    %v1166 = vunpack.c.h.b16 %v185
    %v1167 = vunpack.c.l.b16 %v186
    %v1168 = vunpack.c.h.b16 %v186
    %v1169 = vunpack.c.l.b16 %v187
    %v1170 = vunpack.c.h.b16 %v187
    %v1171 = vunpack.c.l.b16 %v188
    %v1172 = vunpack.c.h.b16 %v188
    %v1173 = vunpack.c.l.b16 %v189
    %v1174 = vunpack.c.h.b16 %v189
    %v1175 = vunpack.c.l.b16 %v190
    %v1176 = vunpack.c.h.b16 %v190
    %v1177 = vunpack.c.l.b16 %v191
    %v1178 = vunpack.c.h.b16 %v191
    %v1179 = vunpack.c.l.b16 %v192
    %v1180 = vunpack.c.h.b16 %v192
    %v1181 = vunpack.c.l.b16 %v193
    %v1182 = vunpack.c.h.b16 %v193
    %v1183 = vunpack.c.l.b16 %v194
    %v1184 = vunpack.c.h.b16 %v194
    %v1185 = vunpack.c.l.b16 %v195
    %v1186 = vunpack.c.h.b16 %v195
    %v1187 = vunpack.c.l.b16 %v196
    %v1188 = vunpack.c.h.b16 %v196
    %v1189 = vunpack.c.l.b16 %v197
    %v1190 = vunpack.c.h.b16 %v197
    %v1191 = vunpack.c.l.b16 %v198
    %v1192 = vunpack.c.h.b16 %v198
    %v1193 = vunpack.c.l.b16 %v199
    %v1194 = vunpack.c.h.b16 %v199
    %v1195 = vunpack.c.l.b16 %v200
    %v1196 = vunpack.c.h.b16 %v200
    %v1197 = vunpack.c.l.b16 %v201
    %v1198 = vunpack.c.h.b16 %v201
    %v1199 = vunpack.c.l.b16 %v202
    %v1200 = vunpack.c.h.b16 %v202
    %v1201 = vunpack.c.l.b16 %v203
    %v1202 = vunpack.c.h.b16 %v203
    %v1203 = vunpack.c.l.b16 %v204
    %v1204 = vunpack.c.h.b16 %v204
    %v1205 = vunpack.c.l.b16 %v205
    %v1206 = vunpack.c.h.b16 %v205
    %v1207 = vunpack.c.l.b16 %v206
    %v1208 = vunpack.c.h.b16 %v206
    %v1209 = vunpack.c.l.b16 %v207
    %v1210 = vunpack.c.h.b16 %v207
    %v1211 = vunpack.c.l.b16 %v208
    %v1212 = vunpack.c.h.b16 %v208
    %v1213 = vunpack.c.l.b16 %v209
    %v1214 = vunpack.c.h.b16 %v209
    %v1215 = vunpack.c.l.b16 %v210
    %v1216 = vunpack.c.h.b16 %v210
    %v1217 = vunpack.c.l.b16 %v211
    %v1218 = vunpack.c.h.b16 %v211
    %v1219 = vunpack.c.l.b16 %v212
    %v1220 = vunpack.c.h.b16 %v212
    %v1221 = vunpack.c.l.b16 %v213
    %v1222 = vunpack.c.h.b16 %v213
    %v1223 = vunpack.c.l.b16 %v214
    %v1224 = vunpack.c.h.b16 %v214
    %v1225 = vunpack.c.l.b16 %v215
    %v1226 = vunpack.c.h.b16 %v215
    %v1227 = vunpack.c.l.b16 %v216
    %v1228 = vunpack.c.h.b16 %v216
    %v1229 = vunpack.c.l.b16 %v217
    %v1230 = vunpack.c.h.b16 %v217
    %v1231 = vunpack.c.l.b16 %v218
    %v1232 = vunpack.c.h.b16 %v218
    %v1233 = vunpack.c.l.b16 %v219
    %v1234 = vunpack.c.h.b16 %v219
    %v1235 = vunpack.c.l.b16 %v220
    %v1236 = vunpack.c.h.b16 %v220
    %v1237 = vunpack.c.l.b16 %v221
    %v1238 = vunpack.c.h.b16 %v221
    %v1239 = vunpack.c.l.b16 %v222
    %v1240 = vunpack.c.h.b16 %v222
    %v1241 = vunpack.c.l.b16 %v223
    %v1242 = vunpack.c.h.b16 %v223
    %v1243 = vunpack.c.l.b16 %v224
    %v1244 = vunpack.c.h.b16 %v224
    %v1245 = vunpack.c.l.b16 %v225
    %v1246 = vunpack.c.h.b16 %v225
    %v1247 = vunpack.c.l.b16 %v226
    %v1248 = vunpack.c.h.b16 %v226
    %v1249 = vunpack.c.l.b16 %v227
    %v1250 = vunpack.c.h.b16 %v227
    %v1251 = vunpack.c.l.b16 %v228
    %v1252 = vunpack.c.h.b16 %v228
    %v1253 = vunpack.c.l.b16 %v229
    %v1254 = vunpack.c.h.b16 %v229
    %v1255 = vunpack.c.l.b16 %v230
    %v1256 = vunpack.c.h.b16 %v230
    %v1257 = vunpack.c.l.b16 %v231
    %v1258 = vunpack.c.h.b16 %v231
    %v1259 = vunpack.c.l.b16 %v232
    %v1260 = vunpack.c.h.b16 %v232
    %v1261 = vunpack.c.l.b16 %v233
    %v1262 = vunpack.c.h.b16 %v233
    %v1263 = vunpack.c.l.b16 %v234
    %v1264 = vunpack.c.h.b16 %v234
    %v1265 = vunpack.c.l.b16 %v235
    %v1266 = vunpack.c.h.b16 %v235
    %v1267 = vunpack.c.l.b16 %v236
    %v1268 = vunpack.c.h.b16 %v236
    %v1269 = vunpack.c.l.b16 %v237
    %v1270 = vunpack.c.h.b16 %v237
    %v1271 = vunpack.c.l.b16 %v238
    %v1272 = vunpack.c.h.b16 %v238
    %v1273 = vunpack.c.l.b16 %v239
    %v1274 = vunpack.c.h.b16 %v239
    %v1275 = vunpack.c.l.b16 %v240
    %v1276 = vunpack.c.h.b16 %v240
    %v1277 = vunpack.c.l.b16 %v241
    %v1278 = vunpack.c.h.b16 %v241
    %v1279 = vunpack.c.l.b16 %v242
    %v1280 = vunpack.c.h.b16 %v242
    %v1281 = vunpack.c.l.b16 %v243
    %v1282 = vunpack.c.h.b16 %v243
    %v1283 = vunpack.c.l.b16 %v244
    %v1284 = vunpack.c.h.b16 %v244
    %v1285 = vunpack.c.l.b16 %v245
    %v1286 = vunpack.c.h.b16 %v245
    %v1287 = vunpack.c.l.b16 %v246
    %v1288 = vunpack.c.h.b16 %v246
    %v1289 = vunpack.c.l.b16 %v247
    %v1290 = vunpack.c.h.b16 %v247
    %v1291 = vunpack.c.l.b16 %v248
    %v1292 = vunpack.c.h.b16 %v248
    %v1293 = vunpack.c.l.b16 %v249
    %v1294 = vunpack.c.h.b16 %v249
    %v1295 = vunpack.c.l.b16 %v250
    %v1296 = vunpack.c.h.b16 %v250
    %v1297 = vunpack.c.l.b16 %v251
    %v1298 = vunpack.c.h.b16 %v251
    %v1299 = vunpack.c.l.b16 %v252
    %v1300 = vunpack.c.h.b16 %v252
    %v1301 = vunpack.c.l.b16 %v253
    %v1302 = vunpack.c.h.b16 %v253
    %v1303 = vunpack.c.l.b16 %v254
    %v1304 = vunpack.c.h.b16 %v254
    %v1305 = vunpack.c.l.b16 %v255
    %v1306 = vunpack.c.h.b16 %v255
    %v1307 = vunpack.c.l.b16 %v256
    %v1308 = vunpack.c.h.b16 %v256
    %v1309 = vunpack.c.l.b16 %v257
    %v1310 = vunpack.c.h.b16 %v257
    %v1311 = vunpack.c.l.b16 %v258
    %v1312 = vunpack.c.h.b16 %v258
    %v1313 = vunpack.c.l.b16 %v259
    %v1314 = vunpack.c.h.b16 %v259
    %v1315 = vunpack.c.l.b16 %v260
    %v1316 = vunpack.c.h.b16 %v260
    %v1317 = vunpack.c.l.b16 %v261
    %v1318 = vunpack.c.h.b16 %v261
    %v1319 = vunpack.c.l.b16 %v262
    %v1320 = vunpack.c.h.b16 %v262
    %v1321 = vunpack.c.l.b16 %v263
    %v1322 = vunpack.c.h.b16 %v263
    %v1323 = vunpack.c.l.b16 %v264
    %v1324 = vunpack.c.h.b16 %v264
    %v1325 = vunpack.c.l.b16 %v265
    %v1326 = vunpack.c.h.b16 %v265
    %v1327 = vunpack.c.l.b16 %v266
    %v1328 = vunpack.c.h.b16 %v266
    %v1329 = vunpack.c.l.b16 %v267
    %v1330 = vunpack.c.h.b16 %v267
    %v1331 = vunpack.c.l.b16 %v268
    %v1332 = vunpack.c.h.b16 %v268
    %v1333 = vunpack.c.l.b16 %v269
    %v1334 = vunpack.c.h.b16 %v269
    %v1335 = vunpack.c.l.b16 %v270
    %v1336 = vunpack.c.h.b16 %v270
    %v1337 = vunpack.c.l.b16 %v271
    %v1338 = vunpack.c.h.b16 %v271
    %v1339 = vunpack.c.l.b16 %v272
    %v1340 = vunpack.c.h.b16 %v272
    %v1341 = vunpack.c.l.b16 %v273
    %v1342 = vunpack.c.h.b16 %v273
    %v1343 = vunpack.c.l.b16 %v274
    %v1344 = vunpack.c.h.b16 %v274
    %v1345 = vunpack.c.l.b16 %v275
    %v1346 = vunpack.c.h.b16 %v275
    %v1347 = vunpack.c.l.b16 %v276
    %v1348 = vunpack.c.h.b16 %v276
    %v1349 = vunpack.c.l.b16 %v277
    %v1350 = vunpack.c.h.b16 %v277
    %v1351 = vunpack.c.l.b16 %v278
    %v1352 = vunpack.c.h.b16 %v278
    %v1353 = vunpack.c.l.b16 %v279
    %v1354 = vunpack.c.h.b16 %v279
    %v1355 = vunpack.c.l.b16 %v280
    %v1356 = vunpack.c.h.b16 %v280
    %v1357 = vunpack.c.l.b16 %v281
    %v1358 = vunpack.c.h.b16 %v281
    %v1359 = vunpack.c.l.b16 %v282
    %v1360 = vunpack.c.h.b16 %v282
    %v1361 = vunpack.c.l.b16 %v283
    %v1362 = vunpack.c.h.b16 %v283
    %v1363 = vunpack.c.l.b16 %v284
    %v1364 = vunpack.c.h.b16 %v284
    %v1365 = vunpack.c.l.b16 %v285
    %v1366 = vunpack.c.h.b16 %v285
    %v1367 = vunpack.c.l.b16 %v286
    %v1368 = vunpack.c.h.b16 %v286
    %v1369 = vunpack.c.l.b16 %v287
    %v1370 = vunpack.c.h.b16 %v287
    %v1371 = vunpack.c.l.b16 %v288
    %v1372 = vunpack.c.h.b16 %v288
    %v1373 = vunpack.c.l.b16 %v289
    %v1374 = vunpack.c.h.b16 %v289
    %v1375 = vunpack.c.l.b16 %v290
    %v1376 = vunpack.c.h.b16 %v290
    %v1377 = vunpack.c.l.b16 %v291
    %v1378 = vunpack.c.h.b16 %v291
    %v1379 = vunpack.c.l.b16 %v292
    %v1380 = vunpack.c.h.b16 %v292
    %v1381 = vunpack.c.l.b16 %v293
    %v1382 = vunpack.c.h.b16 %v293
    %v1383 = vunpack.c.l.b16 %v294
    %v1384 = vunpack.c.h.b16 %v294
    %v1385 = vunpack.c.l.b16 %v295
    %v1386 = vunpack.c.h.b16 %v295
    %v1387 = vunpack.c.l.b16 %v296
    %v1388 = vunpack.c.h.b16 %v296
    %v1389 = vunpack.c.l.b16 %v297
    %v1390 = vunpack.c.h.b16 %v297
    %v1391 = vunpack.c.l.b16 %v298
    %v1392 = vunpack.c.h.b16 %v298
    %v1393 = vunpack.c.l.b16 %v299
    %v1394 = vunpack.c.h.b16 %v299
    %v1395 = vunpack.c.l.b16 %v300
    %v1396 = vunpack.c.h.b16 %v300
    %v1397 = vunpack.c.l.b16 %v301
    %v1398 = vunpack.c.h.b16 %v301
    %v1399 = vunpack.c.l.b16 %v302
    %v1400 = vunpack.c.h.b16 %v302
    %v1401 = vunpack.c.l.b16 %v303
    %v1402 = vunpack.c.h.b16 %v303
    %v1403 = vunpack.c.l.b16 %v304
    %v1404 = vunpack.c.h.b16 %v304
    %v1405 = vunpack.c.l.b16 %v305
    %v1406 = vunpack.c.h.b16 %v305
    %v1407 = vunpack.c.l.b16 %v306
    %v1408 = vunpack.c.h.b16 %v306
    %v1409 = vunpack.c.l.b16 %v307
    %v1410 = vunpack.c.h.b16 %v307
    %v1411 = vunpack.c.l.b16 %v308
    %v1412 = vunpack.c.h.b16 %v308
    %v1413 = vunpack.c.l.b16 %v309
    %v1414 = vunpack.c.h.b16 %v309
    %v1415 = vunpack.c.l.b16 %v310
    %v1416 = vunpack.c.h.b16 %v310
    %v1417 = vunpack.c.l.b16 %v311
    %v1418 = vunpack.c.h.b16 %v311
    %v1419 = vunpack.c.l.b16 %v312
    %v1420 = vunpack.c.h.b16 %v312
    %v1421 = vunpack.c.l.b16 %v313
    %v1422 = vunpack.c.h.b16 %v313
    %v1423 = vunpack.c.l.b16 %v314
    %v1424 = vunpack.c.h.b16 %v314
    %v1425 = vunpack.c.l.b16 %v315
    %v1426 = vunpack.c.h.b16 %v315
    %v1427 = vunpack.c.l.b16 %v316
    %v1428 = vunpack.c.h.b16 %v316
    %v1429 = vunpack.c.l.b16 %v317
    %v1430 = vunpack.c.h.b16 %v317
    %v1431 = vunpack.c.l.b16 %v318
    %v1432 = vunpack.c.h.b16 %v318
    %v1433 = vunpack.c.l.b16 %v319
    %v1434 = vunpack.c.h.b16 %v319
    %v1435 = vunpack.c.l.b16 %v320
    %v1436 = vunpack.c.h.b16 %v320
    %v1437 = vunpack.c.l.b16 %v321
    %v1438 = vunpack.c.h.b16 %v321
    %v1439 = vunpack.c.l.b16 %v322
    %v1440 = vunpack.c.h.b16 %v322
    %v1441 = vunpack.c.l.b16 %v323
    %v1442 = vunpack.c.h.b16 %v323
    %v1443 = vunpack.c.l.b16 %v324
    %v1444 = vunpack.c.h.b16 %v324
    %v1445 = vunpack.c.l.b16 %v325
    %v1446 = vunpack.c.h.b16 %v325
    %v1447 = vunpack.c.l.b16 %v326
    %v1448 = vunpack.c.h.b16 %v326
    %v1449 = vunpack.c.l.b16 %v327
    %v1450 = vunpack.c.h.b16 %v327
    %v1451 = vunpack.c.l.b16 %v328
    %v1452 = vunpack.c.h.b16 %v328
    %v1453 = vunpack.c.l.b16 %v329
    %v1454 = vunpack.c.h.b16 %v329
    %v1455 = vunpack.c.l.b16 %v330
    %v1456 = vunpack.c.h.b16 %v330
    %v1457 = vunpack.c.l.b16 %v331
    %v1458 = vunpack.c.h.b16 %v331
    %v1459 = vunpack.c.l.b16 %v332
    %v1460 = vunpack.c.h.b16 %v332
    %v1461 = vunpack.c.l.b16 %v333
    %v1462 = vunpack.c.h.b16 %v333
    %v1463 = vunpack.c.l.b16 %v334
    %v1464 = vunpack.c.h.b16 %v334
    %v1465 = vunpack.c.l.b16 %v335
    %v1466 = vunpack.c.h.b16 %v335
    %v1467 = vunpack.c.l.b16 %v336
    %v1468 = vunpack.c.h.b16 %v336
    %v1469 = vunpack.c.l.b16 %v337
    %v1470 = vunpack.c.h.b16 %v337
    %v1471 = vunpack.c.l.b16 %v338
    %v1472 = vunpack.c.h.b16 %v338
    %v1473 = vunpack.c.l.b16 %v339
    %v1474 = vunpack.c.h.b16 %v339
    %v1475 = vunpack.c.l.b16 %v340
    %v1476 = vunpack.c.h.b16 %v340
    %v1477 = vunpack.c.l.b16 %v341
    %v1478 = vunpack.c.h.b16 %v341
    %v1479 = vunpack.c.l.b16 %v342
    %v1480 = vunpack.c.h.b16 %v342
    %v1481 = vunpack.c.l.b16 %v343
    %v1482 = vunpack.c.h.b16 %v343
    %v1483 = vunpack.c.l.b16 %v344
    %v1484 = vunpack.c.h.b16 %v344
    %v1485 = vunpack.c.l.b16 %v345
    %v1486 = vunpack.c.h.b16 %v345
    %v1487 = vunpack.c.l.b16 %v346
    %v1488 = vunpack.c.h.b16 %v346
    %v1489 = vunpack.c.l.b16 %v347
    %v1490 = vunpack.c.h.b16 %v347
    %v1491 = vunpack.c.l.b16 %v348
    %v1492 = vunpack.c.h.b16 %v348
    %v1493 = vunpack.c.l.b16 %v349
    %v1494 = vunpack.c.h.b16 %v349
    %v1495 = vunpack.c.l.b16 %v350
    %v1496 = vunpack.c.h.b16 %v350
    %v1497 = vunpack.c.l.b16 %v351
    %v1498 = vunpack.c.h.b16 %v351
    %v1499 = vunpack.c.l.b16 %v352
    %v1500 = vunpack.c.h.b16 %v352
    %v1501 = vunpack.c.l.b16 %v353
    %v1502 = vunpack.c.h.b16 %v353
    %v1503 = vunpack.c.l.b16 %v354
    %v1504 = vunpack.c.h.b16 %v354
    %v1505 = vunpack.c.l.b16 %v355
    %v1506 = vunpack.c.h.b16 %v355
    %v1507 = vunpack.c.l.b16 %v356
    %v1508 = vunpack.c.h.b16 %v356
    %v1509 = vunpack.c.l.b16 %v357
    %v1510 = vunpack.c.h.b16 %v357
    %v1511 = vunpack.c.l.b16 %v358
    %v1512 = vunpack.c.h.b16 %v358
    %v1513 = vunpack.c.l.b16 %v359
    %v1514 = vunpack.c.h.b16 %v359
    %v1515 = vunpack.c.l.b16 %v360
    %v1516 = vunpack.c.h.b16 %v360
    %v1517 = vunpack.c.l.b16 %v361
    %v1518 = vunpack.c.h.b16 %v361
    %v1519 = vunpack.c.l.b16 %v362
    %v1520 = vunpack.c.h.b16 %v362
    %v1521 = vunpack.c.l.b16 %v363
    %v1522 = vunpack.c.h.b16 %v363
    %v1523 = vunpack.c.l.b16 %v364
    %v1524 = vunpack.c.h.b16 %v364
    %v1525 = vunpack.c.l.b16 %v365
    %v1526 = vunpack.c.h.b16 %v365
    %v1527 = vunpack.c.l.b16 %v366
    %v1528 = vunpack.c.h.b16 %v366
    %v1529 = vunpack.c.l.b16 %v367
    %v1530 = vunpack.c.h.b16 %v367
    %v1531 = vunpack.c.l.b16 %v368
    %v1532 = vunpack.c.h.b16 %v368
    %v1533 = vunpack.c.l.b16 %v369
    %v1534 = vunpack.c.h.b16 %v369
    %v1535 = vunpack.c.l.b16 %v370
    %v1536 = vunpack.c.h.b16 %v370
    %v1537 = vunpack.c.l.b16 %v371
    %v1538 = vunpack.c.h.b16 %v371
    %v1539 = vunpack.c.l.b16 %v372
    %v1540 = vunpack.c.h.b16 %v372
    %v1541 = vunpack.c.l.b16 %v373
    %v1542 = vunpack.c.h.b16 %v373
    %v1543 = vunpack.c.l.b16 %v374
    %v1544 = vunpack.c.h.b16 %v374
    %v1545 = vunpack.c.l.b16 %v375
    %v1546 = vunpack.c.h.b16 %v375
    %v1547 = vunpack.c.l.b16 %v376
    %v1548 = vunpack.c.h.b16 %v376
    %v1549 = vunpack.c.l.b16 %v377
    %v1550 = vunpack.c.h.b16 %v377
    %v1551 = vunpack.c.l.b16 %v378
    %v1552 = vunpack.c.h.b16 %v378
    %v1553 = vunpack.c.l.b16 %v379
    %v1554 = vunpack.c.h.b16 %v379
    %v1555 = vunpack.c.l.b16 %v380
    %v1556 = vunpack.c.h.b16 %v380
    %v1557 = vunpack.c.l.b16 %v381
    %v1558 = vunpack.c.h.b16 %v381
    %v1559 = vunpack.c.l.b16 %v382
    %v1560 = vunpack.c.h.b16 %v382
    %v1561 = vunpack.c.l.b16 %v383
    %v1562 = vunpack.c.h.b16 %v383
    %v1563 = vunpack.c.l.b16 %v384
    %v1564 = vunpack.c.h.b16 %v384
    %v1565 = vunpack.c.l.b16 %v385
    %v1566 = vunpack.c.h.b16 %v385
    %v1567 = vunpack.c.l.b16 %v386
    %v1568 = vunpack.c.h.b16 %v386
    %v1569 = vunpack.c.l.b16 %v387
    %v1570 = vunpack.c.h.b16 %v387
    %v1571 = vunpack.c.l.b16 %v388
    %v1572 = vunpack.c.h.b16 %v388
    %v1573 = vunpack.c.l.b16 %v389
    %v1574 = vunpack.c.h.b16 %v389
    %v1575 = vunpack.c.l.b16 %v390
    %v1576 = vunpack.c.h.b16 %v390
    %v1577 = vunpack.c.l.b16 %v391
    %v1578 = vunpack.c.h.b16 %v391
    %v1579 = vunpack.c.l.b16 %v392
    %v1580 = vunpack.c.h.b16 %v392
    %v1581 = vunpack.c.l.b16 %v393
    %v1582 = vunpack.c.h.b16 %v393
    %v1583 = vunpack.c.l.b16 %v394
    %v1584 = vunpack.c.h.b16 %v394
    %v1585 = vunpack.c.l.b16 %v395
    %v1586 = vunpack.c.h.b16 %v395
    %v1587 = vunpack.c.l.b16 %v396
    %v1588 = vunpack.c.h.b16 %v396
    %v1589 = vunpack.c.l.b16 %v397
    %v1590 = vunpack.c.h.b16 %v397
    %v1591 = vunpack.c.l.b16 %v398
    %v1592 = vunpack.c.h.b16 %v398
    %v1593 = vunpack.c.l.b16 %v399
    %v1594 = vunpack.c.h.b16 %v399
    %v1595 = vunpack.c.l.b16 %v400
    %v1596 = vunpack.c.h.b16 %v400
    %v1597 = vunpack.c.l.b16 %v401
    %v1598 = vunpack.c.h.b16 %v401
    %v1599 = vunpack.c.l.b16 %v402
    %v1600 = vunpack.c.h.b16 %v402
    %v1601 = vunpack.c.l.b16 %v403
    %v1602 = vunpack.c.h.b16 %v403
    %v1603 = vunpack.c.l.b16 %v404
    %v1604 = vunpack.c.h.b16 %v404
    %v1605 = vunpack.c.l.b16 %v405
    %v1606 = vunpack.c.h.b16 %v405
    %v1607 = vunpack.c.l.b16 %v406
    %v1608 = vunpack.c.h.b16 %v406
    %v1609 = vunpack.c.l.b16 %v407
    %v1610 = vunpack.c.h.b16 %v407
    %v1611 = vunpack.c.l.b16 %v408
    %v1612 = vunpack.c.h.b16 %v408
    %v1613 = vunpack.c.l.b16 %v409
    %v1614 = vunpack.c.h.b16 %v409
    %v1615 = vunpack.c.l.b16 %v410
    %v1616 = vunpack.c.h.b16 %v410
    %v1617 = vunpack.c.l.b16 %v411
    %v1618 = vunpack.c.h.b16 %v411
    %v1619 = vunpack.c.l.b16 %v412
    %v1620 = vunpack.c.h.b16 %v412
    %v1621 = vunpack.c.l.b16 %v413
    %v1622 = vunpack.c.h.b16 %v413
    %v1623 = vunpack.c.l.b16 %v414
    %v1624 = vunpack.c.h.b16 %v414
    %v1625 = vunpack.c.l.b16 %v415
    %v1626 = vunpack.c.h.b16 %v415
    %v1627 = vunpack.c.l.b16 %v416
    %v1628 = vunpack.c.h.b16 %v416
    %v1629 = vunpack.c.l.b16 %v417
    %v1630 = vunpack.c.h.b16 %v417
    %v1631 = vunpack.c.l.b16 %v418
    %v1632 = vunpack.c.h.b16 %v418
    %v1633 = vunpack.c.l.b16 %v419
    %v1634 = vunpack.c.h.b16 %v419
    %v1635 = vunpack.c.l.b16 %v420
    %v1636 = vunpack.c.h.b16 %v420
    %v1637 = vunpack.c.l.b16 %v421
    %v1638 = vunpack.c.h.b16 %v421
    %v1639 = vunpack.c.l.b16 %v422
    %v1640 = vunpack.c.h.b16 %v422
    %v1641 = vunpack.c.l.b16 %v423
    %v1642 = vunpack.c.h.b16 %v423
    %v1643 = vunpack.c.l.b16 %v424
    %v1644 = vunpack.c.h.b16 %v424
    %v1645 = vunpack.c.l.b16 %v425
    %v1646 = vunpack.c.h.b16 %v425
    %v1647 = vunpack.c.l.b16 %v426
    %v1648 = vunpack.c.h.b16 %v426
    %v1649 = vunpack.c.l.b16 %v427
    %v1650 = vunpack.c.h.b16 %v427
    %v1651 = vunpack.c.l.b16 %v428
    %v1652 = vunpack.c.h.b16 %v428
    %v1653 = vunpack.c.l.b16 %v429
    %v1654 = vunpack.c.h.b16 %v429
    %v1655 = vunpack.c.l.b16 %v430
    %v1656 = vunpack.c.h.b16 %v430
    %v1657 = vunpack.c.l.b16 %v431
    %v1658 = vunpack.c.h.b16 %v431
    %v1659 = vunpack.c.l.b16 %v432
    %v1660 = vunpack.c.h.b16 %v432
    %v1661 = vunpack.c.l.b16 %v433
    %v1662 = vunpack.c.h.b16 %v433
    %v1663 = vunpack.c.l.b16 %v434
    %v1664 = vunpack.c.h.b16 %v434
    %v1665 = vunpack.c.l.b16 %v435
    %v1666 = vunpack.c.h.b16 %v435
    %v1667 = vunpack.c.l.b16 %v436
    %v1668 = vunpack.c.h.b16 %v436
    %v1669 = vunpack.c.l.b16 %v437
    %v1670 = vunpack.c.h.b16 %v437
    %v1671 = vunpack.c.l.b16 %v438
    %v1672 = vunpack.c.h.b16 %v438
    %v1673 = vunpack.c.l.b16 %v439
    %v1674 = vunpack.c.h.b16 %v439
    %v1675 = vunpack.c.l.b16 %v440
    %v1676 = vunpack.c.h.b16 %v440
    %v1677 = vunpack.c.l.b16 %v441
    %v1678 = vunpack.c.h.b16 %v441
    %v1679 = vunpack.c.l.b16 %v442
    %v1680 = vunpack.c.h.b16 %v442
    %v1681 = vunpack.c.l.b16 %v443
    %v1682 = vunpack.c.h.b16 %v443
    %v1683 = vunpack.c.l.b16 %v444
    %v1684 = vunpack.c.h.b16 %v444
    %v1685 = vunpack.c.l.b16 %v445
    %v1686 = vunpack.c.h.b16 %v445
    %v1687 = vunpack.c.l.b16 %v446
    %v1688 = vunpack.c.h.b16 %v446
    %v1689 = vunpack.c.l.b16 %v447
    %v1690 = vunpack.c.h.b16 %v447
    %v1691 = vunpack.c.l.b16 %v448
    %v1692 = vunpack.c.h.b16 %v448
    %v1693 = vunpack.c.l.b16 %v449
    %v1694 = vunpack.c.h.b16 %v449
    %v1695 = vunpack.c.l.b16 %v450
    %v1696 = vunpack.c.h.b16 %v450
    %v1697 = vunpack.c.l.b16 %v451
    %v1698 = vunpack.c.h.b16 %v451
    %v1699 = vunpack.c.l.b16 %v452
    %v1700 = vunpack.c.h.b16 %v452
    %v1701 = vpack.c.b16 %v935, %v933
    %v1702 = vpack.c.b16 %v936, %v934
    %v1703 = vpack.c.b16 %v939, %v937
    %v1704 = vpack.c.b16 %v940, %v938
    %v1705 = vpack.c.b16 %v943, %v941
    %v1706 = vpack.c.b16 %v944, %v942
    %v1707 = vpack.c.b16 %v947, %v945
    %v1708 = vpack.c.b16 %v948, %v946
    %v1709 = vpack.c.b16 %v951, %v949
    %v1710 = vpack.c.b16 %v952, %v950
    %v1711 = vpack.c.b16 %v955, %v953
    %v1712 = vpack.c.b16 %v956, %v954
    %v1713 = vpack.c.b16 %v959, %v957
    %v1714 = vpack.c.b16 %v960, %v958
    %v1715 = vpack.c.b16 %v963, %v961
    %v1716 = vpack.c.b16 %v964, %v962
    %v1717 = vpack.c.b16 %v967, %v965
    %v1718 = vpack.c.b16 %v968, %v966
    %v1719 = vpack.c.b16 %v971, %v969
    %v1720 = vpack.c.b16 %v972, %v970
    %v1721 = vpack.c.b16 %v975, %v973
    %v1722 = vpack.c.b16 %v976, %v974
    %v1723 = vpack.c.b16 %v979, %v977
    %v1724 = vpack.c.b16 %v980, %v978
    %v1725 = vpack.c.b16 %v983, %v981
    %v1726 = vpack.c.b16 %v984, %v982
    %v1727 = vpack.c.b16 %v987, %v985
    %v1728 = vpack.c.b16 %v988, %v986
    %v1729 = vpack.c.b16 %v991, %v989
    %v1730 = vpack.c.b16 %v992, %v990
    %v1731 = vpack.c.b16 %v995, %v993
    %v1732 = vpack.c.b16 %v996, %v994
    %v1733 = vpack.c.b16 %v999, %v997
    %v1734 = vpack.c.b16 %v1000, %v998
    %v1735 = vpack.c.b16 %v1003, %v1001
    %v1736 = vpack.c.b16 %v1004, %v1002
    %v1737 = vpack.c.b16 %v1007, %v1005
    %v1738 = vpack.c.b16 %v1008, %v1006
    %v1739 = vpack.c.b16 %v1011, %v1009
    %v1740 = vpack.c.b16 %v1012, %v1010
    %v1741 = vpack.c.b16 %v1015, %v1013
    %v1742 = vpack.c.b16 %v1016, %v1014
    %v1743 = vpack.c.b16 %v1019, %v1017
    %v1744 = vpack.c.b16 %v1020, %v1018
    %v1745 = vpack.c.b16 %v1023, %v1021
    %v1746 = vpack.c.b16 %v1024, %v1022
    %v1747 = vpack.c.b16 %v1027, %v1025
    %v1748 = vpack.c.b16 %v1028, %v1026
    %v1749 = vpack.c.b16 %v1031, %v1029
    %v1750 = vpack.c.b16 %v1032, %v1030
    %v1751 = vpack.c.b16 %v1035, %v1033
    %v1752 = vpack.c.b16 %v1036, %v1034
    %v1753 = vpack.c.b16 %v1039, %v1037
    %v1754 = vpack.c.b16 %v1040, %v1038
    %v1755 = vpack.c.b16 %v1043, %v1041
    %v1756 = vpack.c.b16 %v1044, %v1042
    %v1757 = vpack.c.b16 %v1047, %v1045
    %v1758 = vpack.c.b16 %v1048, %v1046
    %v1759 = vpack.c.b16 %v1051, %v1049
    %v1760 = vpack.c.b16 %v1052, %v1050
    %v1761 = vpack.c.b16 %v1055, %v1053
    %v1762 = vpack.c.b16 %v1056, %v1054
    %v1763 = vpack.c.b16 %v1059, %v1057
    %v1764 = vpack.c.b16 %v1060, %v1058
    %v1765 = vpack.c.b16 %v1063, %v1061
    %v1766 = vpack.c.b16 %v1064, %v1062
    %v1767 = vpack.c.b16 %v1067, %v1065
    %v1768 = vpack.c.b16 %v1068, %v1066
    %v1769 = vpack.c.b16 %v1071, %v1069
    %v1770 = vpack.c.b16 %v1072, %v1070
    %v1771 = vpack.c.b16 %v1075, %v1073
    %v1772 = vpack.c.b16 %v1076, %v1074
    %v1773 = vpack.c.b16 %v1079, %v1077
    %v1774 = vpack.c.b16 %v1080, %v1078
    %v1775 = vpack.c.b16 %v1083, %v1081
    %v1776 = vpack.c.b16 %v1084, %v1082
    %v1777 = vpack.c.b16 %v1087, %v1085
    %v1778 = vpack.c.b16 %v1088, %v1086
    %v1779 = vpack.c.b16 %v1091, %v1089
    %v1780 = vpack.c.b16 %v1092, %v1090
    %v1781 = vpack.c.b16 %v1095, %v1093
    %v1782 = vpack.c.b16 %v1096, %v1094
    %v1783 = vpack.c.b16 %v1099, %v1097
    %v1784 = vpack.c.b16 %v1100, %v1098
    %v1785 = vpack.c.b16 %v1103, %v1101
    %v1786 = vpack.c.b16 %v1104, %v1102
    %v1787 = vpack.c.b16 %v1107, %v1105
    %v1788 = vpack.c.b16 %v1108, %v1106
    %v1789 = vpack.c.b16 %v1111, %v1109
    %v1790 = vpack.c.b16 %v1112, %v1110
    %v1791 = vpack.c.b16 %v1115, %v1113
    %v1792 = vpack.c.b16 %v1116, %v1114
    %v1793 = vpack.c.b16 %v1119, %v1117
    %v1794 = vpack.c.b16 %v1120, %v1118
    %v1795 = vpack.c.b16 %v1123, %v1121
    %v1796 = vpack.c.b16 %v1124, %v1122
    %v1797 = vpack.c.b16 %v1127, %v1125
    %v1798 = vpack.c.b16 %v1128, %v1126
    %v1799 = vpack.c.b16 %v1131, %v1129
    %v1800 = vpack.c.b16 %v1132, %v1130
    %v1801 = vpack.c.b16 %v1135, %v1133
    %v1802 = vpack.c.b16 %v1136, %v1134
    %v1803 = vpack.c.b16 %v1139, %v1137
    %v1804 = vpack.c.b16 %v1140, %v1138
    %v1805 = vpack.c.b16 %v1143, %v1141
    %v1806 = vpack.c.b16 %v1144, %v1142
    %v1807 = vpack.c.b16 %v1147, %v1145
    %v1808 = vpack.c.b16 %v1148, %v1146
    %v1809 = vpack.c.b16 %v1151, %v1149
    %v1810 = vpack.c.b16 %v1152, %v1150
    %v1811 = vpack.c.b16 %v1155, %v1153
    %v1812 = vpack.c.b16 %v1156, %v1154
    %v1813 = vpack.c.b16 %v1159, %v1157
    %v1814 = vpack.c.b16 %v1160, %v1158
    %v1815 = vpack.c.b16 %v1163, %v1161
    %v1816 = vpack.c.b16 %v1164, %v1162
    %v1817 = vpack.c.b16 %v1167, %v1165
    %v1818 = vpack.c.b16 %v1168, %v1166
    %v1819 = vpack.c.b16 %v1171, %v1169
    %v1820 = vpack.c.b16 %v1172, %v1170
    %v1821 = vpack.c.b16 %v1175, %v1173
    %v1822 = vpack.c.b16 %v1176, %v1174
    %v1823 = vpack.c.b16 %v1179, %v1177
    %v1824 = vpack.c.b16 %v1180, %v1178
    %v1825 = vpack.c.b16 %v1183, %v1181
    %v1826 = vpack.c.b16 %v1184, %v1182
    %v1827 = vpack.c.b16 %v1187, %v1185
    %v1828 = vpack.c.b16 %v1188, %v1186
    %v1829 = vpack.c.b16 %v1191, %v1189
    %v1830 = vpack.c.b16 %v1192, %v1190
    %v1831 = vpack.c.b16 %v1195, %v1193
    %v1832 = vpack.c.b16 %v1196, %v1194
    %v1833 = vpack.c.b16 %v1199, %v1197
    %v1834 = vpack.c.b16 %v1200, %v1198
    %v1835 = vpack.c.b16 %v1203, %v1201
    %v1836 = vpack.c.b16 %v1204, %v1202
    %v1837 = vpack.c.b16 %v1207, %v1205
    %v1838 = vpack.c.b16 %v1208, %v1206
    %v1839 = vpack.c.b16 %v1211, %v1209
    %v1840 = vpack.c.b16 %v1212, %v1210
    %v1841 = vpack.c.b16 %v1215, %v1213
    %v1842 = vpack.c.b16 %v1216, %v1214
    %v1843 = vpack.c.b16 %v1219, %v1217
    %v1844 = vpack.c.b16 %v1220, %v1218
    %v1845 = vpack.c.b16 %v1223, %v1221
    %v1846 = vpack.c.b16 %v1224, %v1222
    %v1847 = vpack.c.b16 %v1227, %v1225
    %v1848 = vpack.c.b16 %v1228, %v1226
    %v1849 = vpack.c.b16 %v1231, %v1229
    %v1850 = vpack.c.b16 %v1232, %v1230
    %v1851 = vpack.c.b16 %v1235, %v1233
    %v1852 = vpack.c.b16 %v1236, %v1234
    %v1853 = vpack.c.b16 %v1239, %v1237
    %v1854 = vpack.c.b16 %v1240, %v1238
    %v1855 = vpack.c.b16 %v1243, %v1241
    %v1856 = vpack.c.b16 %v1244, %v1242
    %v1857 = vpack.c.b16 %v1247, %v1245
    %v1858 = vpack.c.b16 %v1248, %v1246
    %v1859 = vpack.c.b16 %v1251, %v1249
    %v1860 = vpack.c.b16 %v1252, %v1250
    %v1861 = vpack.c.b16 %v1255, %v1253
    %v1862 = vpack.c.b16 %v1256, %v1254
    %v1863 = vpack.c.b16 %v1259, %v1257
    %v1864 = vpack.c.b16 %v1260, %v1258
    %v1865 = vpack.c.b16 %v1263, %v1261
    %v1866 = vpack.c.b16 %v1264, %v1262
    %v1867 = vpack.c.b16 %v1267, %v1265
    %v1868 = vpack.c.b16 %v1268, %v1266
    %v1869 = vpack.c.b16 %v1271, %v1269
    %v1870 = vpack.c.b16 %v1272, %v1270
    %v1871 = vpack.c.b16 %v1275, %v1273
    %v1872 = vpack.c.b16 %v1276, %v1274
    %v1873 = vpack.c.b16 %v1279, %v1277
    %v1874 = vpack.c.b16 %v1280, %v1278
    %v1875 = vpack.c.b16 %v1283, %v1281
    %v1876 = vpack.c.b16 %v1284, %v1282
    %v1877 = vpack.c.b16 %v1287, %v1285
    %v1878 = vpack.c.b16 %v1288, %v1286
    %v1879 = vpack.c.b16 %v1291, %v1289
    %v1880 = vpack.c.b16 %v1292, %v1290
    %v1881 = vpack.c.b16 %v1295, %v1293
    %v1882 = vpack.c.b16 %v1296, %v1294
    %v1883 = vpack.c.b16 %v1299, %v1297
    %v1884 = vpack.c.b16 %v1300, %v1298
    %v1885 = vpack.c.b16 %v1303, %v1301
    %v1886 = vpack.c.b16 %v1304, %v1302
    %v1887 = vpack.c.b16 %v1307, %v1305
    %v1888 = vpack.c.b16 %v1308, %v1306
    %v1889 = vpack.c.b16 %v1311, %v1309
    %v1890 = vpack.c.b16 %v1312, %v1310
    %v1891 = vpack.c.b16 %v1315, %v1313
    %v1892 = vpack.c.b16 %v1316, %v1314
    %v1893 = vpack.c.b16 %v1319, %v1317
    %v1894 = vpack.c.b16 %v1320, %v1318
    %v1895 = vpack.c.b16 %v1323, %v1321
    %v1896 = vpack.c.b16 %v1324, %v1322
    %v1897 = vpack.c.b16 %v1327, %v1325
    %v1898 = vpack.c.b16 %v1328, %v1326
    %v1899 = vpack.c.b16 %v1331, %v1329
    %v1900 = vpack.c.b16 %v1332, %v1330
    %v1901 = vpack.c.b16 %v1335, %v1333
    %v1902 = vpack.c.b16 %v1336, %v1334
    %v1903 = vpack.c.b16 %v1339, %v1337
    %v1904 = vpack.c.b16 %v1340, %v1338
    %v1905 = vpack.c.b16 %v1343, %v1341
    %v1906 = vpack.c.b16 %v1344, %v1342
    %v1907 = vpack.c.b16 %v1347, %v1345
    %v1908 = vpack.c.b16 %v1348, %v1346
    %v1909 = vpack.c.b16 %v1351, %v1349
    %v1910 = vpack.c.b16 %v1352, %v1350
    %v1911 = vpack.c.b16 %v1355, %v1353
    %v1912 = vpack.c.b16 %v1356, %v1354
    %v1913 = vpack.c.b16 %v1359, %v1357
    %v1914 = vpack.c.b16 %v1360, %v1358
    %v1915 = vpack.c.b16 %v1363, %v1361
    %v1916 = vpack.c.b16 %v1364, %v1362
    %v1917 = vpack.c.b16 %v1367, %v1365
    %v1918 = vpack.c.b16 %v1368, %v1366
    %v1919 = vpack.c.b16 %v1371, %v1369
    %v1920 = vpack.c.b16 %v1372, %v1370
    %v1921 = vpack.c.b16 %v1375, %v1373
    %v1922 = vpack.c.b16 %v1376, %v1374
    %v1923 = vpack.c.b16 %v1379, %v1377
    %v1924 = vpack.c.b16 %v1380, %v1378
    %v1925 = vpack.c.b16 %v1383, %v1381
    %v1926 = vpack.c.b16 %v1384, %v1382
    %v1927 = vpack.c.b16 %v1387, %v1385
    %v1928 = vpack.c.b16 %v1388, %v1386
    %v1929 = vpack.c.b16 %v1391, %v1389
    %v1930 = vpack.c.b16 %v1392, %v1390
    %v1931 = vpack.c.b16 %v1395, %v1393
    %v1932 = vpack.c.b16 %v1396, %v1394
    %v1933 = vpack.c.b16 %v1399, %v1397
    %v1934 = vpack.c.b16 %v1400, %v1398
    %v1935 = vpack.c.b16 %v1403, %v1401
    %v1936 = vpack.c.b16 %v1404, %v1402
    %v1937 = vpack.c.b16 %v1407, %v1405
    %v1938 = vpack.c.b16 %v1408, %v1406
    %v1939 = vpack.c.b16 %v1411, %v1409
    %v1940 = vpack.c.b16 %v1412, %v1410
    %v1941 = vpack.c.b16 %v1415, %v1413
    %v1942 = vpack.c.b16 %v1416, %v1414
    %v1943 = vpack.c.b16 %v1419, %v1417
    %v1944 = vpack.c.b16 %v1420, %v1418
    %v1945 = vpack.c.b16 %v1423, %v1421
    %v1946 = vpack.c.b16 %v1424, %v1422
    %v1947 = vpack.c.b16 %v1427, %v1425
    %v1948 = vpack.c.b16 %v1428, %v1426
    %v1949 = vpack.c.b16 %v1431, %v1429
    %v1950 = vpack.c.b16 %v1432, %v1430
    %v1951 = vpack.c.b16 %v1435, %v1433
    %v1952 = vpack.c.b16 %v1436, %v1434
    %v1953 = vpack.c.b16 %v1439, %v1437
    %v1954 = vpack.c.b16 %v1440, %v1438
    %v1955 = vpack.c.b16 %v1443, %v1441
    %v1956 = vpack.c.b16 %v1444, %v1442
    %v1957 = vpack.c.b16 %v1447, %v1445
    %v1958 = vpack.c.b16 %v1448, %v1446
    %v1959 = vpack.c.b16 %v1451, %v1449
    %v1960 = vpack.c.b16 %v1452, %v1450
    %v1961 = vpack.c.b16 %v1455, %v1453
    %v1962 = vpack.c.b16 %v1456, %v1454
    %v1963 = vpack.c.b16 %v1459, %v1457
    %v1964 = vpack.c.b16 %v1460, %v1458
    %v1965 = vpack.c.b16 %v1463, %v1461
    %v1966 = vpack.c.b16 %v1464, %v1462
    %v1967 = vpack.c.b16 %v1467, %v1465
    %v1968 = vpack.c.b16 %v1468, %v1466
    %v1969 = vpack.c.b16 %v1471, %v1469
    %v1970 = vpack.c.b16 %v1472, %v1470
    %v1971 = vpack.c.b16 %v1475, %v1473
    %v1972 = vpack.c.b16 %v1476, %v1474
    %v1973 = vpack.c.b16 %v1479, %v1477
    %v1974 = vpack.c.b16 %v1480, %v1478
    %v1975 = vpack.c.b16 %v1483, %v1481
    %v1976 = vpack.c.b16 %v1484, %v1482
    %v1977 = vpack.c.b16 %v1487, %v1485
    %v1978 = vpack.c.b16 %v1488, %v1486
    %v1979 = vpack.c.b16 %v1491, %v1489
    %v1980 = vpack.c.b16 %v1492, %v1490
    %v1981 = vpack.c.b16 %v1495, %v1493
    %v1982 = vpack.c.b16 %v1496, %v1494
    %v1983 = vpack.c.b16 %v1499, %v1497
    %v1984 = vpack.c.b16 %v1500, %v1498
    %v1985 = vpack.c.b16 %v1503, %v1501
    %v1986 = vpack.c.b16 %v1504, %v1502
    %v1987 = vpack.c.b16 %v1507, %v1505
    %v1988 = vpack.c.b16 %v1508, %v1506
    %v1989 = vpack.c.b16 %v1511, %v1509
    %v1990 = vpack.c.b16 %v1512, %v1510
    %v1991 = vpack.c.b16 %v1515, %v1513
    %v1992 = vpack.c.b16 %v1516, %v1514
    %v1993 = vpack.c.b16 %v1519, %v1517
    %v1994 = vpack.c.b16 %v1520, %v1518
    %v1995 = vpack.c.b16 %v1523, %v1521
    %v1996 = vpack.c.b16 %v1524, %v1522
    %v1997 = vpack.c.b16 %v1527, %v1525
    %v1998 = vpack.c.b16 %v1528, %v1526
    %v1999 = vpack.c.b16 %v1531, %v1529
    %v2000 = vpack.c.b16 %v1532, %v1530
    %v2001 = vpack.c.b16 %v1535, %v1533
    %v2002 = vpack.c.b16 %v1536, %v1534
    %v2003 = vpack.c.b16 %v1539, %v1537
    %v2004 = vpack.c.b16 %v1540, %v1538
    %v2005 = vpack.c.b16 %v1543, %v1541
    %v2006 = vpack.c.b16 %v1544, %v1542
    %v2007 = vpack.c.b16 %v1547, %v1545
    %v2008 = vpack.c.b16 %v1548, %v1546
    %v2009 = vpack.c.b16 %v1551, %v1549
    %v2010 = vpack.c.b16 %v1552, %v1550
    %v2011 = vpack.c.b16 %v1555, %v1553
    %v2012 = vpack.c.b16 %v1556, %v1554
    %v2013 = vpack.c.b16 %v1559, %v1557
    %v2014 = vpack.c.b16 %v1560, %v1558
    %v2015 = vpack.c.b16 %v1563, %v1561
    %v2016 = vpack.c.b16 %v1564, %v1562
    %v2017 = vpack.c.b16 %v1567, %v1565
    %v2018 = vpack.c.b16 %v1568, %v1566
    %v2019 = vpack.c.b16 %v1571, %v1569
    %v2020 = vpack.c.b16 %v1572, %v1570
    %v2021 = vpack.c.b16 %v1575, %v1573
    %v2022 = vpack.c.b16 %v1576, %v1574
    %v2023 = vpack.c.b16 %v1579, %v1577
    %v2024 = vpack.c.b16 %v1580, %v1578
    %v2025 = vpack.c.b16 %v1583, %v1581
    %v2026 = vpack.c.b16 %v1584, %v1582
    %v2027 = vpack.c.b16 %v1587, %v1585
    %v2028 = vpack.c.b16 %v1588, %v1586
    %v2029 = vpack.c.b16 %v1591, %v1589
    %v2030 = vpack.c.b16 %v1592, %v1590
    %v2031 = vpack.c.b16 %v1595, %v1593
    %v2032 = vpack.c.b16 %v1596, %v1594
    %v2033 = vpack.c.b16 %v1599, %v1597
    %v2034 = vpack.c.b16 %v1600, %v1598
    %v2035 = vpack.c.b16 %v1603, %v1601
    %v2036 = vpack.c.b16 %v1604, %v1602
    %v2037 = vpack.c.b16 %v1607, %v1605
    %v2038 = vpack.c.b16 %v1608, %v1606
    %v2039 = vpack.c.b16 %v1611, %v1609
    %v2040 = vpack.c.b16 %v1612, %v1610
    %v2041 = vpack.c.b16 %v1615, %v1613
    %v2042 = vpack.c.b16 %v1616, %v1614
    %v2043 = vpack.c.b16 %v1619, %v1617
    %v2044 = vpack.c.b16 %v1620, %v1618
    %v2045 = vpack.c.b16 %v1623, %v1621
    %v2046 = vpack.c.b16 %v1624, %v1622
    %v2047 = vpack.c.b16 %v1627, %v1625
    %v2048 = vpack.c.b16 %v1628, %v1626
    %v2049 = vpack.c.b16 %v1631, %v1629
    %v2050 = vpack.c.b16 %v1632, %v1630
    %v2051 = vpack.c.b16 %v1635, %v1633
    %v2052 = vpack.c.b16 %v1636, %v1634
    %v2053 = vpack.c.b16 %v1639, %v1637
    %v2054 = vpack.c.b16 %v1640, %v1638
    %v2055 = vpack.c.b16 %v1643, %v1641
    %v2056 = vpack.c.b16 %v1644, %v1642
    %v2057 = vpack.c.b16 %v1647, %v1645
    %v2058 = vpack.c.b16 %v1648, %v1646
    %v2059 = vpack.c.b16 %v1651, %v1649
    %v2060 = vpack.c.b16 %v1652, %v1650
    %v2061 = vpack.c.b16 %v1655, %v1653
    %v2062 = vpack.c.b16 %v1656, %v1654
    %v2063 = vpack.c.b16 %v1659, %v1657
    %v2064 = vpack.c.b16 %v1660, %v1658
    %v2065 = vpack.c.b16 %v1663, %v1661
    %v2066 = vpack.c.b16 %v1664, %v1662
    %v2067 = vpack.c.b16 %v1667, %v1665
    %v2068 = vpack.c.b16 %v1668, %v1666
    %v2069 = vpack.c.b16 %v1671, %v1669
    %v2070 = vpack.c.b16 %v1672, %v1670
    %v2071 = vpack.c.b16 %v1675, %v1673
    %v2072 = vpack.c.b16 %v1676, %v1674
    %v2073 = vpack.c.b16 %v1679, %v1677
    %v2074 = vpack.c.b16 %v1680, %v1678
    %v2075 = vpack.c.b16 %v1683, %v1681
    %v2076 = vpack.c.b16 %v1684, %v1682
    %v2077 = vpack.c.b16 %v1687, %v1685
    %v2078 = vpack.c.b16 %v1688, %v1686
    %v2079 = vpack.c.b16 %v1691, %v1689
    %v2080 = vpack.c.b16 %v1692, %v1690
    %v2081 = vpack.c.b16 %v1695, %v1693
    %v2082 = vpack.c.b16 %v1696, %v1694
    %v2083 = vpack.c.b16 %v1699, %v1697
    %v2084 = vpack.c.b16 %v1700, %v1698
    %2469 = vmatprep.subr.bf16.mxu0 %v1716
    %2470 = vmatpush1.bf16.msra.mxu0 %v1715
    %2471 = vmatprep.subr.bf16.mxu0 %v1714
    %2472 = vmatpush1.bf16.msra.mxu0 %v1713
    %2473 = vmatprep.subr.bf16.mxu0 %v1712
    %2474 = vmatpush1.bf16.msra.mxu0 %v1711
    %2475 = vmatprep.subr.bf16.mxu0 %v1710
    %2476 = vmatpush1.bf16.msra.mxu0 %v1709
    %2477 = vmatprep.subr.bf16.mxu0 %v1708
    %2478 = vmatpush1.bf16.msra.mxu0 %v1707
    %2479 = vmatprep.subr.bf16.mxu0 %v1706
    %2480 = vmatpush1.bf16.msra.mxu0 %v1705
    %2481 = vmatprep.subr.bf16.mxu0 %v1704
    %2482 = vmatpush1.bf16.msra.mxu0 %v1703
    %2483 = vmatprep.subr.bf16.mxu0 %v1702
    %2484 = vmatpush1.bf16.msra.mxu0 %v1701
    %2485 = vmatprep.subr.bf16.mxu0 %v1732
    %2486 = vmatpush2.bf16.msra.mxu0 %v1731
    %2487 = vmatprep.subr.bf16.mxu0 %v1730
    %2488 = vmatpush2.bf16.msra.mxu0 %v1729
    %2489 = vmatprep.subr.bf16.mxu0 %v1728
    %2490 = vmatpush2.bf16.msra.mxu0 %v1727
    %2491 = vmatprep.subr.bf16.mxu0 %v1726
    %2492 = vmatpush2.bf16.msra.mxu0 %v1725
    %2493 = vmatprep.subr.bf16.mxu0 %v1724
    %2494 = vmatpush2.bf16.msra.mxu0 %v1723
    %2495 = vmatprep.subr.bf16.mxu0 %v1722
    %2496 = vmatpush2.bf16.msra.mxu0 %v1721
    %2497 = vmatprep.subr.bf16.mxu0 %v1720
    %2498 = vmatpush2.bf16.msra.mxu0 %v1719
    %2499 = vmatprep.subr.bf16.mxu0 %v1718
    %2500 = vmatpush2.bf16.msra.mxu0 %v1717
    %2501 = vmatprep.mubr.bf16.mxu0 %v502
    %2502 = vmatmul.mubr.bf16.gmra.mxu0 %v501
    %v2503 = vpop.f32.mrf.mxu0
    %v2504 = vadd.f32 %v458, %v2503
    %v2505 = vpop.f32.mrf.mxu0
    %v2506 = vadd.f32 %v462, %v2505
    %v2507 = vpop.f32.mrf.mxu0
    %v2508 = vpop.f32.mrf.mxu0
    %2509 = vdwg.mxu0
    %2510 = vmatprep.subr.bf16.mxu0 %v1748
    %2511 = vmatpush1.bf16.msra.mxu0 %v1747
    %2512 = vmatprep.subr.bf16.mxu0 %v1746
    %2513 = vmatpush1.bf16.msra.mxu0 %v1745
    %2514 = vmatprep.subr.bf16.mxu0 %v1744
    %2515 = vmatpush1.bf16.msra.mxu0 %v1743
    %2516 = vmatprep.subr.bf16.mxu0 %v1742
    %2517 = vmatpush1.bf16.msra.mxu0 %v1741
    %2518 = vmatprep.subr.bf16.mxu0 %v1740
    %2519 = vmatpush1.bf16.msra.mxu0 %v1739
    %2520 = vmatprep.subr.bf16.mxu0 %v1738
    %2521 = vmatpush1.bf16.msra.mxu0 %v1737
    %2522 = vmatprep.subr.bf16.mxu0 %v1736
    %2523 = vmatpush1.bf16.msra.mxu0 %v1735
    %2524 = vmatprep.subr.bf16.mxu0 %v1734
    %2525 = vmatpush1.bf16.msra.mxu0 %v1733
    %2526 = vmatprep.subr.bf16.mxu0 %v1764
    %2527 = vmatpush2.bf16.msra.mxu0 %v1763
    %2528 = vmatprep.subr.bf16.mxu0 %v1762
    %2529 = vmatpush2.bf16.msra.mxu0 %v1761
    %2530 = vmatprep.subr.bf16.mxu0 %v1760
    %2531 = vmatpush2.bf16.msra.mxu0 %v1759
    %2532 = vmatprep.subr.bf16.mxu0 %v1758
    %2533 = vmatpush2.bf16.msra.mxu0 %v1757
    %2534 = vmatprep.subr.bf16.mxu0 %v1756
    %2535 = vmatpush2.bf16.msra.mxu0 %v1755
    %2536 = vmatprep.subr.bf16.mxu0 %v1754
    %2537 = vmatpush2.bf16.msra.mxu0 %v1753
    %2538 = vmatprep.subr.bf16.mxu0 %v1752
    %2539 = vmatpush2.bf16.msra.mxu0 %v1751
    %2540 = vmatprep.subr.bf16.mxu0 %v1750
    %2541 = vmatpush2.bf16.msra.mxu0 %v1749
    %2542 = vmatprep.mubr.bf16.mxu0 %v504
    %2543 = vmatmul.mubr.bf16.gmra.mxu0 %v503
    %v2544 = vpop.f32.mrf.mxu0
    %v2545 = vadd.f32 %v2504, %v2544
    %v2546 = vpop.f32.mrf.mxu0
    %v2547 = vadd.f32 %v2506, %v2546
    %v2548 = vpop.f32.mrf.mxu0
    %v2549 = vpop.f32.mrf.mxu0
    %2550 = vdwg.mxu0
    %2551 = vmatprep.subr.bf16.mxu0 %v1780
    %2552 = vmatpush1.bf16.msra.mxu0 %v1779
    %2553 = vmatprep.subr.bf16.mxu0 %v1778
    %2554 = vmatpush1.bf16.msra.mxu0 %v1777
    %2555 = vmatprep.subr.bf16.mxu0 %v1776
    %2556 = vmatpush1.bf16.msra.mxu0 %v1775
    %2557 = vmatprep.subr.bf16.mxu0 %v1774
    %2558 = vmatpush1.bf16.msra.mxu0 %v1773
    %2559 = vmatprep.subr.bf16.mxu0 %v1772
    %2560 = vmatpush1.bf16.msra.mxu0 %v1771
    %2561 = vmatprep.subr.bf16.mxu0 %v1770
    %2562 = vmatpush1.bf16.msra.mxu0 %v1769
    %2563 = vmatprep.subr.bf16.mxu0 %v1768
    %2564 = vmatpush1.bf16.msra.mxu0 %v1767
    %2565 = vmatprep.subr.bf16.mxu0 %v1766
    %2566 = vmatpush1.bf16.msra.mxu0 %v1765
    %2567 = vmatprep.subr.bf16.mxu0 %v1796
    %2568 = vmatpush2.bf16.msra.mxu0 %v1795
    %2569 = vmatprep.subr.bf16.mxu0 %v1794
    %2570 = vmatpush2.bf16.msra.mxu0 %v1793
    %2571 = vmatprep.subr.bf16.mxu0 %v1792
    %2572 = vmatpush2.bf16.msra.mxu0 %v1791
    %2573 = vmatprep.subr.bf16.mxu0 %v1790
    %2574 = vmatpush2.bf16.msra.mxu0 %v1789
    %2575 = vmatprep.subr.bf16.mxu0 %v1788
    %2576 = vmatpush2.bf16.msra.mxu0 %v1787
    %2577 = vmatprep.subr.bf16.mxu0 %v1786
    %2578 = vmatpush2.bf16.msra.mxu0 %v1785
    %2579 = vmatprep.subr.bf16.mxu0 %v1784
    %2580 = vmatpush2.bf16.msra.mxu0 %v1783
    %2581 = vmatprep.subr.bf16.mxu0 %v1782
    %2582 = vmatpush2.bf16.msra.mxu0 %v1781
    %2583 = vmatprep.mubr.bf16.mxu0 %v506
    %2584 = vmatmul.mubr.bf16.gmra.mxu0 %v505
    %v2585 = vpop.f32.mrf.mxu0
    %v2586 = vadd.f32 %v2545, %v2585
    %v2587 = vpop.f32.mrf.mxu0
    %v2588 = vadd.f32 %v2547, %v2587
    %v2589 = vpop.f32.mrf.mxu0
    %v2590 = vpop.f32.mrf.mxu0
    %2591 = vdwg.mxu0
    %2592 = vmatprep.subr.bf16.mxu0 %v1812
    %2593 = vmatpush1.bf16.msra.mxu0 %v1811
    %2594 = vmatprep.subr.bf16.mxu0 %v1810
    %2595 = vmatpush1.bf16.msra.mxu0 %v1809
    %2596 = vmatprep.subr.bf16.mxu0 %v1808
    %2597 = vmatpush1.bf16.msra.mxu0 %v1807
    %2598 = vmatprep.subr.bf16.mxu0 %v1806
    %2599 = vmatpush1.bf16.msra.mxu0 %v1805
    %2600 = vmatprep.subr.bf16.mxu0 %v1804
    %2601 = vmatpush1.bf16.msra.mxu0 %v1803
    %2602 = vmatprep.subr.bf16.mxu0 %v1802
    %2603 = vmatpush1.bf16.msra.mxu0 %v1801
    %2604 = vmatprep.subr.bf16.mxu0 %v1800
    %2605 = vmatpush1.bf16.msra.mxu0 %v1799
    %2606 = vmatprep.subr.bf16.mxu0 %v1798
    %2607 = vmatpush1.bf16.msra.mxu0 %v1797
    %2608 = vmatprep.subr.bf16.mxu0 %v1828
    %2609 = vmatpush2.bf16.msra.mxu0 %v1827
    %2610 = vmatprep.subr.bf16.mxu0 %v1826
    %2611 = vmatpush2.bf16.msra.mxu0 %v1825
    %2612 = vmatprep.subr.bf16.mxu0 %v1824
    %2613 = vmatpush2.bf16.msra.mxu0 %v1823
    %2614 = vmatprep.subr.bf16.mxu0 %v1822
    %2615 = vmatpush2.bf16.msra.mxu0 %v1821
    %2616 = vmatprep.subr.bf16.mxu0 %v1820
    %2617 = vmatpush2.bf16.msra.mxu0 %v1819
    %2618 = vmatprep.subr.bf16.mxu0 %v1818
    %2619 = vmatpush2.bf16.msra.mxu0 %v1817
    %2620 = vmatprep.subr.bf16.mxu0 %v1816
    %2621 = vmatpush2.bf16.msra.mxu0 %v1815
    %2622 = vmatprep.subr.bf16.mxu0 %v1814
    %2623 = vmatpush2.bf16.msra.mxu0 %v1813
    %2624 = vmatprep.mubr.bf16.mxu0 %v508
    %2625 = vmatmul.mubr.bf16.gmra.mxu0 %v507
    %v2626 = vpop.f32.mrf.mxu0
    %v2627 = vadd.f32 %v2586, %v2626
    %v2628 = vpop.f32.mrf.mxu0
    %v2629 = vadd.f32 %v2588, %v2628
    %v2630 = vpop.f32.mrf.mxu0
    %v2631 = vpop.f32.mrf.mxu0
    %2632 = vdwg.mxu0
    %2633 = vmatprep.subr.bf16.mxu0 %v1844
    %2634 = vmatpush1.bf16.msra.mxu0 %v1843
    %2635 = vmatprep.subr.bf16.mxu0 %v1842
    %2636 = vmatpush1.bf16.msra.mxu0 %v1841
    %2637 = vmatprep.subr.bf16.mxu0 %v1840
    %2638 = vmatpush1.bf16.msra.mxu0 %v1839
    %2639 = vmatprep.subr.bf16.mxu0 %v1838
    %2640 = vmatpush1.bf16.msra.mxu0 %v1837
    %2641 = vmatprep.subr.bf16.mxu0 %v1836
    %2642 = vmatpush1.bf16.msra.mxu0 %v1835
    %2643 = vmatprep.subr.bf16.mxu0 %v1834
    %2644 = vmatpush1.bf16.msra.mxu0 %v1833
    %2645 = vmatprep.subr.bf16.mxu0 %v1832
    %2646 = vmatpush1.bf16.msra.mxu0 %v1831
    %2647 = vmatprep.subr.bf16.mxu0 %v1830
    %2648 = vmatpush1.bf16.msra.mxu0 %v1829
    %2649 = vmatprep.subr.bf16.mxu0 %v1860
    %2650 = vmatpush2.bf16.msra.mxu0 %v1859
    %2651 = vmatprep.subr.bf16.mxu0 %v1858
    %2652 = vmatpush2.bf16.msra.mxu0 %v1857
    %2653 = vmatprep.subr.bf16.mxu0 %v1856
    %2654 = vmatpush2.bf16.msra.mxu0 %v1855
    %2655 = vmatprep.subr.bf16.mxu0 %v1854
    %2656 = vmatpush2.bf16.msra.mxu0 %v1853
    %2657 = vmatprep.subr.bf16.mxu0 %v1852
    %2658 = vmatpush2.bf16.msra.mxu0 %v1851
    %2659 = vmatprep.subr.bf16.mxu0 %v1850
    %2660 = vmatpush2.bf16.msra.mxu0 %v1849
    %2661 = vmatprep.subr.bf16.mxu0 %v1848
    %2662 = vmatpush2.bf16.msra.mxu0 %v1847
    %2663 = vmatprep.subr.bf16.mxu0 %v1846
    %2664 = vmatpush2.bf16.msra.mxu0 %v1845
    %2665 = vmatprep.mubr.bf16.mxu0 %v510
    %2666 = vmatmul.mubr.bf16.gmra.mxu0 %v509
    %v2667 = vpop.f32.mrf.mxu0
    %v2668 = vadd.f32 %v2627, %v2667
    %v2669 = vpop.f32.mrf.mxu0
    %v2670 = vadd.f32 %v2629, %v2669
    %v2671 = vpop.f32.mrf.mxu0
    %v2672 = vpop.f32.mrf.mxu0
    %2673 = vdwg.mxu0
    %2674 = vmatprep.subr.bf16.mxu0 %v1876
    %2675 = vmatpush1.bf16.msra.mxu0 %v1875
    %2676 = vmatprep.subr.bf16.mxu0 %v1874
    %2677 = vmatpush1.bf16.msra.mxu0 %v1873
    %2678 = vmatprep.subr.bf16.mxu0 %v1872
    %2679 = vmatpush1.bf16.msra.mxu0 %v1871
    %2680 = vmatprep.subr.bf16.mxu0 %v1870
    %2681 = vmatpush1.bf16.msra.mxu0 %v1869
    %2682 = vmatprep.subr.bf16.mxu0 %v1868
    %2683 = vmatpush1.bf16.msra.mxu0 %v1867
    %2684 = vmatprep.subr.bf16.mxu0 %v1866
    %2685 = vmatpush1.bf16.msra.mxu0 %v1865
    %2686 = vmatprep.subr.bf16.mxu0 %v1864
    %2687 = vmatpush1.bf16.msra.mxu0 %v1863
    %2688 = vmatprep.subr.bf16.mxu0 %v1862
    %2689 = vmatpush1.bf16.msra.mxu0 %v1861
    %2690 = vmatprep.subr.bf16.mxu0 %v1892
    %2691 = vmatpush2.bf16.msra.mxu0 %v1891
    %2692 = vmatprep.subr.bf16.mxu0 %v1890
    %2693 = vmatpush2.bf16.msra.mxu0 %v1889
    %2694 = vmatprep.subr.bf16.mxu0 %v1888
    %2695 = vmatpush2.bf16.msra.mxu0 %v1887
    %2696 = vmatprep.subr.bf16.mxu0 %v1886
    %2697 = vmatpush2.bf16.msra.mxu0 %v1885
    %2698 = vmatprep.subr.bf16.mxu0 %v1884
    %2699 = vmatpush2.bf16.msra.mxu0 %v1883
    %2700 = vmatprep.subr.bf16.mxu0 %v1882
    %2701 = vmatpush2.bf16.msra.mxu0 %v1881
    %2702 = vmatprep.subr.bf16.mxu0 %v1880
    %2703 = vmatpush2.bf16.msra.mxu0 %v1879
    %2704 = vmatprep.subr.bf16.mxu0 %v1878
    %2705 = vmatpush2.bf16.msra.mxu0 %v1877
    %2706 = vmatprep.mubr.bf16.mxu0 %v512
    %2707 = vmatmul.mubr.bf16.gmra.mxu0 %v511
    %v2708 = vpop.f32.mrf.mxu0
    %v2709 = vadd.f32 %v2668, %v2708
    %v2710 = vpop.f32.mrf.mxu0
    %v2711 = vadd.f32 %v2670, %v2710
    %v2712 = vpop.f32.mrf.mxu0
    %v2713 = vpop.f32.mrf.mxu0
    %2714 = vdwg.mxu0
    %2715 = vmatprep.subr.bf16.mxu0 %v1908
    %2716 = vmatpush1.bf16.msra.mxu0 %v1907
    %2717 = vmatprep.subr.bf16.mxu0 %v1906
    %2718 = vmatpush1.bf16.msra.mxu0 %v1905
    %2719 = vmatprep.subr.bf16.mxu0 %v1904
    %2720 = vmatpush1.bf16.msra.mxu0 %v1903
    %2721 = vmatprep.subr.bf16.mxu0 %v1902
    %2722 = vmatpush1.bf16.msra.mxu0 %v1901
    %2723 = vmatprep.subr.bf16.mxu0 %v1900
    %2724 = vmatpush1.bf16.msra.mxu0 %v1899
    %2725 = vmatprep.subr.bf16.mxu0 %v1898
    %2726 = vmatpush1.bf16.msra.mxu0 %v1897
    %2727 = vmatprep.subr.bf16.mxu0 %v1896
    %2728 = vmatpush1.bf16.msra.mxu0 %v1895
    %2729 = vmatprep.subr.bf16.mxu0 %v1894
    %2730 = vmatpush1.bf16.msra.mxu0 %v1893
    %2731 = vmatprep.subr.bf16.mxu0 %v1924
    %2732 = vmatpush2.bf16.msra.mxu0 %v1923
    %2733 = vmatprep.subr.bf16.mxu0 %v1922
    %2734 = vmatpush2.bf16.msra.mxu0 %v1921
    %2735 = vmatprep.subr.bf16.mxu0 %v1920
    %2736 = vmatpush2.bf16.msra.mxu0 %v1919
    %2737 = vmatprep.subr.bf16.mxu0 %v1918
    %2738 = vmatpush2.bf16.msra.mxu0 %v1917
    %2739 = vmatprep.subr.bf16.mxu0 %v1916
    %2740 = vmatpush2.bf16.msra.mxu0 %v1915
    %2741 = vmatprep.subr.bf16.mxu0 %v1914
    %2742 = vmatpush2.bf16.msra.mxu0 %v1913
    %2743 = vmatprep.subr.bf16.mxu0 %v1912
    %2744 = vmatpush2.bf16.msra.mxu0 %v1911
    %2745 = vmatprep.subr.bf16.mxu0 %v1910
    %2746 = vmatpush2.bf16.msra.mxu0 %v1909
    %2747 = vmatprep.mubr.bf16.mxu0 %v514
    %2748 = vmatmul.mubr.bf16.gmra.mxu0 %v513
    %v2749 = vpop.f32.mrf.mxu0
    %v2750 = vadd.f32 %v2709, %v2749
    %v2751 = vpop.f32.mrf.mxu0
    %v2752 = vadd.f32 %v2711, %v2751
    %v2753 = vpop.f32.mrf.mxu0
    %v2754 = vpop.f32.mrf.mxu0
    %2755 = vdwg.mxu0
    %2756 = vmatprep.subr.bf16.mxu0 %v1940
    %2757 = vmatpush1.bf16.msra.mxu0 %v1939
    %2758 = vmatprep.subr.bf16.mxu0 %v1938
    %2759 = vmatpush1.bf16.msra.mxu0 %v1937
    %2760 = vmatprep.subr.bf16.mxu0 %v1936
    %2761 = vmatpush1.bf16.msra.mxu0 %v1935
    %2762 = vmatprep.subr.bf16.mxu0 %v1934
    %2763 = vmatpush1.bf16.msra.mxu0 %v1933
    %2764 = vmatprep.subr.bf16.mxu0 %v1932
    %2765 = vmatpush1.bf16.msra.mxu0 %v1931
    %2766 = vmatprep.subr.bf16.mxu0 %v1930
    %2767 = vmatpush1.bf16.msra.mxu0 %v1929
    %2768 = vmatprep.subr.bf16.mxu0 %v1928
    %2769 = vmatpush1.bf16.msra.mxu0 %v1927
    %2770 = vmatprep.subr.bf16.mxu0 %v1926
    %2771 = vmatpush1.bf16.msra.mxu0 %v1925
    %2772 = vmatprep.subr.bf16.mxu0 %v1956
    %2773 = vmatpush2.bf16.msra.mxu0 %v1955
    %2774 = vmatprep.subr.bf16.mxu0 %v1954
    %2775 = vmatpush2.bf16.msra.mxu0 %v1953
    %2776 = vmatprep.subr.bf16.mxu0 %v1952
    %2777 = vmatpush2.bf16.msra.mxu0 %v1951
    %2778 = vmatprep.subr.bf16.mxu0 %v1950
    %2779 = vmatpush2.bf16.msra.mxu0 %v1949
    %2780 = vmatprep.subr.bf16.mxu0 %v1948
    %2781 = vmatpush2.bf16.msra.mxu0 %v1947
    %2782 = vmatprep.subr.bf16.mxu0 %v1946
    %2783 = vmatpush2.bf16.msra.mxu0 %v1945
    %2784 = vmatprep.subr.bf16.mxu0 %v1944
    %2785 = vmatpush2.bf16.msra.mxu0 %v1943
    %2786 = vmatprep.subr.bf16.mxu0 %v1942
    %2787 = vmatpush2.bf16.msra.mxu0 %v1941
    %2788 = vmatprep.mubr.bf16.mxu0 %v516
    %2789 = vmatmul.mubr.bf16.gmra.mxu0 %v515
    %v2790 = vpop.f32.mrf.mxu0
    %v2791 = vadd.f32 %v2750, %v2790
    %v2792 = vpop.f32.mrf.mxu0
    %v2793 = vadd.f32 %v2752, %v2792
    %v2794 = vpop.f32.mrf.mxu0
    %v2795 = vpop.f32.mrf.mxu0
    %2796 = vdwg.mxu0
    %2797 = vmatprep.subr.bf16.mxu0 %v1972
    %2798 = vmatpush1.bf16.msra.mxu0 %v1971
    %2799 = vmatprep.subr.bf16.mxu0 %v1970
    %2800 = vmatpush1.bf16.msra.mxu0 %v1969
    %2801 = vmatprep.subr.bf16.mxu0 %v1968
    %2802 = vmatpush1.bf16.msra.mxu0 %v1967
    %2803 = vmatprep.subr.bf16.mxu0 %v1966
    %2804 = vmatpush1.bf16.msra.mxu0 %v1965
    %2805 = vmatprep.subr.bf16.mxu0 %v1964
    %2806 = vmatpush1.bf16.msra.mxu0 %v1963
    %2807 = vmatprep.subr.bf16.mxu0 %v1962
    %2808 = vmatpush1.bf16.msra.mxu0 %v1961
    %2809 = vmatprep.subr.bf16.mxu0 %v1960
    %2810 = vmatpush1.bf16.msra.mxu0 %v1959
    %2811 = vmatprep.subr.bf16.mxu0 %v1958
    %2812 = vmatpush1.bf16.msra.mxu0 %v1957
    %2813 = vmatprep.subr.bf16.mxu0 %v1988
    %2814 = vmatpush2.bf16.msra.mxu0 %v1987
    %2815 = vmatprep.subr.bf16.mxu0 %v1986
    %2816 = vmatpush2.bf16.msra.mxu0 %v1985
    %2817 = vmatprep.subr.bf16.mxu0 %v1984
    %2818 = vmatpush2.bf16.msra.mxu0 %v1983
    %2819 = vmatprep.subr.bf16.mxu0 %v1982
    %2820 = vmatpush2.bf16.msra.mxu0 %v1981
    %2821 = vmatprep.subr.bf16.mxu0 %v1980
    %2822 = vmatpush2.bf16.msra.mxu0 %v1979
    %2823 = vmatprep.subr.bf16.mxu0 %v1978
    %2824 = vmatpush2.bf16.msra.mxu0 %v1977
    %2825 = vmatprep.subr.bf16.mxu0 %v1976
    %2826 = vmatpush2.bf16.msra.mxu0 %v1975
    %2827 = vmatprep.subr.bf16.mxu0 %v1974
    %2828 = vmatpush2.bf16.msra.mxu0 %v1973
    %2829 = vmatprep.mubr.bf16.mxu0 %v518
    %2830 = vmatmul.mubr.bf16.gmra.mxu0 %v517
    %v2831 = vpop.f32.mrf.mxu0
    %v2832 = vadd.f32 %v2791, %v2831
    %v2833 = vpop.f32.mrf.mxu0
    %v2834 = vadd.f32 %v2793, %v2833
    %v2835 = vpop.f32.mrf.mxu0
    %v2836 = vpop.f32.mrf.mxu0
    %2837 = vdwg.mxu0
    %2838 = vmatprep.subr.bf16.mxu0 %v2004
    %2839 = vmatpush1.bf16.msra.mxu0 %v2003
    %2840 = vmatprep.subr.bf16.mxu0 %v2002
    %2841 = vmatpush1.bf16.msra.mxu0 %v2001
    %2842 = vmatprep.subr.bf16.mxu0 %v2000
    %2843 = vmatpush1.bf16.msra.mxu0 %v1999
    %2844 = vmatprep.subr.bf16.mxu0 %v1998
    %2845 = vmatpush1.bf16.msra.mxu0 %v1997
    %2846 = vmatprep.subr.bf16.mxu0 %v1996
    %2847 = vmatpush1.bf16.msra.mxu0 %v1995
    %2848 = vmatprep.subr.bf16.mxu0 %v1994
    %2849 = vmatpush1.bf16.msra.mxu0 %v1993
    %2850 = vmatprep.subr.bf16.mxu0 %v1992
    %2851 = vmatpush1.bf16.msra.mxu0 %v1991
    %2852 = vmatprep.subr.bf16.mxu0 %v1990
    %2853 = vmatpush1.bf16.msra.mxu0 %v1989
    %2854 = vmatprep.subr.bf16.mxu0 %v2020
    %2855 = vmatpush2.bf16.msra.mxu0 %v2019
    %2856 = vmatprep.subr.bf16.mxu0 %v2018
    %2857 = vmatpush2.bf16.msra.mxu0 %v2017
    %2858 = vmatprep.subr.bf16.mxu0 %v2016
    %2859 = vmatpush2.bf16.msra.mxu0 %v2015
    %2860 = vmatprep.subr.bf16.mxu0 %v2014
    %2861 = vmatpush2.bf16.msra.mxu0 %v2013
    %2862 = vmatprep.subr.bf16.mxu0 %v2012
    %2863 = vmatpush2.bf16.msra.mxu0 %v2011
    %2864 = vmatprep.subr.bf16.mxu0 %v2010
    %2865 = vmatpush2.bf16.msra.mxu0 %v2009
    %2866 = vmatprep.subr.bf16.mxu0 %v2008
    %2867 = vmatpush2.bf16.msra.mxu0 %v2007
    %2868 = vmatprep.subr.bf16.mxu0 %v2006
    %2869 = vmatpush2.bf16.msra.mxu0 %v2005
    %2870 = vmatprep.mubr.bf16.mxu0 %v520
    %2871 = vmatmul.mubr.bf16.gmra.mxu0 %v519
    %v2872 = vpop.f32.mrf.mxu0
    %v2873 = vadd.f32 %v2832, %v2872
    %v2874 = vpop.f32.mrf.mxu0
    %v2875 = vadd.f32 %v2834, %v2874
    %v2876 = vpop.f32.mrf.mxu0
    %v2877 = vpop.f32.mrf.mxu0
    %2878 = vdwg.mxu0
    %2879 = vmatprep.subr.bf16.mxu0 %v2036
    %2880 = vmatpush1.bf16.msra.mxu0 %v2035
    %2881 = vmatprep.subr.bf16.mxu0 %v2034
    %2882 = vmatpush1.bf16.msra.mxu0 %v2033
    %2883 = vmatprep.subr.bf16.mxu0 %v2032
    %2884 = vmatpush1.bf16.msra.mxu0 %v2031
    %2885 = vmatprep.subr.bf16.mxu0 %v2030
    %2886 = vmatpush1.bf16.msra.mxu0 %v2029
    %2887 = vmatprep.subr.bf16.mxu0 %v2028
    %2888 = vmatpush1.bf16.msra.mxu0 %v2027
    %2889 = vmatprep.subr.bf16.mxu0 %v2026
    %2890 = vmatpush1.bf16.msra.mxu0 %v2025
    %2891 = vmatprep.subr.bf16.mxu0 %v2024
    %2892 = vmatpush1.bf16.msra.mxu0 %v2023
    %2893 = vmatprep.subr.bf16.mxu0 %v2022
    %2894 = vmatpush1.bf16.msra.mxu0 %v2021
    %2895 = vmatprep.subr.bf16.mxu0 %v2052
    %2896 = vmatpush2.bf16.msra.mxu0 %v2051
    %2897 = vmatprep.subr.bf16.mxu0 %v2050
    %2898 = vmatpush2.bf16.msra.mxu0 %v2049
    %2899 = vmatprep.subr.bf16.mxu0 %v2048
    %2900 = vmatpush2.bf16.msra.mxu0 %v2047
    %2901 = vmatprep.subr.bf16.mxu0 %v2046
    %2902 = vmatpush2.bf16.msra.mxu0 %v2045
    %2903 = vmatprep.subr.bf16.mxu0 %v2044
    %2904 = vmatpush2.bf16.msra.mxu0 %v2043
    %2905 = vmatprep.subr.bf16.mxu0 %v2042
    %2906 = vmatpush2.bf16.msra.mxu0 %v2041
    %2907 = vmatprep.subr.bf16.mxu0 %v2040
    %2908 = vmatpush2.bf16.msra.mxu0 %v2039
    %2909 = vmatprep.subr.bf16.mxu0 %v2038
    %2910 = vmatpush2.bf16.msra.mxu0 %v2037
    %2911 = vmatprep.mubr.bf16.mxu0 %v522
    %2912 = vmatmul.mubr.bf16.gmra.mxu0 %v521
    %v2913 = vpop.f32.mrf.mxu0
    %v2914 = vadd.f32 %v2873, %v2913
    %v2915 = vpop.f32.mrf.mxu0
    %v2916 = vadd.f32 %v2875, %v2915
    %v2917 = vpop.f32.mrf.mxu0
    %v2918 = vpop.f32.mrf.mxu0
    %2919 = vdwg.mxu0
    %2920 = vmatprep.subr.bf16.mxu0 %v2068
    %2921 = vmatpush1.bf16.msra.mxu0 %v2067
    %2922 = vmatprep.subr.bf16.mxu0 %v2066
    %2923 = vmatpush1.bf16.msra.mxu0 %v2065
    %2924 = vmatprep.subr.bf16.mxu0 %v2064
    %2925 = vmatpush1.bf16.msra.mxu0 %v2063
    %2926 = vmatprep.subr.bf16.mxu0 %v2062
    %2927 = vmatpush1.bf16.msra.mxu0 %v2061
    %2928 = vmatprep.subr.bf16.mxu0 %v2060
    %2929 = vmatpush1.bf16.msra.mxu0 %v2059
    %2930 = vmatprep.subr.bf16.mxu0 %v2058
    %2931 = vmatpush1.bf16.msra.mxu0 %v2057
    %2932 = vmatprep.subr.bf16.mxu0 %v2056
    %2933 = vmatpush1.bf16.msra.mxu0 %v2055
    %2934 = vmatprep.subr.bf16.mxu0 %v2054
    %2935 = vmatpush1.bf16.msra.mxu0 %v2053
    %2936 = vmatprep.subr.bf16.mxu0 %v2084
    %2937 = vmatpush2.bf16.msra.mxu0 %v2083
    %2938 = vmatprep.subr.bf16.mxu0 %v2082
    %2939 = vmatpush2.bf16.msra.mxu0 %v2081
    %2940 = vmatprep.subr.bf16.mxu0 %v2080
    %2941 = vmatpush2.bf16.msra.mxu0 %v2079
    %2942 = vmatprep.subr.bf16.mxu0 %v2078
    %2943 = vmatpush2.bf16.msra.mxu0 %v2077
    %2944 = vmatprep.subr.bf16.mxu0 %v2076
    %2945 = vmatpush2.bf16.msra.mxu0 %v2075
    %2946 = vmatprep.subr.bf16.mxu0 %v2074
    %2947 = vmatpush2.bf16.msra.mxu0 %v2073
    %2948 = vmatprep.subr.bf16.mxu0 %v2072
    %2949 = vmatpush2.bf16.msra.mxu0 %v2071
    %2950 = vmatprep.subr.bf16.mxu0 %v2070
    %2951 = vmatpush2.bf16.msra.mxu0 %v2069
    %2952 = vmatprep.mubr.bf16.mxu0 %v524
    %2953 = vmatmul.mubr.bf16.gmra.mxu0 %v523
    %v2954 = vpop.f32.mrf.mxu0
    %v2955 = vadd.f32 %v2914, %v2954
    %v2956 = vpop.f32.mrf.mxu0
    %v2957 = vadd.f32 %v2916, %v2956
    %v2958 = vpop.f32.mrf.mxu0
    %v2959 = vpop.f32.mrf.mxu0
    %2960 = vdwg.mxu0
    %s2961 = scalar_lea.vmem %s3, 1
    %v2962 = vld [vmem:[%s2961] ss:$4 sm:$0x3]
    %s2963 = scalar_lea.vmem %s3, 2
    %v2964 = vld [vmem:[%s2963] ss:$4 sm:$0x3]
    %v2965 = vrot.slane %v2955, 4
    %v2966 = vadd.f32 %v2955, %v2965
    %v2967 = vrot.slane %v2966, 2
    %v2968 = vadd.f32 %v2966, %v2967
    %v2969 = vrot.slane %v2968, 1
    %v2970 = vadd.f32 %v2968, %v2969
    %v2971 = vrot.slane %v2957, 4
    %v2972 = vadd.f32 %v2957, %v2971
    %v2973 = vrot.slane %v2972, 2
    %v2974 = vadd.f32 %v2972, %v2973
    %v2975 = vrot.slane %v2974, 1
    %v2976 = vadd.f32 %v2974, %v2975
    %v2977 = vrcp.pop 8.0
    %v2978 = vmul.f32 %v2970, %v2977
    %v2979 = vmul.f32 %v2976, %v2977
    %v2980 = vmul.f32 %v2955, %v2955
    %v2981 = vmul.f32 %v2957, %v2957
    %v2982 = vrot.slane %v2980, 4
    %v2983 = vadd.f32 %v2980, %v2982
    %v2984 = vrot.slane %v2983, 2
    %v2985 = vadd.f32 %v2983, %v2984
    %v2986 = vrot.slane %v2985, 1
    %v2987 = vadd.f32 %v2985, %v2986
    %v2988 = vrot.slane %v2981, 4
    %v2989 = vadd.f32 %v2981, %v2988
    %v2990 = vrot.slane %v2989, 2
    %v2991 = vadd.f32 %v2989, %v2990
    %v2992 = vrot.slane %v2991, 1
    %v2993 = vadd.f32 %v2991, %v2992
    %v2994 = vmul.f32 %v2987, %v2977
    %v2995 = vmul.f32 %v2993, %v2977
    %v2996 = vmul.f32 %v2978, %v2978
    %v2997 = vmul.f32 %v2979, %v2979
    %v2998 = vsub.f32 %v2994, %v2996
    %v2999 = vsub.f32 %v2995, %v2997
    %v3000 = vmax.f32 %v2998, 0.0
    %v3001 = vmax.f32 %v2999, 0.0
    %v3002 = vadd.f32 %v3000, 1e-05
    %v3003 = vadd.f32 %v3001, 1e-05
    %v3004 = vrsqrt.pop %v3002
    %v3005 = vrsqrt.pop %v3003
    %v3008 = vcombine.low %v3004, %v3005
    %v3010 = vunpack.c.l.s4 1966171168
    %v3011 = vunpack.c.0.s8 %v3010
    %v3012 = vlaneseq
    %v3013 = vshrl.u32 %v3012, 7
    %v3014 = vsub.s32 %v3011, %v3013
    %v3015 = vrot.slane %v3008, %v3014
    %v3017 = vunpack.c.l.s4 1966171168
    %v3018 = vunpack.c.0.s8 %v3017
    %v3019 = vlaneseq
    %v3020 = vshrl.u32 %v3019, 7
    %v3021 = vsub.s32 %v3018, %v3020
    %v3022 = vrot.slane %v3015, %v3021
    %v3024 = vmul.f32 %v2962, %v3022
    %v3026 = vlaneseq
    %v3027 = vshrl.u32 %v3026, 7
    %v3028 = vsub.s32 0, %v3027
    %v3029 = vrot.slane %v3024, %v3028
    %v3030 = vlaneseq
    %v3031 = vshrl.u32 %v3030, 7
    %v3032 = vsub.s32 1, %v3031
    %v3033 = vrot.slane %v3024, %v3032
    %v3036 = vmul.f32 %v2978, %v3029
    %v3037 = vmul.f32 %v2979, %v3033
    %v3040 = vcombine.low %v3036, %v3037
    %v3042 = vunpack.c.l.s4 1966171168
    %v3043 = vunpack.c.0.s8 %v3042
    %v3044 = vlaneseq
    %v3045 = vshrl.u32 %v3044, 7
    %v3046 = vsub.s32 %v3043, %v3045
    %v3047 = vrot.slane %v3040, %v3046
    %v3049 = vunpack.c.l.s4 1966171168
    %v3050 = vunpack.c.0.s8 %v3049
    %v3051 = vlaneseq
    %v3052 = vshrl.u32 %v3051, 7
    %v3053 = vsub.s32 %v3050, %v3052
    %v3054 = vrot.slane %v3047, %v3053
    %v3056 = vsub.f32 %v2964, %v3054
    %v3057 = vmul.f32 %v2955, %v3029
    %v3058 = vmul.f32 %v2957, %v3033
    %v3060 = vlaneseq
    %v3061 = vshrl.u32 %v3060, 7
    %v3062 = vsub.s32 0, %v3061
    %v3063 = vrot.slane %v3056, %v3062
    %v3064 = vlaneseq
    %v3065 = vshrl.u32 %v3064, 7
    %v3066 = vsub.s32 1, %v3065
    %v3067 = vrot.slane %v3056, %v3066
    %v3070 = vadd.f32 %v3057, %v3063
    %v3071 = vadd.f32 %v3058, %v3067
    %v3072 = vmax.f32 %v3070, 0.0
    %v3073 = vmax.f32 %v3071, 0.0
    %v3074 = vpack.c.bf16 %v3072, %v3072
    %v3075 = vpack.c.bf16 %v3073, %v3073
    %v3076 = vld [vmem:[#allocation7] sm:$0xff]
    %v3077 = vld [vmem:[#allocation7 + $0x8] sm:$0xff]
    %v3078 = vld [vmem:[#allocation7 + $0x10] sm:$0xff]
    %v3079 = vld [vmem:[#allocation7 + $0x18] sm:$0xff]
    %v3080 = vld [vmem:[#allocation7 + $0x20] sm:$0xff]
    %v3081 = vld [vmem:[#allocation7 + $0x28] sm:$0xff]
    %v3082 = vld [vmem:[#allocation7 + $0x30] sm:$0xff]
    %v3083 = vld [vmem:[#allocation7 + $0x38] sm:$0xff]
    %v3084 = vld [vmem:[#allocation7 + $0x40] sm:$0xff]
    %v3085 = vld [vmem:[#allocation7 + $0x48] sm:$0xff]
    %v3086 = vld [vmem:[#allocation7 + $0x50] sm:$0xff]
    %v3087 = vld [vmem:[#allocation7 + $0x58] sm:$0xff]
    %v3088 = vld [vmem:[#allocation7 + $0x60] sm:$0xff]
    %v3089 = vld [vmem:[#allocation7 + $0x68] sm:$0xff]
    %v3090 = vld [vmem:[#allocation7 + $0x70] sm:$0xff]
    %v3091 = vld [vmem:[#allocation7 + $0x78] sm:$0xff]
    %v3092 = vld [vmem:[#allocation7 + $0x80] sm:$0xff]
    %v3093 = vld [vmem:[#allocation7 + $0x88] sm:$0xff]
    %v3094 = vld [vmem:[#allocation7 + $0x90] sm:$0xff]
    %v3095 = vld [vmem:[#allocation7 + $0x98] sm:$0xff]
    %v3096 = vld [vmem:[#allocation7 + $0xa0] sm:$0xff]
    %v3097 = vld [vmem:[#allocation7 + $0xa8] sm:$0xff]
    %v3098 = vld [vmem:[#allocation7 + $0xb0] sm:$0xff]
    %v3099 = vld [vmem:[#allocation7 + $0xb8] sm:$0xff]
    %v3100 = vld [vmem:[#allocation7 + $0xc0] sm:$0xff]
    %v3101 = vld [vmem:[#allocation7 + $0xc8] sm:$0xff]
    %v3102 = vld [vmem:[#allocation7 + $0xd0] sm:$0xff]
    %v3103 = vld [vmem:[#allocation7 + $0xd8] sm:$0xff]
    %v3104 = vld [vmem:[#allocation7 + $0xe0] sm:$0xff]
    %v3105 = vld [vmem:[#allocation7 + $0xe8] sm:$0xff]
    %v3106 = vld [vmem:[#allocation7 + $0xf0] sm:$0xff]
    %v3107 = vld [vmem:[#allocation7 + $0xf8] sm:$0xff]
    %s3108 = scalar_lea.vmem %s3, 8
    %v3109 = vld [vmem:[%s3108] ss:$4 sm:$0x3]
    %v3111 = vlaneseq
    %v3112 = vshrl.u32 %v3111, 7
    %v3113 = vsub.s32 0, %v3112
    %v3114 = vrot.slane %v3109, %v3113
    %v3115 = vlaneseq
    %v3116 = vshrl.u32 %v3115, 7
    %v3117 = vsub.s32 1, %v3116
    %v3118 = vrot.slane %v3109, %v3117
    %v3153 = vunpack.c.l.b16 %v3076
    %v3154 = vunpack.c.h.b16 %v3076
    %v3155 = vunpack.c.l.b16 %v3077
    %v3156 = vunpack.c.h.b16 %v3077
    %v3157 = vunpack.c.l.b16 %v3078
    %v3158 = vunpack.c.h.b16 %v3078
    %v3159 = vunpack.c.l.b16 %v3079
    %v3160 = vunpack.c.h.b16 %v3079
    %v3161 = vunpack.c.l.b16 %v3080
    %v3162 = vunpack.c.h.b16 %v3080
    %v3163 = vunpack.c.l.b16 %v3081
    %v3164 = vunpack.c.h.b16 %v3081
    %v3165 = vunpack.c.l.b16 %v3082
    %v3166 = vunpack.c.h.b16 %v3082
    %v3167 = vunpack.c.l.b16 %v3083
    %v3168 = vunpack.c.h.b16 %v3083
    %v3169 = vunpack.c.l.b16 %v3084
    %v3170 = vunpack.c.h.b16 %v3084
    %v3171 = vunpack.c.l.b16 %v3085
    %v3172 = vunpack.c.h.b16 %v3085
    %v3173 = vunpack.c.l.b16 %v3086
    %v3174 = vunpack.c.h.b16 %v3086
    %v3175 = vunpack.c.l.b16 %v3087
    %v3176 = vunpack.c.h.b16 %v3087
    %v3177 = vunpack.c.l.b16 %v3088
    %v3178 = vunpack.c.h.b16 %v3088
    %v3179 = vunpack.c.l.b16 %v3089
    %v3180 = vunpack.c.h.b16 %v3089
    %v3181 = vunpack.c.l.b16 %v3090
    %v3182 = vunpack.c.h.b16 %v3090
    %v3183 = vunpack.c.l.b16 %v3091
    %v3184 = vunpack.c.h.b16 %v3091
    %v3185 = vunpack.c.l.b16 %v3092
    %v3186 = vunpack.c.h.b16 %v3092
    %v3187 = vunpack.c.l.b16 %v3093
    %v3188 = vunpack.c.h.b16 %v3093
    %v3189 = vunpack.c.l.b16 %v3094
    %v3190 = vunpack.c.h.b16 %v3094
    %v3191 = vunpack.c.l.b16 %v3095
    %v3192 = vunpack.c.h.b16 %v3095
    %v3193 = vunpack.c.l.b16 %v3096
    %v3194 = vunpack.c.h.b16 %v3096
    %v3195 = vunpack.c.l.b16 %v3097
    %v3196 = vunpack.c.h.b16 %v3097
    %v3197 = vunpack.c.l.b16 %v3098
    %v3198 = vunpack.c.h.b16 %v3098
    %v3199 = vunpack.c.l.b16 %v3099
    %v3200 = vunpack.c.h.b16 %v3099
    %v3201 = vunpack.c.l.b16 %v3100
    %v3202 = vunpack.c.h.b16 %v3100
    %v3203 = vunpack.c.l.b16 %v3101
    %v3204 = vunpack.c.h.b16 %v3101
    %v3205 = vunpack.c.l.b16 %v3102
    %v3206 = vunpack.c.h.b16 %v3102
    %v3207 = vunpack.c.l.b16 %v3103
    %v3208 = vunpack.c.h.b16 %v3103
    %v3209 = vunpack.c.l.b16 %v3104
    %v3210 = vunpack.c.h.b16 %v3104
    %v3211 = vunpack.c.l.b16 %v3105
    %v3212 = vunpack.c.h.b16 %v3105
    %v3213 = vunpack.c.l.b16 %v3106
    %v3214 = vunpack.c.h.b16 %v3106
    %v3215 = vunpack.c.l.b16 %v3107
    %v3216 = vunpack.c.h.b16 %v3107
    %v3217 = vpack.c.b16 %v3155, %v3153
    %v3218 = vpack.c.b16 %v3156, %v3154
    %v3219 = vpack.c.b16 %v3159, %v3157
    %v3220 = vpack.c.b16 %v3160, %v3158
    %v3221 = vpack.c.b16 %v3163, %v3161
    %v3222 = vpack.c.b16 %v3164, %v3162
    %v3223 = vpack.c.b16 %v3167, %v3165
    %v3224 = vpack.c.b16 %v3168, %v3166
    %v3225 = vpack.c.b16 %v3171, %v3169
    %v3226 = vpack.c.b16 %v3172, %v3170
    %v3227 = vpack.c.b16 %v3175, %v3173
    %v3228 = vpack.c.b16 %v3176, %v3174
    %v3229 = vpack.c.b16 %v3179, %v3177
    %v3230 = vpack.c.b16 %v3180, %v3178
    %v3231 = vpack.c.b16 %v3183, %v3181
    %v3232 = vpack.c.b16 %v3184, %v3182
    %v3233 = vpack.c.b16 %v3187, %v3185
    %v3234 = vpack.c.b16 %v3188, %v3186
    %v3235 = vpack.c.b16 %v3191, %v3189
    %v3236 = vpack.c.b16 %v3192, %v3190
    %v3237 = vpack.c.b16 %v3195, %v3193
    %v3238 = vpack.c.b16 %v3196, %v3194
    %v3239 = vpack.c.b16 %v3199, %v3197
    %v3240 = vpack.c.b16 %v3200, %v3198
    %v3241 = vpack.c.b16 %v3203, %v3201
    %v3242 = vpack.c.b16 %v3204, %v3202
    %v3243 = vpack.c.b16 %v3207, %v3205
    %v3244 = vpack.c.b16 %v3208, %v3206
    %v3245 = vpack.c.b16 %v3211, %v3209
    %v3246 = vpack.c.b16 %v3212, %v3210
    %v3247 = vpack.c.b16 %v3215, %v3213
    %v3248 = vpack.c.b16 %v3216, %v3214
    %3281 = vmatprep.subr.bf16.mxu0 %v3232
    %3282 = vmatpush1.bf16.msra.mxu0 %v3231
    %3283 = vmatprep.subr.bf16.mxu0 %v3230
    %3284 = vmatpush1.bf16.msra.mxu0 %v3229
    %3285 = vmatprep.subr.bf16.mxu0 %v3228
    %3286 = vmatpush1.bf16.msra.mxu0 %v3227
    %3287 = vmatprep.subr.bf16.mxu0 %v3226
    %3288 = vmatpush1.bf16.msra.mxu0 %v3225
    %3289 = vmatprep.subr.bf16.mxu0 %v3224
    %3290 = vmatpush1.bf16.msra.mxu0 %v3223
    %3291 = vmatprep.subr.bf16.mxu0 %v3222
    %3292 = vmatpush1.bf16.msra.mxu0 %v3221
    %3293 = vmatprep.subr.bf16.mxu0 %v3220
    %3294 = vmatpush1.bf16.msra.mxu0 %v3219
    %3295 = vmatprep.subr.bf16.mxu0 %v3218
    %3296 = vmatpush1.bf16.msra.mxu0 %v3217
    %3297 = vmatprep.subr.bf16.mxu0 %v3248
    %3298 = vmatpush2.bf16.msra.mxu0 %v3247
    %3299 = vmatprep.subr.bf16.mxu0 %v3246
    %3300 = vmatpush2.bf16.msra.mxu0 %v3245
    %3301 = vmatprep.subr.bf16.mxu0 %v3244
    %3302 = vmatpush2.bf16.msra.mxu0 %v3243
    %3303 = vmatprep.subr.bf16.mxu0 %v3242
    %3304 = vmatpush2.bf16.msra.mxu0 %v3241
    %3305 = vmatprep.subr.bf16.mxu0 %v3240
    %3306 = vmatpush2.bf16.msra.mxu0 %v3239
    %3307 = vmatprep.subr.bf16.mxu0 %v3238
    %3308 = vmatpush2.bf16.msra.mxu0 %v3237
    %3309 = vmatprep.subr.bf16.mxu0 %v3236
    %3310 = vmatpush2.bf16.msra.mxu0 %v3235
    %3311 = vmatprep.subr.bf16.mxu0 %v3234
    %3312 = vmatpush2.bf16.msra.mxu0 %v3233
    %3313 = vmatprep.mubr.bf16.mxu0 %v3075
    %3314 = vmatmul.mubr.bf16.gmra.mxu0 %v3074
    %v3315 = vpop.f32.mrf.mxu0
    %v3316 = vadd.f32 %v3114, %v3315
    %v3317 = vpop.f32.mrf.mxu0
    %v3318 = vadd.f32 %v3118, %v3317
    %v3319 = vpop.f32.mrf.mxu0
    %v3320 = vpop.f32.mrf.mxu0
    %3321 = vdwg.mxu0
    %s3322 = scalar_lea.vmem %s3108, 1
    %v3323 = vld [vmem:[%s3322] ss:$4 sm:$0x3]
    %s3324 = scalar_lea.vmem %s3108, 2
    %v3325 = vld [vmem:[%s3324] ss:$4 sm:$0x3]
    %v3326 = vrot.slane %v3316, 4
    %v3327 = vadd.f32 %v3316, %v3326
    %v3328 = vrot.slane %v3327, 2
    %v3329 = vadd.f32 %v3327, %v3328
    %v3330 = vrot.slane %v3329, 1
    %v3331 = vadd.f32 %v3329, %v3330
    %v3332 = vrot.slane %v3318, 4
    %v3333 = vadd.f32 %v3318, %v3332
    %v3334 = vrot.slane %v3333, 2
    %v3335 = vadd.f32 %v3333, %v3334
    %v3336 = vrot.slane %v3335, 1
    %v3337 = vadd.f32 %v3335, %v3336
    %v3338 = vmul.f32 %v3331, %v2977
    %v3339 = vmul.f32 %v3337, %v2977
    %v3340 = vmul.f32 %v3316, %v3316
    %v3341 = vmul.f32 %v3318, %v3318
    %v3342 = vrot.slane %v3340, 4
    %v3343 = vadd.f32 %v3340, %v3342
    %v3344 = vrot.slane %v3343, 2
    %v3345 = vadd.f32 %v3343, %v3344
    %v3346 = vrot.slane %v3345, 1
    %v3347 = vadd.f32 %v3345, %v3346
    %v3348 = vrot.slane %v3341, 4
    %v3349 = vadd.f32 %v3341, %v3348
    %v3350 = vrot.slane %v3349, 2
    %v3351 = vadd.f32 %v3349, %v3350
    %v3352 = vrot.slane %v3351, 1
    %v3353 = vadd.f32 %v3351, %v3352
    %v3354 = vmul.f32 %v3347, %v2977
    %v3355 = vmul.f32 %v3353, %v2977
    %v3356 = vmul.f32 %v3338, %v3338
    %v3357 = vmul.f32 %v3339, %v3339
    %v3358 = vsub.f32 %v3354, %v3356
    %v3359 = vsub.f32 %v3355, %v3357
    %v3360 = vmax.f32 %v3358, 0.0
    %v3361 = vmax.f32 %v3359, 0.0
    %v3362 = vadd.f32 %v3360, 1e-05
    %v3363 = vadd.f32 %v3361, 1e-05
    %v3364 = vrsqrt.pop %v3362
    %v3365 = vrsqrt.pop %v3363
    %v3368 = vcombine.low %v3364, %v3365
    %v3370 = vunpack.c.l.s4 1966171168
    %v3371 = vunpack.c.0.s8 %v3370
    %v3372 = vlaneseq
    %v3373 = vshrl.u32 %v3372, 7
    %v3374 = vsub.s32 %v3371, %v3373
    %v3375 = vrot.slane %v3368, %v3374
    %v3377 = vunpack.c.l.s4 1966171168
    %v3378 = vunpack.c.0.s8 %v3377
    %v3379 = vlaneseq
    %v3380 = vshrl.u32 %v3379, 7
    %v3381 = vsub.s32 %v3378, %v3380
    %v3382 = vrot.slane %v3375, %v3381
    %v3384 = vmul.f32 %v3323, %v3382
    %v3386 = vlaneseq
    %v3387 = vshrl.u32 %v3386, 7
    %v3388 = vsub.s32 0, %v3387
    %v3389 = vrot.slane %v3384, %v3388
    %v3390 = vlaneseq
    %v3391 = vshrl.u32 %v3390, 7
    %v3392 = vsub.s32 1, %v3391
    %v3393 = vrot.slane %v3384, %v3392
    %v3396 = vmul.f32 %v3338, %v3389
    %v3397 = vmul.f32 %v3339, %v3393
    %v3400 = vcombine.low %v3396, %v3397
    %v3402 = vunpack.c.l.s4 1966171168
    %v3403 = vunpack.c.0.s8 %v3402
    %v3404 = vlaneseq
    %v3405 = vshrl.u32 %v3404, 7
    %v3406 = vsub.s32 %v3403, %v3405
    %v3407 = vrot.slane %v3400, %v3406
    %v3409 = vunpack.c.l.s4 1966171168
    %v3410 = vunpack.c.0.s8 %v3409
    %v3411 = vlaneseq
    %v3412 = vshrl.u32 %v3411, 7
    %v3413 = vsub.s32 %v3410, %v3412
    %v3414 = vrot.slane %v3407, %v3413
    %v3416 = vsub.f32 %v3325, %v3414
    %v3417 = vmul.f32 %v3316, %v3389
    %v3418 = vmul.f32 %v3318, %v3393
    %v3420 = vlaneseq
    %v3421 = vshrl.u32 %v3420, 7
    %v3422 = vsub.s32 0, %v3421
    %v3423 = vrot.slane %v3416, %v3422
    %v3424 = vlaneseq
    %v3425 = vshrl.u32 %v3424, 7
    %v3426 = vsub.s32 1, %v3425
    %v3427 = vrot.slane %v3416, %v3426
    %v3430 = vadd.f32 %v3417, %v3423
    %v3431 = vadd.f32 %v3418, %v3427
    %v3432 = vmax.f32 %v3430, 0.0
    %v3433 = vmax.f32 %v3431, 0.0
    %v3434 = vpack.c.bf16 %v3432, %v3432
    %v3435 = vpack.c.bf16 %v3433, %v3433
    %s3436 = scalar_lea.vmem [#allocation7], 256
    %v3437 = vld [vmem:[%s3436] sm:$0xff]
    %v3438 = vld [vmem:[%s3436 + $0x8] sm:$0xff]
    %v3439 = vld [vmem:[%s3436 + $0x10] sm:$0xff]
    %v3440 = vld [vmem:[%s3436 + $0x18] sm:$0xff]
    %v3441 = vld [vmem:[%s3436 + $0x20] sm:$0xff]
    %v3442 = vld [vmem:[%s3436 + $0x28] sm:$0xff]
    %v3443 = vld [vmem:[%s3436 + $0x30] sm:$0xff]
    %v3444 = vld [vmem:[%s3436 + $0x38] sm:$0xff]
    %v3445 = vld [vmem:[%s3436 + $0x40] sm:$0xff]
    %v3446 = vld [vmem:[%s3436 + $0x48] sm:$0xff]
    %v3447 = vld [vmem:[%s3436 + $0x50] sm:$0xff]
    %v3448 = vld [vmem:[%s3436 + $0x58] sm:$0xff]
    %v3449 = vld [vmem:[%s3436 + $0x60] sm:$0xff]
    %v3450 = vld [vmem:[%s3436 + $0x68] sm:$0xff]
    %v3451 = vld [vmem:[%s3436 + $0x70] sm:$0xff]
    %v3452 = vld [vmem:[%s3436 + $0x78] sm:$0xff]
    %v3453 = vld [vmem:[%s3436 + $0x80] sm:$0xff]
    %v3454 = vld [vmem:[%s3436 + $0x88] sm:$0xff]
    %v3455 = vld [vmem:[%s3436 + $0x90] sm:$0xff]
    %v3456 = vld [vmem:[%s3436 + $0x98] sm:$0xff]
    %v3457 = vld [vmem:[%s3436 + $0xa0] sm:$0xff]
    %v3458 = vld [vmem:[%s3436 + $0xa8] sm:$0xff]
    %v3459 = vld [vmem:[%s3436 + $0xb0] sm:$0xff]
    %v3460 = vld [vmem:[%s3436 + $0xb8] sm:$0xff]
    %v3461 = vld [vmem:[%s3436 + $0xc0] sm:$0xff]
    %v3462 = vld [vmem:[%s3436 + $0xc8] sm:$0xff]
    %v3463 = vld [vmem:[%s3436 + $0xd0] sm:$0xff]
    %v3464 = vld [vmem:[%s3436 + $0xd8] sm:$0xff]
    %v3465 = vld [vmem:[%s3436 + $0xe0] sm:$0xff]
    %v3466 = vld [vmem:[%s3436 + $0xe8] sm:$0xff]
    %v3467 = vld [vmem:[%s3436 + $0xf0] sm:$0xff]
    %v3468 = vld [vmem:[%s3436 + $0xf8] sm:$0xff]
    %s3469 = scalar_lea.vmem %s3, 16
    %v3470 = vld [vmem:[%s3469] ss:$4 sm:$0x3]
    %v3472 = vlaneseq
    %v3473 = vshrl.u32 %v3472, 7
    %v3474 = vsub.s32 0, %v3473
    %v3475 = vrot.slane %v3470, %v3474
    %v3476 = vlaneseq
    %v3477 = vshrl.u32 %v3476, 7
    %v3478 = vsub.s32 1, %v3477
    %v3479 = vrot.slane %v3470, %v3478
    %v3514 = vunpack.c.l.b16 %v3437
    %v3515 = vunpack.c.h.b16 %v3437
    %v3516 = vunpack.c.l.b16 %v3438
    %v3517 = vunpack.c.h.b16 %v3438
    %v3518 = vunpack.c.l.b16 %v3439
    %v3519 = vunpack.c.h.b16 %v3439
    %v3520 = vunpack.c.l.b16 %v3440
    %v3521 = vunpack.c.h.b16 %v3440
    %v3522 = vunpack.c.l.b16 %v3441
    %v3523 = vunpack.c.h.b16 %v3441
    %v3524 = vunpack.c.l.b16 %v3442
    %v3525 = vunpack.c.h.b16 %v3442
    %v3526 = vunpack.c.l.b16 %v3443
    %v3527 = vunpack.c.h.b16 %v3443
    %v3528 = vunpack.c.l.b16 %v3444
    %v3529 = vunpack.c.h.b16 %v3444
    %v3530 = vunpack.c.l.b16 %v3445
    %v3531 = vunpack.c.h.b16 %v3445
    %v3532 = vunpack.c.l.b16 %v3446
    %v3533 = vunpack.c.h.b16 %v3446
    %v3534 = vunpack.c.l.b16 %v3447
    %v3535 = vunpack.c.h.b16 %v3447
    %v3536 = vunpack.c.l.b16 %v3448
    %v3537 = vunpack.c.h.b16 %v3448
    %v3538 = vunpack.c.l.b16 %v3449
    %v3539 = vunpack.c.h.b16 %v3449
    %v3540 = vunpack.c.l.b16 %v3450
    %v3541 = vunpack.c.h.b16 %v3450
    %v3542 = vunpack.c.l.b16 %v3451
    %v3543 = vunpack.c.h.b16 %v3451
    %v3544 = vunpack.c.l.b16 %v3452
    %v3545 = vunpack.c.h.b16 %v3452
    %v3546 = vunpack.c.l.b16 %v3453
    %v3547 = vunpack.c.h.b16 %v3453
    %v3548 = vunpack.c.l.b16 %v3454
    %v3549 = vunpack.c.h.b16 %v3454
    %v3550 = vunpack.c.l.b16 %v3455
    %v3551 = vunpack.c.h.b16 %v3455
    %v3552 = vunpack.c.l.b16 %v3456
    %v3553 = vunpack.c.h.b16 %v3456
    %v3554 = vunpack.c.l.b16 %v3457
    %v3555 = vunpack.c.h.b16 %v3457
    %v3556 = vunpack.c.l.b16 %v3458
    %v3557 = vunpack.c.h.b16 %v3458
    %v3558 = vunpack.c.l.b16 %v3459
    %v3559 = vunpack.c.h.b16 %v3459
    %v3560 = vunpack.c.l.b16 %v3460
    %v3561 = vunpack.c.h.b16 %v3460
    %v3562 = vunpack.c.l.b16 %v3461
    %v3563 = vunpack.c.h.b16 %v3461
    %v3564 = vunpack.c.l.b16 %v3462
    %v3565 = vunpack.c.h.b16 %v3462
    %v3566 = vunpack.c.l.b16 %v3463
    %v3567 = vunpack.c.h.b16 %v3463
    %v3568 = vunpack.c.l.b16 %v3464
    %v3569 = vunpack.c.h.b16 %v3464
    %v3570 = vunpack.c.l.b16 %v3465
    %v3571 = vunpack.c.h.b16 %v3465
    %v3572 = vunpack.c.l.b16 %v3466
    %v3573 = vunpack.c.h.b16 %v3466
    %v3574 = vunpack.c.l.b16 %v3467
    %v3575 = vunpack.c.h.b16 %v3467
    %v3576 = vunpack.c.l.b16 %v3468
    %v3577 = vunpack.c.h.b16 %v3468
    %v3578 = vpack.c.b16 %v3516, %v3514
    %v3579 = vpack.c.b16 %v3517, %v3515
    %v3580 = vpack.c.b16 %v3520, %v3518
    %v3581 = vpack.c.b16 %v3521, %v3519
    %v3582 = vpack.c.b16 %v3524, %v3522
    %v3583 = vpack.c.b16 %v3525, %v3523
    %v3584 = vpack.c.b16 %v3528, %v3526
    %v3585 = vpack.c.b16 %v3529, %v3527
    %v3586 = vpack.c.b16 %v3532, %v3530
    %v3587 = vpack.c.b16 %v3533, %v3531
    %v3588 = vpack.c.b16 %v3536, %v3534
    %v3589 = vpack.c.b16 %v3537, %v3535
    %v3590 = vpack.c.b16 %v3540, %v3538
    %v3591 = vpack.c.b16 %v3541, %v3539
    %v3592 = vpack.c.b16 %v3544, %v3542
    %v3593 = vpack.c.b16 %v3545, %v3543
    %v3594 = vpack.c.b16 %v3548, %v3546
    %v3595 = vpack.c.b16 %v3549, %v3547
    %v3596 = vpack.c.b16 %v3552, %v3550
    %v3597 = vpack.c.b16 %v3553, %v3551
    %v3598 = vpack.c.b16 %v3556, %v3554
    %v3599 = vpack.c.b16 %v3557, %v3555
    %v3600 = vpack.c.b16 %v3560, %v3558
    %v3601 = vpack.c.b16 %v3561, %v3559
    %v3602 = vpack.c.b16 %v3564, %v3562
    %v3603 = vpack.c.b16 %v3565, %v3563
    %v3604 = vpack.c.b16 %v3568, %v3566
    %v3605 = vpack.c.b16 %v3569, %v3567
    %v3606 = vpack.c.b16 %v3572, %v3570
    %v3607 = vpack.c.b16 %v3573, %v3571
    %v3608 = vpack.c.b16 %v3576, %v3574
    %v3609 = vpack.c.b16 %v3577, %v3575
    %3642 = vmatprep.subr.bf16.mxu0 %v3593
    %3643 = vmatpush1.bf16.msra.mxu0 %v3592
    %3644 = vmatprep.subr.bf16.mxu0 %v3591
    %3645 = vmatpush1.bf16.msra.mxu0 %v3590
    %3646 = vmatprep.subr.bf16.mxu0 %v3589
    %3647 = vmatpush1.bf16.msra.mxu0 %v3588
    %3648 = vmatprep.subr.bf16.mxu0 %v3587
    %3649 = vmatpush1.bf16.msra.mxu0 %v3586
    %3650 = vmatprep.subr.bf16.mxu0 %v3585
    %3651 = vmatpush1.bf16.msra.mxu0 %v3584
    %3652 = vmatprep.subr.bf16.mxu0 %v3583
    %3653 = vmatpush1.bf16.msra.mxu0 %v3582
    %3654 = vmatprep.subr.bf16.mxu0 %v3581
    %3655 = vmatpush1.bf16.msra.mxu0 %v3580
    %3656 = vmatprep.subr.bf16.mxu0 %v3579
    %3657 = vmatpush1.bf16.msra.mxu0 %v3578
    %3658 = vmatprep.subr.bf16.mxu0 %v3609
    %3659 = vmatpush2.bf16.msra.mxu0 %v3608
    %3660 = vmatprep.subr.bf16.mxu0 %v3607
    %3661 = vmatpush2.bf16.msra.mxu0 %v3606
    %3662 = vmatprep.subr.bf16.mxu0 %v3605
    %3663 = vmatpush2.bf16.msra.mxu0 %v3604
    %3664 = vmatprep.subr.bf16.mxu0 %v3603
    %3665 = vmatpush2.bf16.msra.mxu0 %v3602
    %3666 = vmatprep.subr.bf16.mxu0 %v3601
    %3667 = vmatpush2.bf16.msra.mxu0 %v3600
    %3668 = vmatprep.subr.bf16.mxu0 %v3599
    %3669 = vmatpush2.bf16.msra.mxu0 %v3598
    %3670 = vmatprep.subr.bf16.mxu0 %v3597
    %3671 = vmatpush2.bf16.msra.mxu0 %v3596
    %3672 = vmatprep.subr.bf16.mxu0 %v3595
    %3673 = vmatpush2.bf16.msra.mxu0 %v3594
    %3674 = vmatprep.mubr.bf16.mxu0 %v3435
    %3675 = vmatmul.mubr.bf16.gmra.mxu0 %v3434
    %v3676 = vpop.f32.mrf.mxu0
    %v3677 = vadd.f32 %v3475, %v3676
    %v3678 = vpop.f32.mrf.mxu0
    %v3679 = vadd.f32 %v3479, %v3678
    %v3680 = vpop.f32.mrf.mxu0
    %v3681 = vpop.f32.mrf.mxu0
    %3682 = vdwg.mxu0
    %s3683 = scalar_lea.vmem %s3469, 1
    %v3684 = vld [vmem:[%s3683] ss:$4 sm:$0x3]
    %s3685 = scalar_lea.vmem %s3469, 2
    %v3686 = vld [vmem:[%s3685] ss:$4 sm:$0x3]
    %v3687 = vrot.slane %v3677, 4
    %v3688 = vadd.f32 %v3677, %v3687
    %v3689 = vrot.slane %v3688, 2
    %v3690 = vadd.f32 %v3688, %v3689
    %v3691 = vrot.slane %v3690, 1
    %v3692 = vadd.f32 %v3690, %v3691
    %v3693 = vrot.slane %v3679, 4
    %v3694 = vadd.f32 %v3679, %v3693
    %v3695 = vrot.slane %v3694, 2
    %v3696 = vadd.f32 %v3694, %v3695
    %v3697 = vrot.slane %v3696, 1
    %v3698 = vadd.f32 %v3696, %v3697
    %v3699 = vmul.f32 %v3692, %v2977
    %v3700 = vmul.f32 %v3698, %v2977
    %v3701 = vmul.f32 %v3677, %v3677
    %v3702 = vmul.f32 %v3679, %v3679
    %v3703 = vrot.slane %v3701, 4
    %v3704 = vadd.f32 %v3701, %v3703
    %v3705 = vrot.slane %v3704, 2
    %v3706 = vadd.f32 %v3704, %v3705
    %v3707 = vrot.slane %v3706, 1
    %v3708 = vadd.f32 %v3706, %v3707
    %v3709 = vrot.slane %v3702, 4
    %v3710 = vadd.f32 %v3702, %v3709
    %v3711 = vrot.slane %v3710, 2
    %v3712 = vadd.f32 %v3710, %v3711
    %v3713 = vrot.slane %v3712, 1
    %v3714 = vadd.f32 %v3712, %v3713
    %v3715 = vmul.f32 %v3708, %v2977
    %v3716 = vmul.f32 %v3714, %v2977
    %v3717 = vmul.f32 %v3699, %v3699
    %v3718 = vmul.f32 %v3700, %v3700
    %v3719 = vsub.f32 %v3715, %v3717
    %v3720 = vsub.f32 %v3716, %v3718
    %v3721 = vmax.f32 %v3719, 0.0
    %v3722 = vmax.f32 %v3720, 0.0
    %v3723 = vadd.f32 %v3721, 1e-05
    %v3724 = vadd.f32 %v3722, 1e-05
    %v3725 = vrsqrt.pop %v3723
    %v3726 = vrsqrt.pop %v3724
    %v3729 = vcombine.low %v3725, %v3726
    %v3731 = vunpack.c.l.s4 1966171168
    %v3732 = vunpack.c.0.s8 %v3731
    %v3733 = vlaneseq
    %v3734 = vshrl.u32 %v3733, 7
    %v3735 = vsub.s32 %v3732, %v3734
    %v3736 = vrot.slane %v3729, %v3735
    %v3738 = vunpack.c.l.s4 1966171168
    %v3739 = vunpack.c.0.s8 %v3738
    %v3740 = vlaneseq
    %v3741 = vshrl.u32 %v3740, 7
    %v3742 = vsub.s32 %v3739, %v3741
    %v3743 = vrot.slane %v3736, %v3742
    %v3745 = vmul.f32 %v3684, %v3743
    %v3747 = vlaneseq
    %v3748 = vshrl.u32 %v3747, 7
    %v3749 = vsub.s32 0, %v3748
    %v3750 = vrot.slane %v3745, %v3749
    %v3751 = vlaneseq
    %v3752 = vshrl.u32 %v3751, 7
    %v3753 = vsub.s32 1, %v3752
    %v3754 = vrot.slane %v3745, %v3753
    %v3757 = vmul.f32 %v3699, %v3750
    %v3758 = vmul.f32 %v3700, %v3754
    %v3761 = vcombine.low %v3757, %v3758
    %v3763 = vunpack.c.l.s4 1966171168
    %v3764 = vunpack.c.0.s8 %v3763
    %v3765 = vlaneseq
    %v3766 = vshrl.u32 %v3765, 7
    %v3767 = vsub.s32 %v3764, %v3766
    %v3768 = vrot.slane %v3761, %v3767
    %v3770 = vunpack.c.l.s4 1966171168
    %v3771 = vunpack.c.0.s8 %v3770
    %v3772 = vlaneseq
    %v3773 = vshrl.u32 %v3772, 7
    %v3774 = vsub.s32 %v3771, %v3773
    %v3775 = vrot.slane %v3768, %v3774
    %v3777 = vsub.f32 %v3686, %v3775
    %v3778 = vmul.f32 %v3677, %v3750
    %v3779 = vmul.f32 %v3679, %v3754
    %v3781 = vlaneseq
    %v3782 = vshrl.u32 %v3781, 7
    %v3783 = vsub.s32 0, %v3782
    %v3784 = vrot.slane %v3777, %v3783
    %v3785 = vlaneseq
    %v3786 = vshrl.u32 %v3785, 7
    %v3787 = vsub.s32 1, %v3786
    %v3788 = vrot.slane %v3777, %v3787
    %v3791 = vadd.f32 %v3778, %v3784
    %v3792 = vadd.f32 %v3779, %v3788
    %v3793 = vmax.f32 %v3791, 0.0
    %v3794 = vmax.f32 %v3792, 0.0
    %v3795 = vpack.c.bf16 %v3793, %v3793
    %v3796 = vpack.c.bf16 %v3794, %v3794
    %s3797 = scalar_lea.vmem [#allocation7], 512
    %v3798 = vld [vmem:[%s3797] sm:$0xff]
    %v3799 = vld [vmem:[%s3797 + $0x8] sm:$0xff]
    %v3800 = vld [vmem:[%s3797 + $0x10] sm:$0xff]
    %v3801 = vld [vmem:[%s3797 + $0x18] sm:$0xff]
    %v3802 = vld [vmem:[%s3797 + $0x20] sm:$0xff]
    %v3803 = vld [vmem:[%s3797 + $0x28] sm:$0xff]
    %v3804 = vld [vmem:[%s3797 + $0x30] sm:$0xff]
    %v3805 = vld [vmem:[%s3797 + $0x38] sm:$0xff]
    %v3806 = vld [vmem:[%s3797 + $0x40] sm:$0xff]
    %v3807 = vld [vmem:[%s3797 + $0x48] sm:$0xff]
    %v3808 = vld [vmem:[%s3797 + $0x50] sm:$0xff]
    %v3809 = vld [vmem:[%s3797 + $0x58] sm:$0xff]
    %v3810 = vld [vmem:[%s3797 + $0x60] sm:$0xff]
    %v3811 = vld [vmem:[%s3797 + $0x68] sm:$0xff]
    %v3812 = vld [vmem:[%s3797 + $0x70] sm:$0xff]
    %v3813 = vld [vmem:[%s3797 + $0x78] sm:$0xff]
    %v3814 = vld [vmem:[%s3797 + $0x80] sm:$0xff]
    %v3815 = vld [vmem:[%s3797 + $0x88] sm:$0xff]
    %v3816 = vld [vmem:[%s3797 + $0x90] sm:$0xff]
    %v3817 = vld [vmem:[%s3797 + $0x98] sm:$0xff]
    %v3818 = vld [vmem:[%s3797 + $0xa0] sm:$0xff]
    %v3819 = vld [vmem:[%s3797 + $0xa8] sm:$0xff]
    %v3820 = vld [vmem:[%s3797 + $0xb0] sm:$0xff]
    %v3821 = vld [vmem:[%s3797 + $0xb8] sm:$0xff]
    %v3822 = vld [vmem:[%s3797 + $0xc0] sm:$0xff]
    %v3823 = vld [vmem:[%s3797 + $0xc8] sm:$0xff]
    %v3824 = vld [vmem:[%s3797 + $0xd0] sm:$0xff]
    %v3825 = vld [vmem:[%s3797 + $0xd8] sm:$0xff]
    %v3826 = vld [vmem:[%s3797 + $0xe0] sm:$0xff]
    %v3827 = vld [vmem:[%s3797 + $0xe8] sm:$0xff]
    %v3828 = vld [vmem:[%s3797 + $0xf0] sm:$0xff]
    %v3829 = vld [vmem:[%s3797 + $0xf8] sm:$0xff]
    %s3830 = scalar_lea.vmem %s3, 24
    %v3831 = vld [vmem:[%s3830] ss:$4 sm:$0x3]
    %v3833 = vlaneseq
    %v3834 = vshrl.u32 %v3833, 7
    %v3835 = vsub.s32 0, %v3834
    %v3836 = vrot.slane %v3831, %v3835
    %v3837 = vlaneseq
    %v3838 = vshrl.u32 %v3837, 7
    %v3839 = vsub.s32 1, %v3838
    %v3840 = vrot.slane %v3831, %v3839
    %v3875 = vunpack.c.l.b16 %v3798
    %v3876 = vunpack.c.h.b16 %v3798
    %v3877 = vunpack.c.l.b16 %v3799
    %v3878 = vunpack.c.h.b16 %v3799
    %v3879 = vunpack.c.l.b16 %v3800
    %v3880 = vunpack.c.h.b16 %v3800
    %v3881 = vunpack.c.l.b16 %v3801
    %v3882 = vunpack.c.h.b16 %v3801
    %v3883 = vunpack.c.l.b16 %v3802
    %v3884 = vunpack.c.h.b16 %v3802
    %v3885 = vunpack.c.l.b16 %v3803
    %v3886 = vunpack.c.h.b16 %v3803
    %v3887 = vunpack.c.l.b16 %v3804
    %v3888 = vunpack.c.h.b16 %v3804
    %v3889 = vunpack.c.l.b16 %v3805
    %v3890 = vunpack.c.h.b16 %v3805
    %v3891 = vunpack.c.l.b16 %v3806
    %v3892 = vunpack.c.h.b16 %v3806
    %v3893 = vunpack.c.l.b16 %v3807
    %v3894 = vunpack.c.h.b16 %v3807
    %v3895 = vunpack.c.l.b16 %v3808
    %v3896 = vunpack.c.h.b16 %v3808
    %v3897 = vunpack.c.l.b16 %v3809
    %v3898 = vunpack.c.h.b16 %v3809
    %v3899 = vunpack.c.l.b16 %v3810
    %v3900 = vunpack.c.h.b16 %v3810
    %v3901 = vunpack.c.l.b16 %v3811
    %v3902 = vunpack.c.h.b16 %v3811
    %v3903 = vunpack.c.l.b16 %v3812
    %v3904 = vunpack.c.h.b16 %v3812
    %v3905 = vunpack.c.l.b16 %v3813
    %v3906 = vunpack.c.h.b16 %v3813
    %v3907 = vunpack.c.l.b16 %v3814
    %v3908 = vunpack.c.h.b16 %v3814
    %v3909 = vunpack.c.l.b16 %v3815
    %v3910 = vunpack.c.h.b16 %v3815
    %v3911 = vunpack.c.l.b16 %v3816
    %v3912 = vunpack.c.h.b16 %v3816
    %v3913 = vunpack.c.l.b16 %v3817
    %v3914 = vunpack.c.h.b16 %v3817
    %v3915 = vunpack.c.l.b16 %v3818
    %v3916 = vunpack.c.h.b16 %v3818
    %v3917 = vunpack.c.l.b16 %v3819
    %v3918 = vunpack.c.h.b16 %v3819
    %v3919 = vunpack.c.l.b16 %v3820
    %v3920 = vunpack.c.h.b16 %v3820
    %v3921 = vunpack.c.l.b16 %v3821
    %v3922 = vunpack.c.h.b16 %v3821
    %v3923 = vunpack.c.l.b16 %v3822
    %v3924 = vunpack.c.h.b16 %v3822
    %v3925 = vunpack.c.l.b16 %v3823
    %v3926 = vunpack.c.h.b16 %v3823
    %v3927 = vunpack.c.l.b16 %v3824
    %v3928 = vunpack.c.h.b16 %v3824
    %v3929 = vunpack.c.l.b16 %v3825
    %v3930 = vunpack.c.h.b16 %v3825
    %v3931 = vunpack.c.l.b16 %v3826
    %v3932 = vunpack.c.h.b16 %v3826
    %v3933 = vunpack.c.l.b16 %v3827
    %v3934 = vunpack.c.h.b16 %v3827
    %v3935 = vunpack.c.l.b16 %v3828
    %v3936 = vunpack.c.h.b16 %v3828
    %v3937 = vunpack.c.l.b16 %v3829
    %v3938 = vunpack.c.h.b16 %v3829
    %v3939 = vpack.c.b16 %v3877, %v3875
    %v3940 = vpack.c.b16 %v3878, %v3876
    %v3941 = vpack.c.b16 %v3881, %v3879
    %v3942 = vpack.c.b16 %v3882, %v3880
    %v3943 = vpack.c.b16 %v3885, %v3883
    %v3944 = vpack.c.b16 %v3886, %v3884
    %v3945 = vpack.c.b16 %v3889, %v3887
    %v3946 = vpack.c.b16 %v3890, %v3888
    %v3947 = vpack.c.b16 %v3893, %v3891
    %v3948 = vpack.c.b16 %v3894, %v3892
    %v3949 = vpack.c.b16 %v3897, %v3895
    %v3950 = vpack.c.b16 %v3898, %v3896
    %v3951 = vpack.c.b16 %v3901, %v3899
    %v3952 = vpack.c.b16 %v3902, %v3900
    %v3953 = vpack.c.b16 %v3905, %v3903
    %v3954 = vpack.c.b16 %v3906, %v3904
    %v3955 = vpack.c.b16 %v3909, %v3907
    %v3956 = vpack.c.b16 %v3910, %v3908
    %v3957 = vpack.c.b16 %v3913, %v3911
    %v3958 = vpack.c.b16 %v3914, %v3912
    %v3959 = vpack.c.b16 %v3917, %v3915
    %v3960 = vpack.c.b16 %v3918, %v3916
    %v3961 = vpack.c.b16 %v3921, %v3919
    %v3962 = vpack.c.b16 %v3922, %v3920
    %v3963 = vpack.c.b16 %v3925, %v3923
    %v3964 = vpack.c.b16 %v3926, %v3924
    %v3965 = vpack.c.b16 %v3929, %v3927
    %v3966 = vpack.c.b16 %v3930, %v3928
    %v3967 = vpack.c.b16 %v3933, %v3931
    %v3968 = vpack.c.b16 %v3934, %v3932
    %v3969 = vpack.c.b16 %v3937, %v3935
    %v3970 = vpack.c.b16 %v3938, %v3936
    %4003 = vmatprep.subr.bf16.mxu0 %v3954
    %4004 = vmatpush1.bf16.msra.mxu0 %v3953
    %4005 = vmatprep.subr.bf16.mxu0 %v3952
    %4006 = vmatpush1.bf16.msra.mxu0 %v3951
    %4007 = vmatprep.subr.bf16.mxu0 %v3950
    %4008 = vmatpush1.bf16.msra.mxu0 %v3949
    %4009 = vmatprep.subr.bf16.mxu0 %v3948
    %4010 = vmatpush1.bf16.msra.mxu0 %v3947
    %4011 = vmatprep.subr.bf16.mxu0 %v3946
    %4012 = vmatpush1.bf16.msra.mxu0 %v3945
    %4013 = vmatprep.subr.bf16.mxu0 %v3944
    %4014 = vmatpush1.bf16.msra.mxu0 %v3943
    %4015 = vmatprep.subr.bf16.mxu0 %v3942
    %4016 = vmatpush1.bf16.msra.mxu0 %v3941
    %4017 = vmatprep.subr.bf16.mxu0 %v3940
    %4018 = vmatpush1.bf16.msra.mxu0 %v3939
    %4019 = vmatprep.subr.bf16.mxu0 %v3970
    %4020 = vmatpush2.bf16.msra.mxu0 %v3969
    %4021 = vmatprep.subr.bf16.mxu0 %v3968
    %4022 = vmatpush2.bf16.msra.mxu0 %v3967
    %4023 = vmatprep.subr.bf16.mxu0 %v3966
    %4024 = vmatpush2.bf16.msra.mxu0 %v3965
    %4025 = vmatprep.subr.bf16.mxu0 %v3964
    %4026 = vmatpush2.bf16.msra.mxu0 %v3963
    %4027 = vmatprep.subr.bf16.mxu0 %v3962
    %4028 = vmatpush2.bf16.msra.mxu0 %v3961
    %4029 = vmatprep.subr.bf16.mxu0 %v3960
    %4030 = vmatpush2.bf16.msra.mxu0 %v3959
    %4031 = vmatprep.subr.bf16.mxu0 %v3958
    %4032 = vmatpush2.bf16.msra.mxu0 %v3957
    %4033 = vmatprep.subr.bf16.mxu0 %v3956
    %4034 = vmatpush2.bf16.msra.mxu0 %v3955
    %4035 = vmatprep.mubr.bf16.mxu0 %v3796
    %4036 = vmatmul.mubr.bf16.gmra.mxu0 %v3795
    %v4037 = vpop.f32.mrf.mxu0
    %v4038 = vadd.f32 %v3836, %v4037
    %v4039 = vpop.f32.mrf.mxu0
    %v4040 = vadd.f32 %v3840, %v4039
    %v4041 = vpop.f32.mrf.mxu0
    %v4042 = vpop.f32.mrf.mxu0
    %4043 = vdwg.mxu0
    %s4044 = scalar_lea.vmem %s3830, 1
    %v4045 = vld [vmem:[%s4044] ss:$4 sm:$0x3]
    %s4046 = scalar_lea.vmem %s3830, 2
    %v4047 = vld [vmem:[%s4046] ss:$4 sm:$0x3]
    %v4048 = vrot.slane %v4038, 4
    %v4049 = vadd.f32 %v4038, %v4048
    %v4050 = vrot.slane %v4049, 2
    %v4051 = vadd.f32 %v4049, %v4050
    %v4052 = vrot.slane %v4051, 1
    %v4053 = vadd.f32 %v4051, %v4052
    %v4054 = vrot.slane %v4040, 4
    %v4055 = vadd.f32 %v4040, %v4054
    %v4056 = vrot.slane %v4055, 2
    %v4057 = vadd.f32 %v4055, %v4056
    %v4058 = vrot.slane %v4057, 1
    %v4059 = vadd.f32 %v4057, %v4058
    %v4060 = vmul.f32 %v4053, %v2977
    %v4061 = vmul.f32 %v4059, %v2977
    %v4062 = vmul.f32 %v4038, %v4038
    %v4063 = vmul.f32 %v4040, %v4040
    %v4064 = vrot.slane %v4062, 4
    %v4065 = vadd.f32 %v4062, %v4064
    %v4066 = vrot.slane %v4065, 2
    %v4067 = vadd.f32 %v4065, %v4066
    %v4068 = vrot.slane %v4067, 1
    %v4069 = vadd.f32 %v4067, %v4068
    %v4070 = vrot.slane %v4063, 4
    %v4071 = vadd.f32 %v4063, %v4070
    %v4072 = vrot.slane %v4071, 2
    %v4073 = vadd.f32 %v4071, %v4072
    %v4074 = vrot.slane %v4073, 1
    %v4075 = vadd.f32 %v4073, %v4074
    %v4076 = vmul.f32 %v4069, %v2977
    %v4077 = vmul.f32 %v4075, %v2977
    %v4078 = vmul.f32 %v4060, %v4060
    %v4079 = vmul.f32 %v4061, %v4061
    %v4080 = vsub.f32 %v4076, %v4078
    %v4081 = vsub.f32 %v4077, %v4079
    %v4082 = vmax.f32 %v4080, 0.0
    %v4083 = vmax.f32 %v4081, 0.0
    %v4084 = vadd.f32 %v4082, 1e-05
    %v4085 = vadd.f32 %v4083, 1e-05
    %v4086 = vrsqrt.pop %v4084
    %v4087 = vrsqrt.pop %v4085
    %v4090 = vcombine.low %v4086, %v4087
    %v4092 = vunpack.c.l.s4 1966171168
    %v4093 = vunpack.c.0.s8 %v4092
    %v4094 = vlaneseq
    %v4095 = vshrl.u32 %v4094, 7
    %v4096 = vsub.s32 %v4093, %v4095
    %v4097 = vrot.slane %v4090, %v4096
    %v4099 = vunpack.c.l.s4 1966171168
    %v4100 = vunpack.c.0.s8 %v4099
    %v4101 = vlaneseq
    %v4102 = vshrl.u32 %v4101, 7
    %v4103 = vsub.s32 %v4100, %v4102
    %v4104 = vrot.slane %v4097, %v4103
    %v4106 = vmul.f32 %v4045, %v4104
    %v4108 = vlaneseq
    %v4109 = vshrl.u32 %v4108, 7
    %v4110 = vsub.s32 0, %v4109
    %v4111 = vrot.slane %v4106, %v4110
    %v4112 = vlaneseq
    %v4113 = vshrl.u32 %v4112, 7
    %v4114 = vsub.s32 1, %v4113
    %v4115 = vrot.slane %v4106, %v4114
    %v4118 = vmul.f32 %v4060, %v4111
    %v4119 = vmul.f32 %v4061, %v4115
    %v4122 = vcombine.low %v4118, %v4119
    %v4124 = vunpack.c.l.s4 1966171168
    %v4125 = vunpack.c.0.s8 %v4124
    %v4126 = vlaneseq
    %v4127 = vshrl.u32 %v4126, 7
    %v4128 = vsub.s32 %v4125, %v4127
    %v4129 = vrot.slane %v4122, %v4128
    %v4131 = vunpack.c.l.s4 1966171168
    %v4132 = vunpack.c.0.s8 %v4131
    %v4133 = vlaneseq
    %v4134 = vshrl.u32 %v4133, 7
    %v4135 = vsub.s32 %v4132, %v4134
    %v4136 = vrot.slane %v4129, %v4135
    %v4138 = vsub.f32 %v4047, %v4136
    %v4139 = vmul.f32 %v4038, %v4111
    %v4140 = vmul.f32 %v4040, %v4115
    %v4142 = vlaneseq
    %v4143 = vshrl.u32 %v4142, 7
    %v4144 = vsub.s32 0, %v4143
    %v4145 = vrot.slane %v4138, %v4144
    %v4146 = vlaneseq
    %v4147 = vshrl.u32 %v4146, 7
    %v4148 = vsub.s32 1, %v4147
    %v4149 = vrot.slane %v4138, %v4148
    %v4152 = vadd.f32 %v4139, %v4145
    %v4153 = vadd.f32 %v4140, %v4149
    %v4154 = vmax.f32 %v4152, 0.0
    %v4155 = vmax.f32 %v4153, 0.0
    %v4156 = vpack.c.bf16 %v4154, %v4154
    %v4157 = vpack.c.bf16 %v4155, %v4155
    %s4158 = scalar_lea.vmem [#allocation7], 768
    %v4159 = vld [vmem:[%s4158] sm:$0xff]
    %v4160 = vld [vmem:[%s4158 + $0x8] sm:$0xff]
    %v4161 = vld [vmem:[%s4158 + $0x10] sm:$0xff]
    %v4162 = vld [vmem:[%s4158 + $0x18] sm:$0xff]
    %v4163 = vld [vmem:[%s4158 + $0x20] sm:$0xff]
    %v4164 = vld [vmem:[%s4158 + $0x28] sm:$0xff]
    %v4165 = vld [vmem:[%s4158 + $0x30] sm:$0xff]
    %v4166 = vld [vmem:[%s4158 + $0x38] sm:$0xff]
    %v4167 = vld [vmem:[%s4158 + $0x40] sm:$0xff]
    %v4168 = vld [vmem:[%s4158 + $0x48] sm:$0xff]
    %v4169 = vld [vmem:[%s4158 + $0x50] sm:$0xff]
    %v4170 = vld [vmem:[%s4158 + $0x58] sm:$0xff]
    %v4171 = vld [vmem:[%s4158 + $0x60] sm:$0xff]
    %v4172 = vld [vmem:[%s4158 + $0x68] sm:$0xff]
    %v4173 = vld [vmem:[%s4158 + $0x70] sm:$0xff]
    %v4174 = vld [vmem:[%s4158 + $0x78] sm:$0xff]
    %v4175 = vld [vmem:[%s4158 + $0x80] sm:$0xff]
    %v4176 = vld [vmem:[%s4158 + $0x88] sm:$0xff]
    %v4177 = vld [vmem:[%s4158 + $0x90] sm:$0xff]
    %v4178 = vld [vmem:[%s4158 + $0x98] sm:$0xff]
    %v4179 = vld [vmem:[%s4158 + $0xa0] sm:$0xff]
    %v4180 = vld [vmem:[%s4158 + $0xa8] sm:$0xff]
    %v4181 = vld [vmem:[%s4158 + $0xb0] sm:$0xff]
    %v4182 = vld [vmem:[%s4158 + $0xb8] sm:$0xff]
    %v4183 = vld [vmem:[%s4158 + $0xc0] sm:$0xff]
    %v4184 = vld [vmem:[%s4158 + $0xc8] sm:$0xff]
    %v4185 = vld [vmem:[%s4158 + $0xd0] sm:$0xff]
    %v4186 = vld [vmem:[%s4158 + $0xd8] sm:$0xff]
    %v4187 = vld [vmem:[%s4158 + $0xe0] sm:$0xff]
    %v4188 = vld [vmem:[%s4158 + $0xe8] sm:$0xff]
    %v4189 = vld [vmem:[%s4158 + $0xf0] sm:$0xff]
    %v4190 = vld [vmem:[%s4158 + $0xf8] sm:$0xff]
    %s4191 = scalar_lea.vmem %s3, 32
    %v4192 = vld [vmem:[%s4191] ss:$4 sm:$0x3]
    %v4194 = vlaneseq
    %v4195 = vshrl.u32 %v4194, 7
    %v4196 = vsub.s32 0, %v4195
    %v4197 = vrot.slane %v4192, %v4196
    %v4198 = vlaneseq
    %v4199 = vshrl.u32 %v4198, 7
    %v4200 = vsub.s32 1, %v4199
    %v4201 = vrot.slane %v4192, %v4200
    %v4236 = vunpack.c.l.b16 %v4159
    %v4237 = vunpack.c.h.b16 %v4159
    %v4238 = vunpack.c.l.b16 %v4160
    %v4239 = vunpack.c.h.b16 %v4160
    %v4240 = vunpack.c.l.b16 %v4161
    %v4241 = vunpack.c.h.b16 %v4161
    %v4242 = vunpack.c.l.b16 %v4162
    %v4243 = vunpack.c.h.b16 %v4162
    %v4244 = vunpack.c.l.b16 %v4163
    %v4245 = vunpack.c.h.b16 %v4163
    %v4246 = vunpack.c.l.b16 %v4164
    %v4247 = vunpack.c.h.b16 %v4164
    %v4248 = vunpack.c.l.b16 %v4165
    %v4249 = vunpack.c.h.b16 %v4165
    %v4250 = vunpack.c.l.b16 %v4166
    %v4251 = vunpack.c.h.b16 %v4166
    %v4252 = vunpack.c.l.b16 %v4167
    %v4253 = vunpack.c.h.b16 %v4167
    %v4254 = vunpack.c.l.b16 %v4168
    %v4255 = vunpack.c.h.b16 %v4168
    %v4256 = vunpack.c.l.b16 %v4169
    %v4257 = vunpack.c.h.b16 %v4169
    %v4258 = vunpack.c.l.b16 %v4170
    %v4259 = vunpack.c.h.b16 %v4170
    %v4260 = vunpack.c.l.b16 %v4171
    %v4261 = vunpack.c.h.b16 %v4171
    %v4262 = vunpack.c.l.b16 %v4172
    %v4263 = vunpack.c.h.b16 %v4172
    %v4264 = vunpack.c.l.b16 %v4173
    %v4265 = vunpack.c.h.b16 %v4173
    %v4266 = vunpack.c.l.b16 %v4174
    %v4267 = vunpack.c.h.b16 %v4174
    %v4268 = vunpack.c.l.b16 %v4175
    %v4269 = vunpack.c.h.b16 %v4175
    %v4270 = vunpack.c.l.b16 %v4176
    %v4271 = vunpack.c.h.b16 %v4176
    %v4272 = vunpack.c.l.b16 %v4177
    %v4273 = vunpack.c.h.b16 %v4177
    %v4274 = vunpack.c.l.b16 %v4178
    %v4275 = vunpack.c.h.b16 %v4178
    %v4276 = vunpack.c.l.b16 %v4179
    %v4277 = vunpack.c.h.b16 %v4179
    %v4278 = vunpack.c.l.b16 %v4180
    %v4279 = vunpack.c.h.b16 %v4180
    %v4280 = vunpack.c.l.b16 %v4181
    %v4281 = vunpack.c.h.b16 %v4181
    %v4282 = vunpack.c.l.b16 %v4182
    %v4283 = vunpack.c.h.b16 %v4182
    %v4284 = vunpack.c.l.b16 %v4183
    %v4285 = vunpack.c.h.b16 %v4183
    %v4286 = vunpack.c.l.b16 %v4184
    %v4287 = vunpack.c.h.b16 %v4184
    %v4288 = vunpack.c.l.b16 %v4185
    %v4289 = vunpack.c.h.b16 %v4185
    %v4290 = vunpack.c.l.b16 %v4186
    %v4291 = vunpack.c.h.b16 %v4186
    %v4292 = vunpack.c.l.b16 %v4187
    %v4293 = vunpack.c.h.b16 %v4187
    %v4294 = vunpack.c.l.b16 %v4188
    %v4295 = vunpack.c.h.b16 %v4188
    %v4296 = vunpack.c.l.b16 %v4189
    %v4297 = vunpack.c.h.b16 %v4189
    %v4298 = vunpack.c.l.b16 %v4190
    %v4299 = vunpack.c.h.b16 %v4190
    %v4300 = vpack.c.b16 %v4238, %v4236
    %v4301 = vpack.c.b16 %v4239, %v4237
    %v4302 = vpack.c.b16 %v4242, %v4240
    %v4303 = vpack.c.b16 %v4243, %v4241
    %v4304 = vpack.c.b16 %v4246, %v4244
    %v4305 = vpack.c.b16 %v4247, %v4245
    %v4306 = vpack.c.b16 %v4250, %v4248
    %v4307 = vpack.c.b16 %v4251, %v4249
    %v4308 = vpack.c.b16 %v4254, %v4252
    %v4309 = vpack.c.b16 %v4255, %v4253
    %v4310 = vpack.c.b16 %v4258, %v4256
    %v4311 = vpack.c.b16 %v4259, %v4257
    %v4312 = vpack.c.b16 %v4262, %v4260
    %v4313 = vpack.c.b16 %v4263, %v4261
    %v4314 = vpack.c.b16 %v4266, %v4264
    %v4315 = vpack.c.b16 %v4267, %v4265
    %v4316 = vpack.c.b16 %v4270, %v4268
    %v4317 = vpack.c.b16 %v4271, %v4269
    %v4318 = vpack.c.b16 %v4274, %v4272
    %v4319 = vpack.c.b16 %v4275, %v4273
    %v4320 = vpack.c.b16 %v4278, %v4276
    %v4321 = vpack.c.b16 %v4279, %v4277
    %v4322 = vpack.c.b16 %v4282, %v4280
    %v4323 = vpack.c.b16 %v4283, %v4281
    %v4324 = vpack.c.b16 %v4286, %v4284
    %v4325 = vpack.c.b16 %v4287, %v4285
    %v4326 = vpack.c.b16 %v4290, %v4288
    %v4327 = vpack.c.b16 %v4291, %v4289
    %v4328 = vpack.c.b16 %v4294, %v4292
    %v4329 = vpack.c.b16 %v4295, %v4293
    %v4330 = vpack.c.b16 %v4298, %v4296
    %v4331 = vpack.c.b16 %v4299, %v4297
    %4364 = vmatprep.subr.bf16.mxu0 %v4315
    %4365 = vmatpush1.bf16.msra.mxu0 %v4314
    %4366 = vmatprep.subr.bf16.mxu0 %v4313
    %4367 = vmatpush1.bf16.msra.mxu0 %v4312
    %4368 = vmatprep.subr.bf16.mxu0 %v4311
    %4369 = vmatpush1.bf16.msra.mxu0 %v4310
    %4370 = vmatprep.subr.bf16.mxu0 %v4309
    %4371 = vmatpush1.bf16.msra.mxu0 %v4308
    %4372 = vmatprep.subr.bf16.mxu0 %v4307
    %4373 = vmatpush1.bf16.msra.mxu0 %v4306
    %4374 = vmatprep.subr.bf16.mxu0 %v4305
    %4375 = vmatpush1.bf16.msra.mxu0 %v4304
    %4376 = vmatprep.subr.bf16.mxu0 %v4303
    %4377 = vmatpush1.bf16.msra.mxu0 %v4302
    %4378 = vmatprep.subr.bf16.mxu0 %v4301
    %4379 = vmatpush1.bf16.msra.mxu0 %v4300
    %4380 = vmatprep.subr.bf16.mxu0 %v4331
    %4381 = vmatpush2.bf16.msra.mxu0 %v4330
    %4382 = vmatprep.subr.bf16.mxu0 %v4329
    %4383 = vmatpush2.bf16.msra.mxu0 %v4328
    %4384 = vmatprep.subr.bf16.mxu0 %v4327
    %4385 = vmatpush2.bf16.msra.mxu0 %v4326
    %4386 = vmatprep.subr.bf16.mxu0 %v4325
    %4387 = vmatpush2.bf16.msra.mxu0 %v4324
    %4388 = vmatprep.subr.bf16.mxu0 %v4323
    %4389 = vmatpush2.bf16.msra.mxu0 %v4322
    %4390 = vmatprep.subr.bf16.mxu0 %v4321
    %4391 = vmatpush2.bf16.msra.mxu0 %v4320
    %4392 = vmatprep.subr.bf16.mxu0 %v4319
    %4393 = vmatpush2.bf16.msra.mxu0 %v4318
    %4394 = vmatprep.subr.bf16.mxu0 %v4317
    %4395 = vmatpush2.bf16.msra.mxu0 %v4316
    %4396 = vmatprep.mubr.bf16.mxu0 %v4157
    %4397 = vmatmul.mubr.bf16.gmra.mxu0 %v4156
    %v4398 = vpop.f32.mrf.mxu0
    %v4399 = vadd.f32 %v4197, %v4398
    %v4400 = vpop.f32.mrf.mxu0
    %v4401 = vadd.f32 %v4201, %v4400
    %v4402 = vpop.f32.mrf.mxu0
    %v4403 = vpop.f32.mrf.mxu0
    %4404 = vdwg.mxu0
    %s4405 = scalar_lea.vmem %s4191, 1
    %v4406 = vld [vmem:[%s4405] ss:$4 sm:$0x3]
    %s4407 = scalar_lea.vmem %s4191, 2
    %v4408 = vld [vmem:[%s4407] ss:$4 sm:$0x3]
    %v4409 = vrot.slane %v4399, 4
    %v4410 = vadd.f32 %v4399, %v4409
    %v4411 = vrot.slane %v4410, 2
    %v4412 = vadd.f32 %v4410, %v4411
    %v4413 = vrot.slane %v4412, 1
    %v4414 = vadd.f32 %v4412, %v4413
    %v4415 = vrot.slane %v4401, 4
    %v4416 = vadd.f32 %v4401, %v4415
    %v4417 = vrot.slane %v4416, 2
    %v4418 = vadd.f32 %v4416, %v4417
    %v4419 = vrot.slane %v4418, 1
    %v4420 = vadd.f32 %v4418, %v4419
    %v4421 = vmul.f32 %v4414, %v2977
    %v4422 = vmul.f32 %v4420, %v2977
    %v4423 = vmul.f32 %v4399, %v4399
    %v4424 = vmul.f32 %v4401, %v4401
    %v4425 = vrot.slane %v4423, 4
    %v4426 = vadd.f32 %v4423, %v4425
    %v4427 = vrot.slane %v4426, 2
    %v4428 = vadd.f32 %v4426, %v4427
    %v4429 = vrot.slane %v4428, 1
    %v4430 = vadd.f32 %v4428, %v4429
    %v4431 = vrot.slane %v4424, 4
    %v4432 = vadd.f32 %v4424, %v4431
    %v4433 = vrot.slane %v4432, 2
    %v4434 = vadd.f32 %v4432, %v4433
    %v4435 = vrot.slane %v4434, 1
    %v4436 = vadd.f32 %v4434, %v4435
    %v4437 = vmul.f32 %v4430, %v2977
    %v4438 = vmul.f32 %v4436, %v2977
    %v4439 = vmul.f32 %v4421, %v4421
    %v4440 = vmul.f32 %v4422, %v4422
    %v4441 = vsub.f32 %v4437, %v4439
    %v4442 = vsub.f32 %v4438, %v4440
    %v4443 = vmax.f32 %v4441, 0.0
    %v4444 = vmax.f32 %v4442, 0.0
    %v4445 = vadd.f32 %v4443, 1e-05
    %v4446 = vadd.f32 %v4444, 1e-05
    %v4447 = vrsqrt.pop %v4445
    %v4448 = vrsqrt.pop %v4446
    %v4451 = vcombine.low %v4447, %v4448
    %v4453 = vunpack.c.l.s4 1966171168
    %v4454 = vunpack.c.0.s8 %v4453
    %v4455 = vlaneseq
    %v4456 = vshrl.u32 %v4455, 7
    %v4457 = vsub.s32 %v4454, %v4456
    %v4458 = vrot.slane %v4451, %v4457
    %v4460 = vunpack.c.l.s4 1966171168
    %v4461 = vunpack.c.0.s8 %v4460
    %v4462 = vlaneseq
    %v4463 = vshrl.u32 %v4462, 7
    %v4464 = vsub.s32 %v4461, %v4463
    %v4465 = vrot.slane %v4458, %v4464
    %v4467 = vmul.f32 %v4406, %v4465
    %v4469 = vlaneseq
    %v4470 = vshrl.u32 %v4469, 7
    %v4471 = vsub.s32 0, %v4470
    %v4472 = vrot.slane %v4467, %v4471
    %v4473 = vlaneseq
    %v4474 = vshrl.u32 %v4473, 7
    %v4475 = vsub.s32 1, %v4474
    %v4476 = vrot.slane %v4467, %v4475
    %v4479 = vmul.f32 %v4421, %v4472
    %v4480 = vmul.f32 %v4422, %v4476
    %v4483 = vcombine.low %v4479, %v4480
    %v4485 = vunpack.c.l.s4 1966171168
    %v4486 = vunpack.c.0.s8 %v4485
    %v4487 = vlaneseq
    %v4488 = vshrl.u32 %v4487, 7
    %v4489 = vsub.s32 %v4486, %v4488
    %v4490 = vrot.slane %v4483, %v4489
    %v4492 = vunpack.c.l.s4 1966171168
    %v4493 = vunpack.c.0.s8 %v4492
    %v4494 = vlaneseq
    %v4495 = vshrl.u32 %v4494, 7
    %v4496 = vsub.s32 %v4493, %v4495
    %v4497 = vrot.slane %v4490, %v4496
    %v4499 = vsub.f32 %v4408, %v4497
    %v4500 = vmul.f32 %v4399, %v4472
    %v4501 = vmul.f32 %v4401, %v4476
    %v4503 = vlaneseq
    %v4504 = vshrl.u32 %v4503, 7
    %v4505 = vsub.s32 0, %v4504
    %v4506 = vrot.slane %v4499, %v4505
    %v4507 = vlaneseq
    %v4508 = vshrl.u32 %v4507, 7
    %v4509 = vsub.s32 1, %v4508
    %v4510 = vrot.slane %v4499, %v4509
    %v4513 = vadd.f32 %v4500, %v4506
    %v4514 = vadd.f32 %v4501, %v4510
    %v4515 = vmax.f32 %v4513, 0.0
    %v4516 = vmax.f32 %v4514, 0.0
    %v4517 = vpack.c.bf16 %v4515, %v4515
    %v4518 = vpack.c.bf16 %v4516, %v4516
    %s4519 = scalar_lea.vmem [#allocation7], 1024
    %v4520 = vld [vmem:[%s4519] sm:$0xff]
    %v4521 = vld [vmem:[%s4519 + $0x8] sm:$0xff]
    %v4522 = vld [vmem:[%s4519 + $0x10] sm:$0xff]
    %v4523 = vld [vmem:[%s4519 + $0x18] sm:$0xff]
    %v4524 = vld [vmem:[%s4519 + $0x20] sm:$0xff]
    %v4525 = vld [vmem:[%s4519 + $0x28] sm:$0xff]
    %v4526 = vld [vmem:[%s4519 + $0x30] sm:$0xff]
    %v4527 = vld [vmem:[%s4519 + $0x38] sm:$0xff]
    %v4528 = vld [vmem:[%s4519 + $0x40] sm:$0xff]
    %v4529 = vld [vmem:[%s4519 + $0x48] sm:$0xff]
    %v4530 = vld [vmem:[%s4519 + $0x50] sm:$0xff]
    %v4531 = vld [vmem:[%s4519 + $0x58] sm:$0xff]
    %v4532 = vld [vmem:[%s4519 + $0x60] sm:$0xff]
    %v4533 = vld [vmem:[%s4519 + $0x68] sm:$0xff]
    %v4534 = vld [vmem:[%s4519 + $0x70] sm:$0xff]
    %v4535 = vld [vmem:[%s4519 + $0x78] sm:$0xff]
    %v4536 = vld [vmem:[%s4519 + $0x80] sm:$0xff]
    %v4537 = vld [vmem:[%s4519 + $0x88] sm:$0xff]
    %v4538 = vld [vmem:[%s4519 + $0x90] sm:$0xff]
    %v4539 = vld [vmem:[%s4519 + $0x98] sm:$0xff]
    %v4540 = vld [vmem:[%s4519 + $0xa0] sm:$0xff]
    %v4541 = vld [vmem:[%s4519 + $0xa8] sm:$0xff]
    %v4542 = vld [vmem:[%s4519 + $0xb0] sm:$0xff]
    %v4543 = vld [vmem:[%s4519 + $0xb8] sm:$0xff]
    %v4544 = vld [vmem:[%s4519 + $0xc0] sm:$0xff]
    %v4545 = vld [vmem:[%s4519 + $0xc8] sm:$0xff]
    %v4546 = vld [vmem:[%s4519 + $0xd0] sm:$0xff]
    %v4547 = vld [vmem:[%s4519 + $0xd8] sm:$0xff]
    %v4548 = vld [vmem:[%s4519 + $0xe0] sm:$0xff]
    %v4549 = vld [vmem:[%s4519 + $0xe8] sm:$0xff]
    %v4550 = vld [vmem:[%s4519 + $0xf0] sm:$0xff]
    %v4551 = vld [vmem:[%s4519 + $0xf8] sm:$0xff]
    %s4552 = scalar_lea.vmem %s3, 40
    %v4553 = vld [vmem:[%s4552] ss:$4 sm:$0x3]
    %v4555 = vlaneseq
    %v4556 = vshrl.u32 %v4555, 7
    %v4557 = vsub.s32 0, %v4556
    %v4558 = vrot.slane %v4553, %v4557
    %v4559 = vlaneseq
    %v4560 = vshrl.u32 %v4559, 7
    %v4561 = vsub.s32 1, %v4560
    %v4562 = vrot.slane %v4553, %v4561
    %v4597 = vunpack.c.l.b16 %v4520
    %v4598 = vunpack.c.h.b16 %v4520
    %v4599 = vunpack.c.l.b16 %v4521
    %v4600 = vunpack.c.h.b16 %v4521
    %v4601 = vunpack.c.l.b16 %v4522
    %v4602 = vunpack.c.h.b16 %v4522
    %v4603 = vunpack.c.l.b16 %v4523
    %v4604 = vunpack.c.h.b16 %v4523
    %v4605 = vunpack.c.l.b16 %v4524
    %v4606 = vunpack.c.h.b16 %v4524
    %v4607 = vunpack.c.l.b16 %v4525
    %v4608 = vunpack.c.h.b16 %v4525
    %v4609 = vunpack.c.l.b16 %v4526
    %v4610 = vunpack.c.h.b16 %v4526
    %v4611 = vunpack.c.l.b16 %v4527
    %v4612 = vunpack.c.h.b16 %v4527
    %v4613 = vunpack.c.l.b16 %v4528
    %v4614 = vunpack.c.h.b16 %v4528
    %v4615 = vunpack.c.l.b16 %v4529
    %v4616 = vunpack.c.h.b16 %v4529
    %v4617 = vunpack.c.l.b16 %v4530
    %v4618 = vunpack.c.h.b16 %v4530
    %v4619 = vunpack.c.l.b16 %v4531
    %v4620 = vunpack.c.h.b16 %v4531
    %v4621 = vunpack.c.l.b16 %v4532
    %v4622 = vunpack.c.h.b16 %v4532
    %v4623 = vunpack.c.l.b16 %v4533
    %v4624 = vunpack.c.h.b16 %v4533
    %v4625 = vunpack.c.l.b16 %v4534
    %v4626 = vunpack.c.h.b16 %v4534
    %v4627 = vunpack.c.l.b16 %v4535
    %v4628 = vunpack.c.h.b16 %v4535
    %v4629 = vunpack.c.l.b16 %v4536
    %v4630 = vunpack.c.h.b16 %v4536
    %v4631 = vunpack.c.l.b16 %v4537
    %v4632 = vunpack.c.h.b16 %v4537
    %v4633 = vunpack.c.l.b16 %v4538
    %v4634 = vunpack.c.h.b16 %v4538
    %v4635 = vunpack.c.l.b16 %v4539
    %v4636 = vunpack.c.h.b16 %v4539
    %v4637 = vunpack.c.l.b16 %v4540
    %v4638 = vunpack.c.h.b16 %v4540
    %v4639 = vunpack.c.l.b16 %v4541
    %v4640 = vunpack.c.h.b16 %v4541
    %v4641 = vunpack.c.l.b16 %v4542
    %v4642 = vunpack.c.h.b16 %v4542
    %v4643 = vunpack.c.l.b16 %v4543
    %v4644 = vunpack.c.h.b16 %v4543
    %v4645 = vunpack.c.l.b16 %v4544
    %v4646 = vunpack.c.h.b16 %v4544
    %v4647 = vunpack.c.l.b16 %v4545
    %v4648 = vunpack.c.h.b16 %v4545
    %v4649 = vunpack.c.l.b16 %v4546
    %v4650 = vunpack.c.h.b16 %v4546
    %v4651 = vunpack.c.l.b16 %v4547
    %v4652 = vunpack.c.h.b16 %v4547
    %v4653 = vunpack.c.l.b16 %v4548
    %v4654 = vunpack.c.h.b16 %v4548
    %v4655 = vunpack.c.l.b16 %v4549
    %v4656 = vunpack.c.h.b16 %v4549
    %v4657 = vunpack.c.l.b16 %v4550
    %v4658 = vunpack.c.h.b16 %v4550
    %v4659 = vunpack.c.l.b16 %v4551
    %v4660 = vunpack.c.h.b16 %v4551
    %v4661 = vpack.c.b16 %v4599, %v4597
    %v4662 = vpack.c.b16 %v4600, %v4598
    %v4663 = vpack.c.b16 %v4603, %v4601
    %v4664 = vpack.c.b16 %v4604, %v4602
    %v4665 = vpack.c.b16 %v4607, %v4605
    %v4666 = vpack.c.b16 %v4608, %v4606
    %v4667 = vpack.c.b16 %v4611, %v4609
    %v4668 = vpack.c.b16 %v4612, %v4610
    %v4669 = vpack.c.b16 %v4615, %v4613
    %v4670 = vpack.c.b16 %v4616, %v4614
    %v4671 = vpack.c.b16 %v4619, %v4617
    %v4672 = vpack.c.b16 %v4620, %v4618
    %v4673 = vpack.c.b16 %v4623, %v4621
    %v4674 = vpack.c.b16 %v4624, %v4622
    %v4675 = vpack.c.b16 %v4627, %v4625
    %v4676 = vpack.c.b16 %v4628, %v4626
    %v4677 = vpack.c.b16 %v4631, %v4629
    %v4678 = vpack.c.b16 %v4632, %v4630
    %v4679 = vpack.c.b16 %v4635, %v4633
    %v4680 = vpack.c.b16 %v4636, %v4634
    %v4681 = vpack.c.b16 %v4639, %v4637
    %v4682 = vpack.c.b16 %v4640, %v4638
    %v4683 = vpack.c.b16 %v4643, %v4641
    %v4684 = vpack.c.b16 %v4644, %v4642
    %v4685 = vpack.c.b16 %v4647, %v4645
    %v4686 = vpack.c.b16 %v4648, %v4646
    %v4687 = vpack.c.b16 %v4651, %v4649
    %v4688 = vpack.c.b16 %v4652, %v4650
    %v4689 = vpack.c.b16 %v4655, %v4653
    %v4690 = vpack.c.b16 %v4656, %v4654
    %v4691 = vpack.c.b16 %v4659, %v4657
    %v4692 = vpack.c.b16 %v4660, %v4658
    %4725 = vmatprep.subr.bf16.mxu0 %v4676
    %4726 = vmatpush1.bf16.msra.mxu0 %v4675
    %4727 = vmatprep.subr.bf16.mxu0 %v4674
    %4728 = vmatpush1.bf16.msra.mxu0 %v4673
    %4729 = vmatprep.subr.bf16.mxu0 %v4672
    %4730 = vmatpush1.bf16.msra.mxu0 %v4671
    %4731 = vmatprep.subr.bf16.mxu0 %v4670
    %4732 = vmatpush1.bf16.msra.mxu0 %v4669
    %4733 = vmatprep.subr.bf16.mxu0 %v4668
    %4734 = vmatpush1.bf16.msra.mxu0 %v4667
    %4735 = vmatprep.subr.bf16.mxu0 %v4666
    %4736 = vmatpush1.bf16.msra.mxu0 %v4665
    %4737 = vmatprep.subr.bf16.mxu0 %v4664
    %4738 = vmatpush1.bf16.msra.mxu0 %v4663
    %4739 = vmatprep.subr.bf16.mxu0 %v4662
    %4740 = vmatpush1.bf16.msra.mxu0 %v4661
    %4741 = vmatprep.subr.bf16.mxu0 %v4692
    %4742 = vmatpush2.bf16.msra.mxu0 %v4691
    %4743 = vmatprep.subr.bf16.mxu0 %v4690
    %4744 = vmatpush2.bf16.msra.mxu0 %v4689
    %4745 = vmatprep.subr.bf16.mxu0 %v4688
    %4746 = vmatpush2.bf16.msra.mxu0 %v4687
    %4747 = vmatprep.subr.bf16.mxu0 %v4686
    %4748 = vmatpush2.bf16.msra.mxu0 %v4685
    %4749 = vmatprep.subr.bf16.mxu0 %v4684
    %4750 = vmatpush2.bf16.msra.mxu0 %v4683
    %4751 = vmatprep.subr.bf16.mxu0 %v4682
    %4752 = vmatpush2.bf16.msra.mxu0 %v4681
    %4753 = vmatprep.subr.bf16.mxu0 %v4680
    %4754 = vmatpush2.bf16.msra.mxu0 %v4679
    %4755 = vmatprep.subr.bf16.mxu0 %v4678
    %4756 = vmatpush2.bf16.msra.mxu0 %v4677
    %4757 = vmatprep.mubr.bf16.mxu0 %v4518
    %4758 = vmatmul.mubr.bf16.gmra.mxu0 %v4517
    %v4759 = vpop.f32.mrf.mxu0
    %v4760 = vadd.f32 %v4558, %v4759
    %v4761 = vpop.f32.mrf.mxu0
    %v4762 = vadd.f32 %v4562, %v4761
    %v4763 = vpop.f32.mrf.mxu0
    %v4764 = vpop.f32.mrf.mxu0
    %4765 = vdwg.mxu0
    %s4766 = scalar_lea.vmem %s4552, 1
    %v4767 = vld [vmem:[%s4766] ss:$4 sm:$0x3]
    %s4768 = scalar_lea.vmem %s4552, 2
    %v4769 = vld [vmem:[%s4768] ss:$4 sm:$0x3]
    %v4770 = vrot.slane %v4760, 4
    %v4771 = vadd.f32 %v4760, %v4770
    %v4772 = vrot.slane %v4771, 2
    %v4773 = vadd.f32 %v4771, %v4772
    %v4774 = vrot.slane %v4773, 1
    %v4775 = vadd.f32 %v4773, %v4774
    %v4776 = vrot.slane %v4762, 4
    %v4777 = vadd.f32 %v4762, %v4776
    %v4778 = vrot.slane %v4777, 2
    %v4779 = vadd.f32 %v4777, %v4778
    %v4780 = vrot.slane %v4779, 1
    %v4781 = vadd.f32 %v4779, %v4780
    %v4782 = vmul.f32 %v4775, %v2977
    %v4783 = vmul.f32 %v4781, %v2977
    %v4784 = vmul.f32 %v4760, %v4760
    %v4785 = vmul.f32 %v4762, %v4762
    %v4786 = vrot.slane %v4784, 4
    %v4787 = vadd.f32 %v4784, %v4786
    %v4788 = vrot.slane %v4787, 2
    %v4789 = vadd.f32 %v4787, %v4788
    %v4790 = vrot.slane %v4789, 1
    %v4791 = vadd.f32 %v4789, %v4790
    %v4792 = vrot.slane %v4785, 4
    %v4793 = vadd.f32 %v4785, %v4792
    %v4794 = vrot.slane %v4793, 2
    %v4795 = vadd.f32 %v4793, %v4794
    %v4796 = vrot.slane %v4795, 1
    %v4797 = vadd.f32 %v4795, %v4796
    %v4798 = vmul.f32 %v4791, %v2977
    %v4799 = vmul.f32 %v4797, %v2977
    %v4800 = vmul.f32 %v4782, %v4782
    %v4801 = vmul.f32 %v4783, %v4783
    %v4802 = vsub.f32 %v4798, %v4800
    %v4803 = vsub.f32 %v4799, %v4801
    %v4804 = vmax.f32 %v4802, 0.0
    %v4805 = vmax.f32 %v4803, 0.0
    %v4806 = vadd.f32 %v4804, 1e-05
    %v4807 = vadd.f32 %v4805, 1e-05
    %v4808 = vrsqrt.pop %v4806
    %v4809 = vrsqrt.pop %v4807
    %v4812 = vcombine.low %v4808, %v4809
    %v4814 = vunpack.c.l.s4 1966171168
    %v4815 = vunpack.c.0.s8 %v4814
    %v4816 = vlaneseq
    %v4817 = vshrl.u32 %v4816, 7
    %v4818 = vsub.s32 %v4815, %v4817
    %v4819 = vrot.slane %v4812, %v4818
    %v4821 = vunpack.c.l.s4 1966171168
    %v4822 = vunpack.c.0.s8 %v4821
    %v4823 = vlaneseq
    %v4824 = vshrl.u32 %v4823, 7
    %v4825 = vsub.s32 %v4822, %v4824
    %v4826 = vrot.slane %v4819, %v4825
    %v4828 = vmul.f32 %v4767, %v4826
    %v4830 = vlaneseq
    %v4831 = vshrl.u32 %v4830, 7
    %v4832 = vsub.s32 0, %v4831
    %v4833 = vrot.slane %v4828, %v4832
    %v4834 = vlaneseq
    %v4835 = vshrl.u32 %v4834, 7
    %v4836 = vsub.s32 1, %v4835
    %v4837 = vrot.slane %v4828, %v4836
    %v4840 = vmul.f32 %v4782, %v4833
    %v4841 = vmul.f32 %v4783, %v4837
    %v4844 = vcombine.low %v4840, %v4841
    %v4846 = vunpack.c.l.s4 1966171168
    %v4847 = vunpack.c.0.s8 %v4846
    %v4848 = vlaneseq
    %v4849 = vshrl.u32 %v4848, 7
    %v4850 = vsub.s32 %v4847, %v4849
    %v4851 = vrot.slane %v4844, %v4850
    %v4853 = vunpack.c.l.s4 1966171168
    %v4854 = vunpack.c.0.s8 %v4853
    %v4855 = vlaneseq
    %v4856 = vshrl.u32 %v4855, 7
    %v4857 = vsub.s32 %v4854, %v4856
    %v4858 = vrot.slane %v4851, %v4857
    %v4860 = vsub.f32 %v4769, %v4858
    %v4861 = vmul.f32 %v4760, %v4833
    %v4862 = vmul.f32 %v4762, %v4837
    %v4864 = vlaneseq
    %v4865 = vshrl.u32 %v4864, 7
    %v4866 = vsub.s32 0, %v4865
    %v4867 = vrot.slane %v4860, %v4866
    %v4868 = vlaneseq
    %v4869 = vshrl.u32 %v4868, 7
    %v4870 = vsub.s32 1, %v4869
    %v4871 = vrot.slane %v4860, %v4870
    %v4874 = vadd.f32 %v4861, %v4867
    %v4875 = vadd.f32 %v4862, %v4871
    %v4876 = vmax.f32 %v4874, 0.0
    %v4877 = vmax.f32 %v4875, 0.0
    %v4878 = vpack.c.bf16 %v4876, %v4876
    %v4879 = vpack.c.bf16 %v4877, %v4877
    %s4880 = scalar_lea.vmem [#allocation7], 1280
    %v4881 = vld [vmem:[%s4880] sm:$0xff]
    %v4882 = vld [vmem:[%s4880 + $0x8] sm:$0xff]
    %v4883 = vld [vmem:[%s4880 + $0x10] sm:$0xff]
    %v4884 = vld [vmem:[%s4880 + $0x18] sm:$0xff]
    %v4885 = vld [vmem:[%s4880 + $0x20] sm:$0xff]
    %v4886 = vld [vmem:[%s4880 + $0x28] sm:$0xff]
    %v4887 = vld [vmem:[%s4880 + $0x30] sm:$0xff]
    %v4888 = vld [vmem:[%s4880 + $0x38] sm:$0xff]
    %v4889 = vld [vmem:[%s4880 + $0x40] sm:$0xff]
    %v4890 = vld [vmem:[%s4880 + $0x48] sm:$0xff]
    %v4891 = vld [vmem:[%s4880 + $0x50] sm:$0xff]
    %v4892 = vld [vmem:[%s4880 + $0x58] sm:$0xff]
    %v4893 = vld [vmem:[%s4880 + $0x60] sm:$0xff]
    %v4894 = vld [vmem:[%s4880 + $0x68] sm:$0xff]
    %v4895 = vld [vmem:[%s4880 + $0x70] sm:$0xff]
    %v4896 = vld [vmem:[%s4880 + $0x78] sm:$0xff]
    %v4897 = vld [vmem:[%s4880 + $0x80] sm:$0xff]
    %v4898 = vld [vmem:[%s4880 + $0x88] sm:$0xff]
    %v4899 = vld [vmem:[%s4880 + $0x90] sm:$0xff]
    %v4900 = vld [vmem:[%s4880 + $0x98] sm:$0xff]
    %v4901 = vld [vmem:[%s4880 + $0xa0] sm:$0xff]
    %v4902 = vld [vmem:[%s4880 + $0xa8] sm:$0xff]
    %v4903 = vld [vmem:[%s4880 + $0xb0] sm:$0xff]
    %v4904 = vld [vmem:[%s4880 + $0xb8] sm:$0xff]
    %v4905 = vld [vmem:[%s4880 + $0xc0] sm:$0xff]
    %v4906 = vld [vmem:[%s4880 + $0xc8] sm:$0xff]
    %v4907 = vld [vmem:[%s4880 + $0xd0] sm:$0xff]
    %v4908 = vld [vmem:[%s4880 + $0xd8] sm:$0xff]
    %v4909 = vld [vmem:[%s4880 + $0xe0] sm:$0xff]
    %v4910 = vld [vmem:[%s4880 + $0xe8] sm:$0xff]
    %v4911 = vld [vmem:[%s4880 + $0xf0] sm:$0xff]
    %v4912 = vld [vmem:[%s4880 + $0xf8] sm:$0xff]
    %s4913 = scalar_lea.vmem %s3, 48
    %v4914 = vld [vmem:[%s4913] ss:$4 sm:$0x3]
    %v4916 = vlaneseq
    %v4917 = vshrl.u32 %v4916, 7
    %v4918 = vsub.s32 0, %v4917
    %v4919 = vrot.slane %v4914, %v4918
    %v4920 = vlaneseq
    %v4921 = vshrl.u32 %v4920, 7
    %v4922 = vsub.s32 1, %v4921
    %v4923 = vrot.slane %v4914, %v4922
    %v4958 = vunpack.c.l.b16 %v4881
    %v4959 = vunpack.c.h.b16 %v4881
    %v4960 = vunpack.c.l.b16 %v4882
    %v4961 = vunpack.c.h.b16 %v4882
    %v4962 = vunpack.c.l.b16 %v4883
    %v4963 = vunpack.c.h.b16 %v4883
    %v4964 = vunpack.c.l.b16 %v4884
    %v4965 = vunpack.c.h.b16 %v4884
    %v4966 = vunpack.c.l.b16 %v4885
    %v4967 = vunpack.c.h.b16 %v4885
    %v4968 = vunpack.c.l.b16 %v4886
    %v4969 = vunpack.c.h.b16 %v4886
    %v4970 = vunpack.c.l.b16 %v4887
    %v4971 = vunpack.c.h.b16 %v4887
    %v4972 = vunpack.c.l.b16 %v4888
    %v4973 = vunpack.c.h.b16 %v4888
    %v4974 = vunpack.c.l.b16 %v4889
    %v4975 = vunpack.c.h.b16 %v4889
    %v4976 = vunpack.c.l.b16 %v4890
    %v4977 = vunpack.c.h.b16 %v4890
    %v4978 = vunpack.c.l.b16 %v4891
    %v4979 = vunpack.c.h.b16 %v4891
    %v4980 = vunpack.c.l.b16 %v4892
    %v4981 = vunpack.c.h.b16 %v4892
    %v4982 = vunpack.c.l.b16 %v4893
    %v4983 = vunpack.c.h.b16 %v4893
    %v4984 = vunpack.c.l.b16 %v4894
    %v4985 = vunpack.c.h.b16 %v4894
    %v4986 = vunpack.c.l.b16 %v4895
    %v4987 = vunpack.c.h.b16 %v4895
    %v4988 = vunpack.c.l.b16 %v4896
    %v4989 = vunpack.c.h.b16 %v4896
    %v4990 = vunpack.c.l.b16 %v4897
    %v4991 = vunpack.c.h.b16 %v4897
    %v4992 = vunpack.c.l.b16 %v4898
    %v4993 = vunpack.c.h.b16 %v4898
    %v4994 = vunpack.c.l.b16 %v4899
    %v4995 = vunpack.c.h.b16 %v4899
    %v4996 = vunpack.c.l.b16 %v4900
    %v4997 = vunpack.c.h.b16 %v4900
    %v4998 = vunpack.c.l.b16 %v4901
    %v4999 = vunpack.c.h.b16 %v4901
    %v5000 = vunpack.c.l.b16 %v4902
    %v5001 = vunpack.c.h.b16 %v4902
    %v5002 = vunpack.c.l.b16 %v4903
    %v5003 = vunpack.c.h.b16 %v4903
    %v5004 = vunpack.c.l.b16 %v4904
    %v5005 = vunpack.c.h.b16 %v4904
    %v5006 = vunpack.c.l.b16 %v4905
    %v5007 = vunpack.c.h.b16 %v4905
    %v5008 = vunpack.c.l.b16 %v4906
    %v5009 = vunpack.c.h.b16 %v4906
    %v5010 = vunpack.c.l.b16 %v4907
    %v5011 = vunpack.c.h.b16 %v4907
    %v5012 = vunpack.c.l.b16 %v4908
    %v5013 = vunpack.c.h.b16 %v4908
    %v5014 = vunpack.c.l.b16 %v4909
    %v5015 = vunpack.c.h.b16 %v4909
    %v5016 = vunpack.c.l.b16 %v4910
    %v5017 = vunpack.c.h.b16 %v4910
    %v5018 = vunpack.c.l.b16 %v4911
    %v5019 = vunpack.c.h.b16 %v4911
    %v5020 = vunpack.c.l.b16 %v4912
    %v5021 = vunpack.c.h.b16 %v4912
    %v5022 = vpack.c.b16 %v4960, %v4958
    %v5023 = vpack.c.b16 %v4961, %v4959
    %v5024 = vpack.c.b16 %v4964, %v4962
    %v5025 = vpack.c.b16 %v4965, %v4963
    %v5026 = vpack.c.b16 %v4968, %v4966
    %v5027 = vpack.c.b16 %v4969, %v4967
    %v5028 = vpack.c.b16 %v4972, %v4970
    %v5029 = vpack.c.b16 %v4973, %v4971
    %v5030 = vpack.c.b16 %v4976, %v4974
    %v5031 = vpack.c.b16 %v4977, %v4975
    %v5032 = vpack.c.b16 %v4980, %v4978
    %v5033 = vpack.c.b16 %v4981, %v4979
    %v5034 = vpack.c.b16 %v4984, %v4982
    %v5035 = vpack.c.b16 %v4985, %v4983
    %v5036 = vpack.c.b16 %v4988, %v4986
    %v5037 = vpack.c.b16 %v4989, %v4987
    %v5038 = vpack.c.b16 %v4992, %v4990
    %v5039 = vpack.c.b16 %v4993, %v4991
    %v5040 = vpack.c.b16 %v4996, %v4994
    %v5041 = vpack.c.b16 %v4997, %v4995
    %v5042 = vpack.c.b16 %v5000, %v4998
    %v5043 = vpack.c.b16 %v5001, %v4999
    %v5044 = vpack.c.b16 %v5004, %v5002
    %v5045 = vpack.c.b16 %v5005, %v5003
    %v5046 = vpack.c.b16 %v5008, %v5006
    %v5047 = vpack.c.b16 %v5009, %v5007
    %v5048 = vpack.c.b16 %v5012, %v5010
    %v5049 = vpack.c.b16 %v5013, %v5011
    %v5050 = vpack.c.b16 %v5016, %v5014
    %v5051 = vpack.c.b16 %v5017, %v5015
    %v5052 = vpack.c.b16 %v5020, %v5018
    %v5053 = vpack.c.b16 %v5021, %v5019
    %5086 = vmatprep.subr.bf16.mxu0 %v5037
    %5087 = vmatpush1.bf16.msra.mxu0 %v5036
    %5088 = vmatprep.subr.bf16.mxu0 %v5035
    %5089 = vmatpush1.bf16.msra.mxu0 %v5034
    %5090 = vmatprep.subr.bf16.mxu0 %v5033
    %5091 = vmatpush1.bf16.msra.mxu0 %v5032
    %5092 = vmatprep.subr.bf16.mxu0 %v5031
    %5093 = vmatpush1.bf16.msra.mxu0 %v5030
    %5094 = vmatprep.subr.bf16.mxu0 %v5029
    %5095 = vmatpush1.bf16.msra.mxu0 %v5028
    %5096 = vmatprep.subr.bf16.mxu0 %v5027
    %5097 = vmatpush1.bf16.msra.mxu0 %v5026
    %5098 = vmatprep.subr.bf16.mxu0 %v5025
    %5099 = vmatpush1.bf16.msra.mxu0 %v5024
    %5100 = vmatprep.subr.bf16.mxu0 %v5023
    %5101 = vmatpush1.bf16.msra.mxu0 %v5022
    %5102 = vmatprep.subr.bf16.mxu0 %v5053
    %5103 = vmatpush2.bf16.msra.mxu0 %v5052
    %5104 = vmatprep.subr.bf16.mxu0 %v5051
    %5105 = vmatpush2.bf16.msra.mxu0 %v5050
    %5106 = vmatprep.subr.bf16.mxu0 %v5049
    %5107 = vmatpush2.bf16.msra.mxu0 %v5048
    %5108 = vmatprep.subr.bf16.mxu0 %v5047
    %5109 = vmatpush2.bf16.msra.mxu0 %v5046
    %5110 = vmatprep.subr.bf16.mxu0 %v5045
    %5111 = vmatpush2.bf16.msra.mxu0 %v5044
    %5112 = vmatprep.subr.bf16.mxu0 %v5043
    %5113 = vmatpush2.bf16.msra.mxu0 %v5042
    %5114 = vmatprep.subr.bf16.mxu0 %v5041
    %5115 = vmatpush2.bf16.msra.mxu0 %v5040
    %5116 = vmatprep.subr.bf16.mxu0 %v5039
    %5117 = vmatpush2.bf16.msra.mxu0 %v5038
    %5118 = vmatprep.mubr.bf16.mxu0 %v4879
    %5119 = vmatmul.mubr.bf16.gmra.mxu0 %v4878
    %v5120 = vpop.f32.mrf.mxu0
    %v5121 = vadd.f32 %v4919, %v5120
    %v5122 = vpop.f32.mrf.mxu0
    %v5123 = vadd.f32 %v4923, %v5122
    %v5124 = vpop.f32.mrf.mxu0
    %v5125 = vpop.f32.mrf.mxu0
    %5126 = vdwg.mxu0
    %v5127 = vmax.f32 %v5121, %v5123
    %5128 = vmax.xlane.f32.xlu0 %v5127
    %v5129 = vpop.xlane.xlu0 %5128
    %v5130 = vsub.f32 %v5121, %v5129
    %v5131 = vsub.f32 %v5123, %v5129
    %v5132 = vmul.f32 %v5130, 1.442695
    %v5133 = vpow.pop %v5132
    %v5134 = vmul.f32 %v5131, 1.442695
    %v5135 = vpow.pop %v5134
    %v5136 = vadd.f32 %v5133, %v5135
    %5137 = vadd.xlane.f32.xlu0 %v5136
    %v5138 = vpop.xlane.xlu0 %5137
    %v5139 = vrcp.pop %v5138
    %v5140 = vmul.f32 %v5133, %v5139
    %v5141 = vmul.f32 %v5135, %v5139
    %5142 = vst [vmem:[#allocation8] sm:$0xff] %v5140
    %5143 = vst [vmem:[#allocation8 + $0x8] sm:$0xff] %v5141
    // Predicated region
    $region30: #{tpu_custom_call.1} parent=1 // pred_check
      _
    $region31: #{tpu_custom_call.1} parent=1 // pred_check_branch
      %5145 = sbr.rel (0) target = $region33
    $region32: #{tpu_custom_call.1} parent=1 // pred_region
      %s5147 = ssub.s32 256, 256
      %5148 = vsyncadd [#allocation4], %s5147
      %s5150 = sshll.u32 [#allocation8], 4
      %s5151 = int_to_ptr.vmem [resolvable:$true] %s5150
      %5153 = dma.vmem_to_hbm [thread:$0]  %s5151, 256, %s4, [#allocation4]
    $region33: #{tpu_custom_call.1} parent=1 // pred_fallthru
      _
    // Predicated region
    $region34: #{tpu_custom_call.1} parent=1 // pred_check
      _
    $region35: #{tpu_custom_call.1} parent=1 // pred_check_branch
      %5155 = sbr.rel (0) target = $region37
    $region36: #{tpu_custom_call.1} parent=1 // pred_region
      %5156 = dma.done [#allocation4], 256
    $region37: #{tpu_custom_call.1} parent=1 // pred_fallthru
      _
    %5157 = vsyncpa [#allocation3], 1
    %5158 = vsyncpa [#allocation6], 1
    %5159 = vsyncpa [#allocation4], 1

</llo_original>
